<compile_context>
chip_gen: v7x
topology: tpu7x:2x2x1
jax: 0.10.0
libtpu: 0.0.40
codegen_flags: <defaults>
</compile_context>

<pallas_src>
import jax
import jax.numpy as jnp
from jax import lax
from jax.experimental import pallas as pl
from jax.experimental.pallas import tpu as pltpu  # noqa: F401  (kept for easy scratch/param tweaks)

# Full-f32 matmuls everywhere (wrapper prep and reference), so kernel vs.
# reference differences come only from rounding order / tanh approximation.
jax.config.update("jax_default_matmul_precision", "highest")


def lstm_kernel(gxb_ref, whh_ref, out_ref):
    """Single-invocation LSTM recurrence (no grid, no scratch).

    gxb_ref : (T*Bp, 4H)  pre-scaled input projection + folded bias, time-major
    whh_ref : (H, 4H)     W_hh^T with i/f/o columns pre-scaled by 0.5
    out_ref : (Bp, 2H)    packed final state: [:, :H] = h, [:, H:] = c
    """
    TB, _ = gxb_ref.shape
    Bp, H2 = out_ref.shape
    H = H2 // 2
    T = TB // Bp

    whh = whh_ref[...]                         # (H, 4H), stays resident

    h = jnp.zeros((Bp, H), jnp.float32)
    c = jnp.zeros((Bp, H), jnp.float32)

    # T is a small Python constant -> fully static, unrolled recurrence with
    # static slices into gxb_ref; h/c stay in vregs.
    for t in range(T):
        gates = gxb_ref[t * Bp:(t + 1) * Bp, :] + jnp.dot(
            h, whh, preferred_element_type=jnp.float32)          # (Bp, 4H)
        # One EUP pass on the full (8,128) vreg; i/f/o lanes hold tanh(x/2),
        # g lanes hold tanh(x).  Recover sigmoids with one VPU mul-add.
        th = jnp.tanh(gates)
        sg = 0.5 * th + 0.5
        i = sg[:, 0 * H:1 * H]
        f = sg[:, 1 * H:2 * H]
        g = th[:, 2 * H:3 * H]
        o = sg[:, 3 * H:4 * H]
        c = f * c + i * g
        h = o * jnp.tanh(c)                                       # 2nd EUP pass

    # Write outputs exactly once, packed into a single buffer.
    out_ref[:, 0:H] = h
    out_ref[:, H:2 * H] = c


@jax.jit
def encoder_forward(x, future_state_target, w_ih, w_hh, b_ih, b_hh):
    """Pallas implementation of Encoder.forward.

    x:                   (B, T, Dx)  float32
    future_state_target: (B, Df)     float32
    w_ih: (4H, Dx+Df)  w_hh: (4H, H)  b_ih/b_hh: (4H,)
    returns (hidden, cell), each (num_layers=1, B, H) float32.
    """
    B, T, Dx = x.shape
    H = w_hh.shape[1]
    Bp = ((B + 7) // 8) * 8            # pad batch to a full sublane group
    pad = Bp - B

    # Split W_ih into the x part and the (time-invariant) future-state part.
    w_x = w_ih[:, :Dx]                                    # (4H, Dx)
    w_f = w_ih[:, Dx:]                                    # (4H, Df)

    # Gate pre-activation scaling for the single-tanh trick:
    # sigmoid(x) = 0.5*tanh(x/2) + 0.5  ->  scale i/f/o pre-activations by 0.5.
    gscale = jnp.concatenate([
        jnp.full((H,), 0.5, jnp.float32),    # i
        jnp.full((H,), 0.5, jnp.float32),    # f
        jnp.ones((H,), jnp.float32),         # g (tanh gate, unscaled)
        jnp.full((H,), 0.5, jnp.float32),    # o
    ])                                                    # (4H,)

    # Folded per-batch bias (future-state projection + both LSTM biases).
    bias = future_state_target @ w_f.T + b_ih + b_hh      # (B, 4H)
    bias_p = jnp.pad(bias, ((0, pad), (0, 0)))            # (Bp, 4H)

    # Hoisted input projection, time-major, batch-padded, pre-scaled:
    # one lane-dense (T*Bp, 4H) tensor.  All of this fuses under jit.
    xt = jnp.transpose(x, (1, 0, 2))                      # (T, B, Dx)
    xt = jnp.pad(xt, ((0, 0), (0, pad), (0, 0)))          # (T, Bp, Dx)
    gx = xt.reshape(T * Bp, Dx) @ w_x.T                   # (T*Bp, 4H)
    gxb = (gx.reshape(T, Bp, 4 * H) + bias_p[None]) * gscale
    gxb = gxb.reshape(T * Bp, 4 * H)

    whh_s = w_hh.T * gscale                               # (H, 4H)

    out = pl.pallas_call(
        lstm_kernel,
        out_shape=jax.ShapeDtypeStruct((Bp, 2 * H), jnp.float32),
        in_specs=[
            pl.BlockSpec((T * Bp, 4 * H), lambda: (0, 0)),
            pl.BlockSpec((H, 4 * H), lambda: (0, 0)),
        ],
        out_specs=pl.BlockSpec((Bp, 2 * H), lambda: (0, 0)),
    )(gxb, whh_s)

    hidden = out[None, :B, :H]
    cell = out[None, :B, H:]
    return hidden, cell


def encoder_reference(x, future_state_target, w_ih, w_hh, b_ih, b_hh):
    """Pure-JAX reference matching PyTorch nn.LSTM (batch_first, 1 layer)."""
    B, T, _ = x.shape
    H = w_hh.shape[1]
    fut = jnp.broadcast_to(future_state_target[:, None, :],
                           (B, T, future_state_target.shape[-1]))
    combined = jnp.concatenate([x, fut], axis=2)
    xt = jnp.transpose(combined, (1, 0, 2))               # (T, B, D)

    def step(carry, x_t):
        h, c = carry
        gates = x_t @ w_ih.T + h @ w_hh.T + b_ih + b_hh
        i = jax.nn.sigmoid(gates[:, 0 * H:1 * H])
        f = jax.nn.sigmoid(gates[:, 1 * H:2 * H])
        g = jnp.tanh(gates[:, 2 * H:3 * H])
        o = jax.nn.sigmoid(gates[:, 3 * H:4 * H])
        c = f * c + i * g
        h = o * jnp.tanh(c)
        return (h, c), h

    (h, c), _ = lax.scan(step, (jnp.zeros((B, H)), jnp.zeros((B, H))), xt)
    return h[None], c[None]


if __name__ == "__main__":
    # Encoder(input_dim=32, hidden_dim=32) with input_dim = Dx + Df
    # (x features concatenated with future_state_target).
    B, T, Dx, Df, H = 2, 8, 16, 16, 32
    D = Dx + Df

    key = jax.random.PRNGKey(0)
    kx, kf, k1, k2, k3, k4 = jax.random.split(key, 6)
    x = jax.random.normal(kx, (B, T, Dx), dtype=jnp.float32)
    future_state_target = jax.random.normal(kf, (B, Df), dtype=jnp.float32)

    # PyTorch-style uniform(-1/sqrt(H), 1/sqrt(H)) parameter init.
    bound = 1.0 / jnp.sqrt(jnp.float32(H))
    w_ih = jax.random.uniform(k1, (4 * H, D), jnp.float32, -bound, bound)
    w_hh = jax.random.uniform(k2, (4 * H, H), jnp.float32, -bound, bound)
    b_ih = jax.random.uniform(k3, (4 * H,), jnp.float32, -bound, bound)
    b_hh = jax.random.uniform(k4, (4 * H,), jnp.float32, -bound, bound)

    hidden, cell = encoder_forward(x, future_state_target, w_ih, w_hh, b_ih, b_hh)
    jax.block_until_ready((hidden, cell))

    h_ref, c_ref = encoder_reference(x, future_state_target, w_ih, w_hh, b_ih, b_hh)
    assert hidden.shape == (1, B, H) and cell.shape == (1, B, H)
    # Tolerance loosened to 1e-4: the single-tanh sigmoid identity and the
    # re-ordered (pre-scaled) summations can shift values by O(1e-6..1e-5).
    assert jnp.allclose(hidden, h_ref, atol=1e-4, rtol=1e-4)
    assert jnp.allclose(cell, c_ref, atol=1e-4, rtol=1e-4)

    print("KERNEL_OK")
</pallas_src>

<mosaic_0001>
module attributes {stable_mosaic.version = 11 : i64} {
  func.func @lstm_kernel(%arg0: memref<64x128xf32, #tpu.memory_space<vmem>>, %arg1: memref<32x128xf32, #tpu.memory_space<vmem>>, %arg2: memref<8x64xf32, #tpu.memory_space<vmem>>) attributes {dimension_semantics = [], scalar_prefetch = 0 : i64, scratch_operands = 0 : i64, tpu.core_type = #tpu.core_type<tc>} {
    %c0 = arith.constant 0 : index
    %c0_0 = arith.constant 0 : index
    %0 = vector.load %arg1[%c0, %c0_0] : memref<32x128xf32, #tpu.memory_space<vmem>>, vector<32x128xf32>
    %cst = arith.constant 0.000000e+00 : f32
    %1 = vector.broadcast %cst : f32 to vector<8x32xf32>
    %cst_1 = arith.constant 0.000000e+00 : f32
    %2 = vector.broadcast %cst_1 : f32 to vector<8x32xf32>
    %c0_2 = arith.constant 0 : index
    %c0_3 = arith.constant 0 : index
    %3 = vector.load %arg0[%c0_2, %c0_3] : memref<64x128xf32, #tpu.memory_space<vmem>>, vector<8x128xf32>
    %cst_4 = arith.constant dense<0.000000e+00> : vector<8x128xf32>
    %4 = tpu.matmul %1, %0, %cst_4 {dimension_numbers = #tpu.dot_dimension_numbers<[1], [0], [0], [1], [0, 0, 1, 1], [], []>, precision = #tpu.contract_precision<fp32>} : vector<8x32xf32>, vector<32x128xf32>, vector<8x128xf32> -> vector<8x128xf32>
    %5 = arith.addf %3, %4 : vector<8x128xf32>
    %6 = math.tanh %5 : vector<8x128xf32>
    %cst_5 = arith.constant 5.000000e-01 : f32
    %7 = vector.broadcast %cst_5 : f32 to vector<8x128xf32>
    %8 = arith.mulf %7, %6 : vector<8x128xf32>
    %cst_6 = arith.constant 5.000000e-01 : f32
    %9 = vector.broadcast %cst_6 : f32 to vector<8x128xf32>
    %10 = arith.addf %8, %9 : vector<8x128xf32>
    %11 = vector.extract_strided_slice %10 {offsets = [0, 0], sizes = [8, 32], strides = [1, 1]} : vector<8x128xf32> to vector<8x32xf32>
    %12 = vector.extract_strided_slice %10 {offsets = [0, 32], sizes = [8, 32], strides = [1, 1]} : vector<8x128xf32> to vector<8x32xf32>
    %13 = vector.extract_strided_slice %6 {offsets = [0, 64], sizes = [8, 32], strides = [1, 1]} : vector<8x128xf32> to vector<8x32xf32>
    %14 = vector.extract_strided_slice %10 {offsets = [0, 96], sizes = [8, 32], strides = [1, 1]} : vector<8x128xf32> to vector<8x32xf32>
    %15 = arith.mulf %12, %2 : vector<8x32xf32>
    %16 = arith.mulf %11, %13 : vector<8x32xf32>
    %17 = arith.addf %15, %16 : vector<8x32xf32>
    %18 = math.tanh %17 : vector<8x32xf32>
    %19 = arith.mulf %14, %18 : vector<8x32xf32>
    %c8 = arith.constant 8 : index
    %c0_7 = arith.constant 0 : index
    %20 = vector.load %arg0[%c8, %c0_7] : memref<64x128xf32, #tpu.memory_space<vmem>>, vector<8x128xf32>
    %cst_8 = arith.constant dense<0.000000e+00> : vector<8x128xf32>
    %21 = tpu.matmul %19, %0, %cst_8 {dimension_numbers = #tpu.dot_dimension_numbers<[1], [0], [0], [1], [0, 0, 1, 1], [], []>, precision = #tpu.contract_precision<fp32>} : vector<8x32xf32>, vector<32x128xf32>, vector<8x128xf32> -> vector<8x128xf32>
    %22 = arith.addf %20, %21 : vector<8x128xf32>
    %23 = math.tanh %22 : vector<8x128xf32>
    %cst_9 = arith.constant 5.000000e-01 : f32
    %24 = vector.broadcast %cst_9 : f32 to vector<8x128xf32>
    %25 = arith.mulf %24, %23 : vector<8x128xf32>
    %cst_10 = arith.constant 5.000000e-01 : f32
    %26 = vector.broadcast %cst_10 : f32 to vector<8x128xf32>
    %27 = arith.addf %25, %26 : vector<8x128xf32>
    %28 = vector.extract_strided_slice %27 {offsets = [0, 0], sizes = [8, 32], strides = [1, 1]} : vector<8x128xf32> to vector<8x32xf32>
    %29 = vector.extract_strided_slice %27 {offsets = [0, 32], sizes = [8, 32], strides = [1, 1]} : vector<8x128xf32> to vector<8x32xf32>
    %30 = vector.extract_strided_slice %23 {offsets = [0, 64], sizes = [8, 32], strides = [1, 1]} : vector<8x128xf32> to vector<8x32xf32>
    %31 = vector.extract_strided_slice %27 {offsets = [0, 96], sizes = [8, 32], strides = [1, 1]} : vector<8x128xf32> to vector<8x32xf32>
    %32 = arith.mulf %29, %17 : vector<8x32xf32>
    %33 = arith.mulf %28, %30 : vector<8x32xf32>
    %34 = arith.addf %32, %33 : vector<8x32xf32>
    %35 = math.tanh %34 : vector<8x32xf32>
    %36 = arith.mulf %31, %35 : vector<8x32xf32>
    %c16 = arith.constant 16 : index
    %c0_11 = arith.constant 0 : index
    %37 = vector.load %arg0[%c16, %c0_11] : memref<64x128xf32, #tpu.memory_space<vmem>>, vector<8x128xf32>
    %cst_12 = arith.constant dense<0.000000e+00> : vector<8x128xf32>
    %38 = tpu.matmul %36, %0, %cst_12 {dimension_numbers = #tpu.dot_dimension_numbers<[1], [0], [0], [1], [0, 0, 1, 1], [], []>, precision = #tpu.contract_precision<fp32>} : vector<8x32xf32>, vector<32x128xf32>, vector<8x128xf32> -> vector<8x128xf32>
    %39 = arith.addf %37, %38 : vector<8x128xf32>
    %40 = math.tanh %39 : vector<8x128xf32>
    %cst_13 = arith.constant 5.000000e-01 : f32
    %41 = vector.broadcast %cst_13 : f32 to vector<8x128xf32>
    %42 = arith.mulf %41, %40 : vector<8x128xf32>
    %cst_14 = arith.constant 5.000000e-01 : f32
    %43 = vector.broadcast %cst_14 : f32 to vector<8x128xf32>
    %44 = arith.addf %42, %43 : vector<8x128xf32>
    %45 = vector.extract_strided_slice %44 {offsets = [0, 0], sizes = [8, 32], strides = [1, 1]} : vector<8x128xf32> to vector<8x32xf32>
    %46 = vector.extract_strided_slice %44 {offsets = [0, 32], sizes = [8, 32], strides = [1, 1]} : vector<8x128xf32> to vector<8x32xf32>
    %47 = vector.extract_strided_slice %40 {offsets = [0, 64], sizes = [8, 32], strides = [1, 1]} : vector<8x128xf32> to vector<8x32xf32>
    %48 = vector.extract_strided_slice %44 {offsets = [0, 96], sizes = [8, 32], strides = [1, 1]} : vector<8x128xf32> to vector<8x32xf32>
    %49 = arith.mulf %46, %34 : vector<8x32xf32>
    %50 = arith.mulf %45, %47 : vector<8x32xf32>
    %51 = arith.addf %49, %50 : vector<8x32xf32>
    %52 = math.tanh %51 : vector<8x32xf32>
    %53 = arith.mulf %48, %52 : vector<8x32xf32>
    %c24 = arith.constant 24 : index
    %c0_15 = arith.constant 0 : index
    %54 = vector.load %arg0[%c24, %c0_15] : memref<64x128xf32, #tpu.memory_space<vmem>>, vector<8x128xf32>
    %cst_16 = arith.constant dense<0.000000e+00> : vector<8x128xf32>
    %55 = tpu.matmul %53, %0, %cst_16 {dimension_numbers = #tpu.dot_dimension_numbers<[1], [0], [0], [1], [0, 0, 1, 1], [], []>, precision = #tpu.contract_precision<fp32>} : vector<8x32xf32>, vector<32x128xf32>, vector<8x128xf32> -> vector<8x128xf32>
    %56 = arith.addf %54, %55 : vector<8x128xf32>
    %57 = math.tanh %56 : vector<8x128xf32>
    %cst_17 = arith.constant 5.000000e-01 : f32
    %58 = vector.broadcast %cst_17 : f32 to vector<8x128xf32>
    %59 = arith.mulf %58, %57 : vector<8x128xf32>
    %cst_18 = arith.constant 5.000000e-01 : f32
    %60 = vector.broadcast %cst_18 : f32 to vector<8x128xf32>
    %61 = arith.addf %59, %60 : vector<8x128xf32>
    %62 = vector.extract_strided_slice %61 {offsets = [0, 0], sizes = [8, 32], strides = [1, 1]} : vector<8x128xf32> to vector<8x32xf32>
    %63 = vector.extract_strided_slice %61 {offsets = [0, 32], sizes = [8, 32], strides = [1, 1]} : vector<8x128xf32> to vector<8x32xf32>
    %64 = vector.extract_strided_slice %57 {offsets = [0, 64], sizes = [8, 32], strides = [1, 1]} : vector<8x128xf32> to vector<8x32xf32>
    %65 = vector.extract_strided_slice %61 {offsets = [0, 96], sizes = [8, 32], strides = [1, 1]} : vector<8x128xf32> to vector<8x32xf32>
    %66 = arith.mulf %63, %51 : vector<8x32xf32>
    %67 = arith.mulf %62, %64 : vector<8x32xf32>
    %68 = arith.addf %66, %67 : vector<8x32xf32>
    %69 = math.tanh %68 : vector<8x32xf32>
    %70 = arith.mulf %65, %69 : vector<8x32xf32>
    %c32 = arith.constant 32 : index
    %c0_19 = arith.constant 0 : index
    %71 = vector.load %arg0[%c32, %c0_19] : memref<64x128xf32, #tpu.memory_space<vmem>>, vector<8x128xf32>
    %cst_20 = arith.constant dense<0.000000e+00> : vector<8x128xf32>
    %72 = tpu.matmul %70, %0, %cst_20 {dimension_numbers = #tpu.dot_dimension_numbers<[1], [0], [0], [1], [0, 0, 1, 1], [], []>, precision = #tpu.contract_precision<fp32>} : vector<8x32xf32>, vector<32x128xf32>, vector<8x128xf32> -> vector<8x128xf32>
    %73 = arith.addf %71, %72 : vector<8x128xf32>
    %74 = math.tanh %73 : vector<8x128xf32>
    %cst_21 = arith.constant 5.000000e-01 : f32
    %75 = vector.broadcast %cst_21 : f32 to vector<8x128xf32>
    %76 = arith.mulf %75, %74 : vector<8x128xf32>
    %cst_22 = arith.constant 5.000000e-01 : f32
    %77 = vector.broadcast %cst_22 : f32 to vector<8x128xf32>
    %78 = arith.addf %76, %77 : vector<8x128xf32>
    %79 = vector.extract_strided_slice %78 {offsets = [0, 0], sizes = [8, 32], strides = [1, 1]} : vector<8x128xf32> to vector<8x32xf32>
    %80 = vector.extract_strided_slice %78 {offsets = [0, 32], sizes = [8, 32], strides = [1, 1]} : vector<8x128xf32> to vector<8x32xf32>
    %81 = vector.extract_strided_slice %74 {offsets = [0, 64], sizes = [8, 32], strides = [1, 1]} : vector<8x128xf32> to vector<8x32xf32>
    %82 = vector.extract_strided_slice %78 {offsets = [0, 96], sizes = [8, 32], strides = [1, 1]} : vector<8x128xf32> to vector<8x32xf32>
    %83 = arith.mulf %80, %68 : vector<8x32xf32>
    %84 = arith.mulf %79, %81 : vector<8x32xf32>
    %85 = arith.addf %83, %84 : vector<8x32xf32>
    %86 = math.tanh %85 : vector<8x32xf32>
    %87 = arith.mulf %82, %86 : vector<8x32xf32>
    %c40 = arith.constant 40 : index
    %c0_23 = arith.constant 0 : index
    %88 = vector.load %arg0[%c40, %c0_23] : memref<64x128xf32, #tpu.memory_space<vmem>>, vector<8x128xf32>
    %cst_24 = arith.constant dense<0.000000e+00> : vector<8x128xf32>
    %89 = tpu.matmul %87, %0, %cst_24 {dimension_numbers = #tpu.dot_dimension_numbers<[1], [0], [0], [1], [0, 0, 1, 1], [], []>, precision = #tpu.contract_precision<fp32>} : vector<8x32xf32>, vector<32x128xf32>, vector<8x128xf32> -> vector<8x128xf32>
    %90 = arith.addf %88, %89 : vector<8x128xf32>
    %91 = math.tanh %90 : vector<8x128xf32>
    %cst_25 = arith.constant 5.000000e-01 : f32
    %92 = vector.broadcast %cst_25 : f32 to vector<8x128xf32>
    %93 = arith.mulf %92, %91 : vector<8x128xf32>
    %cst_26 = arith.constant 5.000000e-01 : f32
    %94 = vector.broadcast %cst_26 : f32 to vector<8x128xf32>
    %95 = arith.addf %93, %94 : vector<8x128xf32>
    %96 = vector.extract_strided_slice %95 {offsets = [0, 0], sizes = [8, 32], strides = [1, 1]} : vector<8x128xf32> to vector<8x32xf32>
    %97 = vector.extract_strided_slice %95 {offsets = [0, 32], sizes = [8, 32], strides = [1, 1]} : vector<8x128xf32> to vector<8x32xf32>
    %98 = vector.extract_strided_slice %91 {offsets = [0, 64], sizes = [8, 32], strides = [1, 1]} : vector<8x128xf32> to vector<8x32xf32>
    %99 = vector.extract_strided_slice %95 {offsets = [0, 96], sizes = [8, 32], strides = [1, 1]} : vector<8x128xf32> to vector<8x32xf32>
    %100 = arith.mulf %97, %85 : vector<8x32xf32>
    %101 = arith.mulf %96, %98 : vector<8x32xf32>
    %102 = arith.addf %100, %101 : vector<8x32xf32>
    %103 = math.tanh %102 : vector<8x32xf32>
    %104 = arith.mulf %99, %103 : vector<8x32xf32>
    %c48 = arith.constant 48 : index
    %c0_27 = arith.constant 0 : index
    %105 = vector.load %arg0[%c48, %c0_27] : memref<64x128xf32, #tpu.memory_space<vmem>>, vector<8x128xf32>
    %cst_28 = arith.constant dense<0.000000e+00> : vector<8x128xf32>
    %106 = tpu.matmul %104, %0, %cst_28 {dimension_numbers = #tpu.dot_dimension_numbers<[1], [0], [0], [1], [0, 0, 1, 1], [], []>, precision = #tpu.contract_precision<fp32>} : vector<8x32xf32>, vector<32x128xf32>, vector<8x128xf32> -> vector<8x128xf32>
    %107 = arith.addf %105, %106 : vector<8x128xf32>
    %108 = math.tanh %107 : vector<8x128xf32>
    %cst_29 = arith.constant 5.000000e-01 : f32
    %109 = vector.broadcast %cst_29 : f32 to vector<8x128xf32>
    %110 = arith.mulf %109, %108 : vector<8x128xf32>
    %cst_30 = arith.constant 5.000000e-01 : f32
    %111 = vector.broadcast %cst_30 : f32 to vector<8x128xf32>
    %112 = arith.addf %110, %111 : vector<8x128xf32>
    %113 = vector.extract_strided_slice %112 {offsets = [0, 0], sizes = [8, 32], strides = [1, 1]} : vector<8x128xf32> to vector<8x32xf32>
    %114 = vector.extract_strided_slice %112 {offsets = [0, 32], sizes = [8, 32], strides = [1, 1]} : vector<8x128xf32> to vector<8x32xf32>
    %115 = vector.extract_strided_slice %108 {offsets = [0, 64], sizes = [8, 32], strides = [1, 1]} : vector<8x128xf32> to vector<8x32xf32>
    %116 = vector.extract_strided_slice %112 {offsets = [0, 96], sizes = [8, 32], strides = [1, 1]} : vector<8x128xf32> to vector<8x32xf32>
    %117 = arith.mulf %114, %102 : vector<8x32xf32>
    %118 = arith.mulf %113, %115 : vector<8x32xf32>
    %119 = arith.addf %117, %118 : vector<8x32xf32>
    %120 = math.tanh %119 : vector<8x32xf32>
    %121 = arith.mulf %116, %120 : vector<8x32xf32>
    %c56 = arith.constant 56 : index
    %c0_31 = arith.constant 0 : index
    %122 = vector.load %arg0[%c56, %c0_31] : memref<64x128xf32, #tpu.memory_space<vmem>>, vector<8x128xf32>
    %cst_32 = arith.constant dense<0.000000e+00> : vector<8x128xf32>
    %123 = tpu.matmul %121, %0, %cst_32 {dimension_numbers = #tpu.dot_dimension_numbers<[1], [0], [0], [1], [0, 0, 1, 1], [], []>, precision = #tpu.contract_precision<fp32>} : vector<8x32xf32>, vector<32x128xf32>, vector<8x128xf32> -> vector<8x128xf32>
    %124 = arith.addf %122, %123 : vector<8x128xf32>
    %125 = math.tanh %124 : vector<8x128xf32>
    %cst_33 = arith.constant 5.000000e-01 : f32
    %126 = vector.broadcast %cst_33 : f32 to vector<8x128xf32>
    %127 = arith.mulf %126, %125 : vector<8x128xf32>
    %cst_34 = arith.constant 5.000000e-01 : f32
    %128 = vector.broadcast %cst_34 : f32 to vector<8x128xf32>
    %129 = arith.addf %127, %128 : vector<8x128xf32>
    %130 = vector.extract_strided_slice %129 {offsets = [0, 0], sizes = [8, 32], strides = [1, 1]} : vector<8x128xf32> to vector<8x32xf32>
    %131 = vector.extract_strided_slice %129 {offsets = [0, 32], sizes = [8, 32], strides = [1, 1]} : vector<8x128xf32> to vector<8x32xf32>
    %132 = vector.extract_strided_slice %125 {offsets = [0, 64], sizes = [8, 32], strides = [1, 1]} : vector<8x128xf32> to vector<8x32xf32>
    %133 = vector.extract_strided_slice %129 {offsets = [0, 96], sizes = [8, 32], strides = [1, 1]} : vector<8x128xf32> to vector<8x32xf32>
    %134 = arith.mulf %131, %119 : vector<8x32xf32>
    %135 = arith.mulf %130, %132 : vector<8x32xf32>
    %136 = arith.addf %134, %135 : vector<8x32xf32>
    %137 = math.tanh %136 : vector<8x32xf32>
    %138 = arith.mulf %133, %137 : vector<8x32xf32>
    %c0_35 = arith.constant 0 : index
    %c0_36 = arith.constant 0 : index
    %139 = vector.load %arg2[%c0_35, %c0_36] : memref<8x64xf32, #tpu.memory_space<vmem>>, vector<8x32xf32>
    tpu.vector_store %arg2[%c0_35, %c0_36], %138 {strides = array<i32>} : memref<8x64xf32, #tpu.memory_space<vmem>>, vector<8x32xf32>,
    %c0_37 = arith.constant 0 : index
    %c32_38 = arith.constant 32 : index
    %140 = vector.load %arg2[%c0_37, %c32_38] : memref<8x64xf32, #tpu.memory_space<vmem>>, vector<8x32xf32>
    tpu.vector_store %arg2[%c0_37, %c32_38], %136 {strides = array<i32>} : memref<8x64xf32, #tpu.memory_space<vmem>>, vector<8x32xf32>,
    return
  }
}

</mosaic_0001>

<llo_original>
// kernel: encoder_forward.1
$region0: #{encoder_forward.1}
  #allocation0 [shape = 'u32[]', space=smem, size = 0x4, offset = 0x4, fixed_abs, tag = 'smem constant byte address 0x4 - core index']
  #allocation1 [shape = 'u32[144,128]{1,0:T(1,128)}', space=vmem, size = 0x12000, scoped, tag = 'internal scratch']
  %s0 = inlined_call_operand.vmem [shape: f32[64,128], index: 0, kind: input, shape index: {}]
  %s1 = inlined_call_operand.vmem [shape: f32[32,128], index: 1, kind: input, shape index: {}]
  %s2 = inlined_call_operand.vmem [shape: f32[8,64], index: 2, kind: output, shape index: {}]
  %s3 = sld [smem:[#allocation0]]
  $region18: #{encoder_forward.1} parent=0
    _
  %s5 = ssub.s32 1, %s3
  %s6 = scalar_select 0, %s5, %s3
  // Predicated region
  $region2: #{encoder_forward.1} parent=0 // pred_check
    _
  $region3: #{encoder_forward.1} parent=0 // pred_check_branch
    %8 = sbr.rel (0) target = $region5
  $region4: #{encoder_forward.1} parent=0 // pred_region
    _
  $region5: #{encoder_forward.1} parent=0 // pred_fallthru
    _
  // Predicated region
  $region6: #{encoder_forward.1} parent=0 // pred_check
    _
  $region7: #{encoder_forward.1} parent=0 // pred_check_branch
    %10 = sbr.rel (0) target = $region9
  $region8: #{encoder_forward.1} parent=0 // pred_region
    _
  $region9: #{encoder_forward.1} parent=0 // pred_fallthru
    _
  %v11 = vld [vmem:[%s1] sm:$0xff]
  %v12 = vld [vmem:[%s1 + $0x8] sm:$0xff]
  %v13 = vld [vmem:[%s1 + $0x10] sm:$0xff]
  %v14 = vld [vmem:[%s1 + $0x18] sm:$0xff]
  %v15 = vld [vmem:[%s0] sm:$0xff]
  %vm16 = vcmask 261120
  %v18 = vsel %vm16, 0.0, 0
  %20 = vmatprep.subr.mxu0 0.0
  %v21 = vand.u32 %v11, 4294901760
  %22 = vmatpush1.msra.mxu0 %v21
  %23 = vmatprep.subr.mxu0 0.0
  %v24 = vand.u32 %v12, 4294901760
  %25 = vmatpush1.msra.mxu0 %v24
  %26 = vmatprep.subr.mxu0 0.0
  %v27 = vand.u32 %v13, 4294901760
  %28 = vmatpush1.msra.mxu0 %v27
  %29 = vmatprep.subr.mxu0 0.0
  %v30 = vand.u32 %v14, 4294901760
  %31 = vmatpush1.msra.mxu0 %v30
  %32 = vmatprep.subr.mxu0 0.0
  %33 = vmatpush1.msra.mxu0 0.0
  %34 = vmatprep.subr.mxu0 0.0
  %35 = vmatpush1.msra.mxu0 0.0
  %36 = vmatprep.subr.mxu0 0.0
  %37 = vmatpush1.msra.mxu0 0.0
  %38 = vmatprep.subr.mxu0 0.0
  %39 = vmatpush1.msra.mxu0 0.0
  %40 = vmatprep.subr.mxu0 0.0
  %41 = vmatpush1.msra.mxu0 0.0
  %42 = vmatprep.subr.mxu0 0.0
  %43 = vmatpush1.msra.mxu0 0.0
  %44 = vmatprep.subr.mxu0 0.0
  %45 = vmatpush1.msra.mxu0 0.0
  %46 = vmatprep.subr.mxu0 0.0
  %47 = vmatpush1.msra.mxu0 0.0
  %48 = vmatprep.subr.mxu0 0.0
  %49 = vmatpush1.msra.mxu0 0.0
  %50 = vmatprep.subr.mxu0 0.0
  %51 = vmatpush1.msra.mxu0 0.0
  %52 = vmatprep.subr.mxu0 0.0
  %53 = vmatpush1.msra.mxu0 0.0
  %54 = vmatprep.subr.mxu0 0.0
  %55 = vmatpush1.msra.mxu0 0.0
  %56 = vmatprep.subr.mxu0 0.0
  %57 = vmatpush1.msra.mxu0 0.0
  %58 = vmatprep.subr.mxu0 0.0
  %59 = vmatpush1.msra.mxu0 0.0
  %60 = vmatprep.subr.mxu0 0.0
  %61 = vmatpush1.msra.mxu0 0.0
  %62 = vmatprep.subr.mxu0 0.0
  %63 = vmatpush1.msra.mxu0 0.0
  %64 = vmatprep.subr.mxu0 0.0
  %65 = vmatpush1.msra.mxu0 0.0
  %66 = vmatprep.subr.mxu0 0.0
  %67 = vmatpush1.msra.mxu0 0.0
  %68 = vmatprep.subr.mxu0 0.0
  %69 = vmatpush1.msra.mxu0 0.0
  %70 = vmatprep.subr.mxu0 0.0
  %71 = vmatpush1.msra.mxu0 0.0
  %72 = vmatprep.subr.mxu0 0.0
  %73 = vmatpush1.msra.mxu0 0.0
  %74 = vmatprep.subr.mxu0 0.0
  %75 = vmatpush1.msra.mxu0 0.0
  %76 = vmatprep.subr.mxu0 0.0
  %77 = vmatpush1.msra.mxu0 0.0
  %78 = vmatprep.subr.mxu0 0.0
  %79 = vmatpush1.msra.mxu0 0.0
  %80 = vmatprep.subr.mxu0 0.0
  %81 = vmatpush1.msra.mxu0 0.0
  %82 = vmatprep.subr.mxu0 0.0
  %83 = vmatpush1.msra.mxu0 0.0
  %84 = vmatprep.subr.mxu0 0.0
  %85 = vmatpush1.msra.mxu0 0.0
  %86 = vmatprep.subr.mxu0 0.0
  %87 = vmatpush1.msra.mxu0 0.0
  %88 = vmatprep.mubr.f32.mxu0 0.0
  %v89 = vand.u32 %v18, 4294901760
  %v90 = vsub.f32 %v18, %v89
  %v91 = vand.u32 %v90, 4294901760
  %v92 = vsub.f32 %v90, %v91
  %v93 = vand.u32 %v92, 4294901760
  %94 = vmatmul.mubr.f32.gmra.mrb[0].mxu0 %v93
  %v95 = vpop.f32.mrb[0].mxu0
  %v96 = vadd.f32 0.0, %v95
  %v97 = vpop.f32.mrb[0].mxu0
  %98 = vdwg.mxu0
  %99 = vmatprep.subr.mxu0 0.0
  %v100 = vand.u32 %v11, 4294901760
  %v101 = vsub.f32 %v11, %v100
  %v102 = vand.u32 %v101, 4294901760
  %v103 = vsub.f32 %v101, %v102
  %v104 = vand.u32 %v103, 4294901760
  %105 = vmatpush1.msra.mxu0 %v104
  %106 = vmatprep.subr.mxu0 0.0
  %v107 = vand.u32 %v12, 4294901760
  %v108 = vsub.f32 %v12, %v107
  %v109 = vand.u32 %v108, 4294901760
  %v110 = vsub.f32 %v108, %v109
  %v111 = vand.u32 %v110, 4294901760
  %112 = vmatpush1.msra.mxu0 %v111
  %113 = vmatprep.subr.mxu0 0.0
  %v114 = vand.u32 %v13, 4294901760
  %v115 = vsub.f32 %v13, %v114
  %v116 = vand.u32 %v115, 4294901760
  %v117 = vsub.f32 %v115, %v116
  %v118 = vand.u32 %v117, 4294901760
  %119 = vmatpush1.msra.mxu0 %v118
  %120 = vmatprep.subr.mxu0 0.0
  %v121 = vand.u32 %v14, 4294901760
  %v122 = vsub.f32 %v14, %v121
  %v123 = vand.u32 %v122, 4294901760
  %v124 = vsub.f32 %v122, %v123
  %v125 = vand.u32 %v124, 4294901760
  %126 = vmatpush1.msra.mxu0 %v125
  %127 = vmatprep.subr.mxu0 0.0
  %128 = vmatpush1.msra.mxu0 0.0
  %129 = vmatprep.subr.mxu0 0.0
  %130 = vmatpush1.msra.mxu0 0.0
  %131 = vmatprep.subr.mxu0 0.0
  %132 = vmatpush1.msra.mxu0 0.0
  %133 = vmatprep.subr.mxu0 0.0
  %134 = vmatpush1.msra.mxu0 0.0
  %135 = vmatprep.subr.mxu0 0.0
  %136 = vmatpush1.msra.mxu0 0.0
  %137 = vmatprep.subr.mxu0 0.0
  %138 = vmatpush1.msra.mxu0 0.0
  %139 = vmatprep.subr.mxu0 0.0
  %140 = vmatpush1.msra.mxu0 0.0
  %141 = vmatprep.subr.mxu0 0.0
  %142 = vmatpush1.msra.mxu0 0.0
  %143 = vmatprep.subr.mxu0 0.0
  %144 = vmatpush1.msra.mxu0 0.0
  %145 = vmatprep.subr.mxu0 0.0
  %146 = vmatpush1.msra.mxu0 0.0
  %147 = vmatprep.subr.mxu0 0.0
  %148 = vmatpush1.msra.mxu0 0.0
  %149 = vmatprep.subr.mxu0 0.0
  %150 = vmatpush1.msra.mxu0 0.0
  %151 = vmatprep.subr.mxu0 0.0
  %152 = vmatpush1.msra.mxu0 0.0
  %153 = vmatprep.subr.mxu0 0.0
  %154 = vmatpush1.msra.mxu0 0.0
  %155 = vmatprep.subr.mxu0 0.0
  %156 = vmatpush1.msra.mxu0 0.0
  %157 = vmatprep.subr.mxu0 0.0
  %158 = vmatpush1.msra.mxu0 0.0
  %159 = vmatprep.subr.mxu0 0.0
  %160 = vmatpush1.msra.mxu0 0.0
  %161 = vmatprep.subr.mxu0 0.0
  %162 = vmatpush1.msra.mxu0 0.0
  %163 = vmatprep.subr.mxu0 0.0
  %164 = vmatpush1.msra.mxu0 0.0
  %165 = vmatprep.subr.mxu0 0.0
  %166 = vmatpush1.msra.mxu0 0.0
  %167 = vmatprep.subr.mxu0 0.0
  %168 = vmatpush1.msra.mxu0 0.0
  %169 = vmatprep.subr.mxu0 0.0
  %170 = vmatpush1.msra.mxu0 0.0
  %171 = vmatprep.subr.mxu0 0.0
  %172 = vmatpush1.msra.mxu0 0.0
  %173 = vmatprep.subr.mxu0 0.0
  %174 = vmatpush1.msra.mxu0 0.0
  %175 = vmatprep.subr.mxu0 0.0
  %176 = vmatpush1.msra.mxu0 0.0
  %177 = vmatprep.subr.mxu0 0.0
  %178 = vmatpush1.msra.mxu0 0.0
  %179 = vmatprep.subr.mxu0 0.0
  %180 = vmatpush1.msra.mxu0 0.0
  %181 = vmatprep.subr.mxu0 0.0
  %182 = vmatpush1.msra.mxu0 0.0
  %183 = vmatprep.mubr.f32.mxu0 0.0
  %v184 = vand.u32 %v18, 4294901760
  %185 = vmatmul.mubr.f32.gmra.mrb[0].mxu0 %v184
  %v186 = vpop.f32.mrb[0].mxu0
  %v187 = vadd.f32 %v96, %v186
  %v188 = vpop.f32.mrb[0].mxu0
  %189 = vdwg.mxu0
  %190 = vmatprep.subr.mxu0 0.0
  %v191 = vand.u32 %v11, 4294901760
  %v192 = vsub.f32 %v11, %v191
  %193 = vmatpush1.msra.mxu0 %v192
  %194 = vmatprep.subr.mxu0 0.0
  %v195 = vand.u32 %v12, 4294901760
  %v196 = vsub.f32 %v12, %v195
  %197 = vmatpush1.msra.mxu0 %v196
  %198 = vmatprep.subr.mxu0 0.0
  %v199 = vand.u32 %v13, 4294901760
  %v200 = vsub.f32 %v13, %v199
  %201 = vmatpush1.msra.mxu0 %v200
  %202 = vmatprep.subr.mxu0 0.0
  %v203 = vand.u32 %v14, 4294901760
  %v204 = vsub.f32 %v14, %v203
  %205 = vmatpush1.msra.mxu0 %v204
  %206 = vmatprep.subr.mxu0 0.0
  %207 = vmatpush1.msra.mxu0 0.0
  %208 = vmatprep.subr.mxu0 0.0
  %209 = vmatpush1.msra.mxu0 0.0
  %210 = vmatprep.subr.mxu0 0.0
  %211 = vmatpush1.msra.mxu0 0.0
  %212 = vmatprep.subr.mxu0 0.0
  %213 = vmatpush1.msra.mxu0 0.0
  %214 = vmatprep.subr.mxu0 0.0
  %215 = vmatpush1.msra.mxu0 0.0
  %216 = vmatprep.subr.mxu0 0.0
  %217 = vmatpush1.msra.mxu0 0.0
  %218 = vmatprep.subr.mxu0 0.0
  %219 = vmatpush1.msra.mxu0 0.0
  %220 = vmatprep.subr.mxu0 0.0
  %221 = vmatpush1.msra.mxu0 0.0
  %222 = vmatprep.subr.mxu0 0.0
  %223 = vmatpush1.msra.mxu0 0.0
  %224 = vmatprep.subr.mxu0 0.0
  %225 = vmatpush1.msra.mxu0 0.0
  %226 = vmatprep.subr.mxu0 0.0
  %227 = vmatpush1.msra.mxu0 0.0
  %228 = vmatprep.subr.mxu0 0.0
  %229 = vmatpush1.msra.mxu0 0.0
  %230 = vmatprep.subr.mxu0 0.0
  %231 = vmatpush1.msra.mxu0 0.0
  %232 = vmatprep.subr.mxu0 0.0
  %233 = vmatpush1.msra.mxu0 0.0
  %234 = vmatprep.subr.mxu0 0.0
  %235 = vmatpush1.msra.mxu0 0.0
  %236 = vmatprep.subr.mxu0 0.0
  %237 = vmatpush1.msra.mxu0 0.0
  %238 = vmatprep.subr.mxu0 0.0
  %239 = vmatpush1.msra.mxu0 0.0
  %240 = vmatprep.subr.mxu0 0.0
  %241 = vmatpush1.msra.mxu0 0.0
  %242 = vmatprep.subr.mxu0 0.0
  %243 = vmatpush1.msra.mxu0 0.0
  %244 = vmatprep.subr.mxu0 0.0
  %245 = vmatpush1.msra.mxu0 0.0
  %246 = vmatprep.subr.mxu0 0.0
  %247 = vmatpush1.msra.mxu0 0.0
  %248 = vmatprep.subr.mxu0 0.0
  %249 = vmatpush1.msra.mxu0 0.0
  %250 = vmatprep.subr.mxu0 0.0
  %251 = vmatpush1.msra.mxu0 0.0
  %252 = vmatprep.subr.mxu0 0.0
  %253 = vmatpush1.msra.mxu0 0.0
  %254 = vmatprep.subr.mxu0 0.0
  %255 = vmatpush1.msra.mxu0 0.0
  %256 = vmatprep.subr.mxu0 0.0
  %257 = vmatpush1.msra.mxu0 0.0
  %258 = vmatprep.subr.mxu0 0.0
  %259 = vmatpush1.msra.mxu0 0.0
  %260 = vmatprep.subr.mxu0 0.0
  %261 = vmatpush1.msra.mxu0 0.0
  %262 = vmatprep.mubr.f32.mxu0 0.0
  %v263 = vand.u32 %v18, 4294901760
  %v264 = vsub.f32 %v18, %v263
  %265 = vmatmul.mubr.f32.gmra.mrb[0].mxu0 %v264
  %v266 = vpop.f32.mrb[0].mxu0
  %v267 = vadd.f32 %v187, %v266
  %v268 = vpop.f32.mrb[0].mxu0
  %269 = vdwg.mxu0
  %270 = vmatprep.subr.mxu0 0.0
  %v271 = vand.u32 %v11, 4294901760
  %272 = vmatpush1.msra.mxu0 %v271
  %273 = vmatprep.subr.mxu0 0.0
  %v274 = vand.u32 %v12, 4294901760
  %275 = vmatpush1.msra.mxu0 %v274
  %276 = vmatprep.subr.mxu0 0.0
  %v277 = vand.u32 %v13, 4294901760
  %278 = vmatpush1.msra.mxu0 %v277
  %279 = vmatprep.subr.mxu0 0.0
  %v280 = vand.u32 %v14, 4294901760
  %281 = vmatpush1.msra.mxu0 %v280
  %282 = vmatprep.subr.mxu0 0.0
  %283 = vmatpush1.msra.mxu0 0.0
  %284 = vmatprep.subr.mxu0 0.0
  %285 = vmatpush1.msra.mxu0 0.0
  %286 = vmatprep.subr.mxu0 0.0
  %287 = vmatpush1.msra.mxu0 0.0
  %288 = vmatprep.subr.mxu0 0.0
  %289 = vmatpush1.msra.mxu0 0.0
  %290 = vmatprep.subr.mxu0 0.0
  %291 = vmatpush1.msra.mxu0 0.0
  %292 = vmatprep.subr.mxu0 0.0
  %293 = vmatpush1.msra.mxu0 0.0
  %294 = vmatprep.subr.mxu0 0.0
  %295 = vmatpush1.msra.mxu0 0.0
  %296 = vmatprep.subr.mxu0 0.0
  %297 = vmatpush1.msra.mxu0 0.0
  %298 = vmatprep.subr.mxu0 0.0
  %299 = vmatpush1.msra.mxu0 0.0
  %300 = vmatprep.subr.mxu0 0.0
  %301 = vmatpush1.msra.mxu0 0.0
  %302 = vmatprep.subr.mxu0 0.0
  %303 = vmatpush1.msra.mxu0 0.0
  %304 = vmatprep.subr.mxu0 0.0
  %305 = vmatpush1.msra.mxu0 0.0
  %306 = vmatprep.subr.mxu0 0.0
  %307 = vmatpush1.msra.mxu0 0.0
  %308 = vmatprep.subr.mxu0 0.0
  %309 = vmatpush1.msra.mxu0 0.0
  %310 = vmatprep.subr.mxu0 0.0
  %311 = vmatpush1.msra.mxu0 0.0
  %312 = vmatprep.subr.mxu0 0.0
  %313 = vmatpush1.msra.mxu0 0.0
  %314 = vmatprep.subr.mxu0 0.0
  %315 = vmatpush1.msra.mxu0 0.0
  %316 = vmatprep.subr.mxu0 0.0
  %317 = vmatpush1.msra.mxu0 0.0
  %318 = vmatprep.subr.mxu0 0.0
  %319 = vmatpush1.msra.mxu0 0.0
  %320 = vmatprep.subr.mxu0 0.0
  %321 = vmatpush1.msra.mxu0 0.0
  %322 = vmatprep.subr.mxu0 0.0
  %323 = vmatpush1.msra.mxu0 0.0
  %324 = vmatprep.subr.mxu0 0.0
  %325 = vmatpush1.msra.mxu0 0.0
  %326 = vmatprep.subr.mxu0 0.0
  %327 = vmatpush1.msra.mxu0 0.0
  %328 = vmatprep.subr.mxu0 0.0
  %329 = vmatpush1.msra.mxu0 0.0
  %330 = vmatprep.subr.mxu0 0.0
  %331 = vmatpush1.msra.mxu0 0.0
  %332 = vmatprep.subr.mxu0 0.0
  %333 = vmatpush1.msra.mxu0 0.0
  %334 = vmatprep.subr.mxu0 0.0
  %335 = vmatpush1.msra.mxu0 0.0
  %336 = vmatprep.subr.mxu0 0.0
  %337 = vmatpush1.msra.mxu0 0.0
  %338 = vmatprep.mubr.f32.mxu0 0.0
  %v339 = vand.u32 %v18, 4294901760
  %v340 = vsub.f32 %v18, %v339
  %v341 = vand.u32 %v340, 4294901760
  %342 = vmatmul.mubr.f32.gmra.mrb[0].mxu0 %v341
  %v343 = vpop.f32.mrb[0].mxu0
  %v344 = vadd.f32 %v267, %v343
  %v345 = vpop.f32.mrb[0].mxu0
  %346 = vdwg.mxu0
  %347 = vmatprep.subr.mxu0 0.0
  %v348 = vand.u32 %v11, 4294901760
  %v349 = vsub.f32 %v11, %v348
  %v350 = vand.u32 %v349, 4294901760
  %351 = vmatpush1.msra.mxu0 %v350
  %352 = vmatprep.subr.mxu0 0.0
  %v353 = vand.u32 %v12, 4294901760
  %v354 = vsub.f32 %v12, %v353
  %v355 = vand.u32 %v354, 4294901760
  %356 = vmatpush1.msra.mxu0 %v355
  %357 = vmatprep.subr.mxu0 0.0
  %v358 = vand.u32 %v13, 4294901760
  %v359 = vsub.f32 %v13, %v358
  %v360 = vand.u32 %v359, 4294901760
  %361 = vmatpush1.msra.mxu0 %v360
  %362 = vmatprep.subr.mxu0 0.0
  %v363 = vand.u32 %v14, 4294901760
  %v364 = vsub.f32 %v14, %v363
  %v365 = vand.u32 %v364, 4294901760
  %366 = vmatpush1.msra.mxu0 %v365
  %367 = vmatprep.subr.mxu0 0.0
  %368 = vmatpush1.msra.mxu0 0.0
  %369 = vmatprep.subr.mxu0 0.0
  %370 = vmatpush1.msra.mxu0 0.0
  %371 = vmatprep.subr.mxu0 0.0
  %372 = vmatpush1.msra.mxu0 0.0
  %373 = vmatprep.subr.mxu0 0.0
  %374 = vmatpush1.msra.mxu0 0.0
  %375 = vmatprep.subr.mxu0 0.0
  %376 = vmatpush1.msra.mxu0 0.0
  %377 = vmatprep.subr.mxu0 0.0
  %378 = vmatpush1.msra.mxu0 0.0
  %379 = vmatprep.subr.mxu0 0.0
  %380 = vmatpush1.msra.mxu0 0.0
  %381 = vmatprep.subr.mxu0 0.0
  %382 = vmatpush1.msra.mxu0 0.0
  %383 = vmatprep.subr.mxu0 0.0
  %384 = vmatpush1.msra.mxu0 0.0
  %385 = vmatprep.subr.mxu0 0.0
  %386 = vmatpush1.msra.mxu0 0.0
  %387 = vmatprep.subr.mxu0 0.0
  %388 = vmatpush1.msra.mxu0 0.0
  %389 = vmatprep.subr.mxu0 0.0
  %390 = vmatpush1.msra.mxu0 0.0
  %391 = vmatprep.subr.mxu0 0.0
  %392 = vmatpush1.msra.mxu0 0.0
  %393 = vmatprep.subr.mxu0 0.0
  %394 = vmatpush1.msra.mxu0 0.0
  %395 = vmatprep.subr.mxu0 0.0
  %396 = vmatpush1.msra.mxu0 0.0
  %397 = vmatprep.subr.mxu0 0.0
  %398 = vmatpush1.msra.mxu0 0.0
  %399 = vmatprep.subr.mxu0 0.0
  %400 = vmatpush1.msra.mxu0 0.0
  %401 = vmatprep.subr.mxu0 0.0
  %402 = vmatpush1.msra.mxu0 0.0
  %403 = vmatprep.subr.mxu0 0.0
  %404 = vmatpush1.msra.mxu0 0.0
  %405 = vmatprep.subr.mxu0 0.0
  %406 = vmatpush1.msra.mxu0 0.0
  %407 = vmatprep.subr.mxu0 0.0
  %408 = vmatpush1.msra.mxu0 0.0
  %409 = vmatprep.subr.mxu0 0.0
  %410 = vmatpush1.msra.mxu0 0.0
  %411 = vmatprep.subr.mxu0 0.0
  %412 = vmatpush1.msra.mxu0 0.0
  %413 = vmatprep.subr.mxu0 0.0
  %414 = vmatpush1.msra.mxu0 0.0
  %415 = vmatprep.subr.mxu0 0.0
  %416 = vmatpush1.msra.mxu0 0.0
  %417 = vmatprep.subr.mxu0 0.0
  %418 = vmatpush1.msra.mxu0 0.0
  %419 = vmatprep.subr.mxu0 0.0
  %420 = vmatpush1.msra.mxu0 0.0
  %421 = vmatprep.subr.mxu0 0.0
  %422 = vmatpush1.msra.mxu0 0.0
  %423 = vmatprep.mubr.f32.mxu0 0.0
  %v424 = vand.u32 %v18, 4294901760
  %425 = vmatmul.mubr.f32.gmra.mrb[0].mxu0 %v424
  %v426 = vpop.f32.mrb[0].mxu0
  %v427 = vadd.f32 %v344, %v426
  %v428 = vpop.f32.mrb[0].mxu0
  %429 = vdwg.mxu0
  %430 = vmatprep.subr.mxu0 0.0
  %v431 = vand.u32 %v11, 4294901760
  %432 = vmatpush1.msra.mxu0 %v431
  %433 = vmatprep.subr.mxu0 0.0
  %v434 = vand.u32 %v12, 4294901760
  %435 = vmatpush1.msra.mxu0 %v434
  %436 = vmatprep.subr.mxu0 0.0
  %v437 = vand.u32 %v13, 4294901760
  %438 = vmatpush1.msra.mxu0 %v437
  %439 = vmatprep.subr.mxu0 0.0
  %v440 = vand.u32 %v14, 4294901760
  %441 = vmatpush1.msra.mxu0 %v440
  %442 = vmatprep.subr.mxu0 0.0
  %443 = vmatpush1.msra.mxu0 0.0
  %444 = vmatprep.subr.mxu0 0.0
  %445 = vmatpush1.msra.mxu0 0.0
  %446 = vmatprep.subr.mxu0 0.0
  %447 = vmatpush1.msra.mxu0 0.0
  %448 = vmatprep.subr.mxu0 0.0
  %449 = vmatpush1.msra.mxu0 0.0
  %450 = vmatprep.subr.mxu0 0.0
  %451 = vmatpush1.msra.mxu0 0.0
  %452 = vmatprep.subr.mxu0 0.0
  %453 = vmatpush1.msra.mxu0 0.0
  %454 = vmatprep.subr.mxu0 0.0
  %455 = vmatpush1.msra.mxu0 0.0
  %456 = vmatprep.subr.mxu0 0.0
  %457 = vmatpush1.msra.mxu0 0.0
  %458 = vmatprep.subr.mxu0 0.0
  %459 = vmatpush1.msra.mxu0 0.0
  %460 = vmatprep.subr.mxu0 0.0
  %461 = vmatpush1.msra.mxu0 0.0
  %462 = vmatprep.subr.mxu0 0.0
  %463 = vmatpush1.msra.mxu0 0.0
  %464 = vmatprep.subr.mxu0 0.0
  %465 = vmatpush1.msra.mxu0 0.0
  %466 = vmatprep.subr.mxu0 0.0
  %467 = vmatpush1.msra.mxu0 0.0
  %468 = vmatprep.subr.mxu0 0.0
  %469 = vmatpush1.msra.mxu0 0.0
  %470 = vmatprep.subr.mxu0 0.0
  %471 = vmatpush1.msra.mxu0 0.0
  %472 = vmatprep.subr.mxu0 0.0
  %473 = vmatpush1.msra.mxu0 0.0
  %474 = vmatprep.subr.mxu0 0.0
  %475 = vmatpush1.msra.mxu0 0.0
  %476 = vmatprep.subr.mxu0 0.0
  %477 = vmatpush1.msra.mxu0 0.0
  %478 = vmatprep.subr.mxu0 0.0
  %479 = vmatpush1.msra.mxu0 0.0
  %480 = vmatprep.subr.mxu0 0.0
  %481 = vmatpush1.msra.mxu0 0.0
  %482 = vmatprep.subr.mxu0 0.0
  %483 = vmatpush1.msra.mxu0 0.0
  %484 = vmatprep.subr.mxu0 0.0
  %485 = vmatpush1.msra.mxu0 0.0
  %486 = vmatprep.subr.mxu0 0.0
  %487 = vmatpush1.msra.mxu0 0.0
  %488 = vmatprep.subr.mxu0 0.0
  %489 = vmatpush1.msra.mxu0 0.0
  %490 = vmatprep.subr.mxu0 0.0
  %491 = vmatpush1.msra.mxu0 0.0
  %492 = vmatprep.subr.mxu0 0.0
  %493 = vmatpush1.msra.mxu0 0.0
  %494 = vmatprep.subr.mxu0 0.0
  %495 = vmatpush1.msra.mxu0 0.0
  %496 = vmatprep.subr.mxu0 0.0
  %497 = vmatpush1.msra.mxu0 0.0
  %498 = vmatprep.mubr.f32.mxu0 0.0
  %v499 = vand.u32 %v18, 4294901760
  %500 = vmatmul.mubr.f32.gmra.mrb[0].mxu0 %v499
  %v501 = vpop.f32.mrb[0].mxu0
  %v502 = vadd.f32 %v427, %v501
  %v503 = vpop.f32.mrb[0].mxu0
  %504 = vdwg.mxu0
  %v505 = vadd.f32 %v15, %v502
  %v506 = vtanh.pop %v505
  %v507 = vmul.f32 %v506, 0.5
  %v508 = vadd.f32 %v507, 0.5
  %v509 = vmul.f32 %v508, 0.0
  %511 = vrot.lane.b32.xlu0 %v506, 64
  %v512 = vpop.permute.xlu0 %511
  %v514 = vmul.f32 %v508, %v512
  %516 = vrot.lane.b32.xlu0 %v514, 32
  %v517 = vpop.permute.xlu0 %516
  %v519 = vadd.f32 %v509, %v517
  %v520 = vtanh.pop %v519
  %522 = vrot.lane.b32.xlu0 %v520, 64
  %v523 = vpop.permute.xlu0 %522
  %v525 = vmul.f32 %v508, %v523
  %v526 = vld [vmem:[%s0 + $0x8] sm:$0xff]
  %528 = vrot.lane.b32.xlu0 %v525, 32
  %v529 = vpop.permute.xlu0 %528
  %v530 = vsel %vm16, %v529, 0
  %532 = vmatprep.subr.mxu0 0.0
  %v533 = vand.u32 %v11, 4294901760
  %534 = vmatpush1.msra.mxu0 %v533
  %535 = vmatprep.subr.mxu0 0.0
  %v536 = vand.u32 %v12, 4294901760
  %537 = vmatpush1.msra.mxu0 %v536
  %538 = vmatprep.subr.mxu0 0.0
  %v539 = vand.u32 %v13, 4294901760
  %540 = vmatpush1.msra.mxu0 %v539
  %541 = vmatprep.subr.mxu0 0.0
  %v542 = vand.u32 %v14, 4294901760
  %543 = vmatpush1.msra.mxu0 %v542
  %544 = vmatprep.subr.mxu0 0.0
  %545 = vmatpush1.msra.mxu0 0.0
  %546 = vmatprep.subr.mxu0 0.0
  %547 = vmatpush1.msra.mxu0 0.0
  %548 = vmatprep.subr.mxu0 0.0
  %549 = vmatpush1.msra.mxu0 0.0
  %550 = vmatprep.subr.mxu0 0.0
  %551 = vmatpush1.msra.mxu0 0.0
  %552 = vmatprep.subr.mxu0 0.0
  %553 = vmatpush1.msra.mxu0 0.0
  %554 = vmatprep.subr.mxu0 0.0
  %555 = vmatpush1.msra.mxu0 0.0
  %556 = vmatprep.subr.mxu0 0.0
  %557 = vmatpush1.msra.mxu0 0.0
  %558 = vmatprep.subr.mxu0 0.0
  %559 = vmatpush1.msra.mxu0 0.0
  %560 = vmatprep.subr.mxu0 0.0
  %561 = vmatpush1.msra.mxu0 0.0
  %562 = vmatprep.subr.mxu0 0.0
  %563 = vmatpush1.msra.mxu0 0.0
  %564 = vmatprep.subr.mxu0 0.0
  %565 = vmatpush1.msra.mxu0 0.0
  %566 = vmatprep.subr.mxu0 0.0
  %567 = vmatpush1.msra.mxu0 0.0
  %568 = vmatprep.subr.mxu0 0.0
  %569 = vmatpush1.msra.mxu0 0.0
  %570 = vmatprep.subr.mxu0 0.0
  %571 = vmatpush1.msra.mxu0 0.0
  %572 = vmatprep.subr.mxu0 0.0
  %573 = vmatpush1.msra.mxu0 0.0
  %574 = vmatprep.subr.mxu0 0.0
  %575 = vmatpush1.msra.mxu0 0.0
  %576 = vmatprep.subr.mxu0 0.0
  %577 = vmatpush1.msra.mxu0 0.0
  %578 = vmatprep.subr.mxu0 0.0
  %579 = vmatpush1.msra.mxu0 0.0
  %580 = vmatprep.subr.mxu0 0.0
  %581 = vmatpush1.msra.mxu0 0.0
  %582 = vmatprep.subr.mxu0 0.0
  %583 = vmatpush1.msra.mxu0 0.0
  %584 = vmatprep.subr.mxu0 0.0
  %585 = vmatpush1.msra.mxu0 0.0
  %586 = vmatprep.subr.mxu0 0.0
  %587 = vmatpush1.msra.mxu0 0.0
  %588 = vmatprep.subr.mxu0 0.0
  %589 = vmatpush1.msra.mxu0 0.0
  %590 = vmatprep.subr.mxu0 0.0
  %591 = vmatpush1.msra.mxu0 0.0
  %592 = vmatprep.subr.mxu0 0.0
  %593 = vmatpush1.msra.mxu0 0.0
  %594 = vmatprep.subr.mxu0 0.0
  %595 = vmatpush1.msra.mxu0 0.0
  %596 = vmatprep.subr.mxu0 0.0
  %597 = vmatpush1.msra.mxu0 0.0
  %598 = vmatprep.subr.mxu0 0.0
  %599 = vmatpush1.msra.mxu0 0.0
  %600 = vmatprep.mubr.f32.mxu0 0.0
  %v601 = vand.u32 %v530, 4294901760
  %v602 = vsub.f32 %v530, %v601
  %v603 = vand.u32 %v602, 4294901760
  %v604 = vsub.f32 %v602, %v603
  %v605 = vand.u32 %v604, 4294901760
  %606 = vmatmul.mubr.f32.gmra.mrb[0].mxu0 %v605
  %v607 = vpop.f32.mrb[0].mxu0
  %v608 = vadd.f32 0.0, %v607
  %v609 = vpop.f32.mrb[0].mxu0
  %610 = vdwg.mxu0
  %611 = vmatprep.subr.mxu0 0.0
  %v612 = vand.u32 %v11, 4294901760
  %v613 = vsub.f32 %v11, %v612
  %v614 = vand.u32 %v613, 4294901760
  %v615 = vsub.f32 %v613, %v614
  %v616 = vand.u32 %v615, 4294901760
  %617 = vmatpush1.msra.mxu0 %v616
  %618 = vmatprep.subr.mxu0 0.0
  %v619 = vand.u32 %v12, 4294901760
  %v620 = vsub.f32 %v12, %v619
  %v621 = vand.u32 %v620, 4294901760
  %v622 = vsub.f32 %v620, %v621
  %v623 = vand.u32 %v622, 4294901760
  %624 = vmatpush1.msra.mxu0 %v623
  %625 = vmatprep.subr.mxu0 0.0
  %v626 = vand.u32 %v13, 4294901760
  %v627 = vsub.f32 %v13, %v626
  %v628 = vand.u32 %v627, 4294901760
  %v629 = vsub.f32 %v627, %v628
  %v630 = vand.u32 %v629, 4294901760
  %631 = vmatpush1.msra.mxu0 %v630
  %632 = vmatprep.subr.mxu0 0.0
  %v633 = vand.u32 %v14, 4294901760
  %v634 = vsub.f32 %v14, %v633
  %v635 = vand.u32 %v634, 4294901760
  %v636 = vsub.f32 %v634, %v635
  %v637 = vand.u32 %v636, 4294901760
  %638 = vmatpush1.msra.mxu0 %v637
  %639 = vmatprep.subr.mxu0 0.0
  %640 = vmatpush1.msra.mxu0 0.0
  %641 = vmatprep.subr.mxu0 0.0
  %642 = vmatpush1.msra.mxu0 0.0
  %643 = vmatprep.subr.mxu0 0.0
  %644 = vmatpush1.msra.mxu0 0.0
  %645 = vmatprep.subr.mxu0 0.0
  %646 = vmatpush1.msra.mxu0 0.0
  %647 = vmatprep.subr.mxu0 0.0
  %648 = vmatpush1.msra.mxu0 0.0
  %649 = vmatprep.subr.mxu0 0.0
  %650 = vmatpush1.msra.mxu0 0.0
  %651 = vmatprep.subr.mxu0 0.0
  %652 = vmatpush1.msra.mxu0 0.0
  %653 = vmatprep.subr.mxu0 0.0
  %654 = vmatpush1.msra.mxu0 0.0
  %655 = vmatprep.subr.mxu0 0.0
  %656 = vmatpush1.msra.mxu0 0.0
  %657 = vmatprep.subr.mxu0 0.0
  %658 = vmatpush1.msra.mxu0 0.0
  %659 = vmatprep.subr.mxu0 0.0
  %660 = vmatpush1.msra.mxu0 0.0
  %661 = vmatprep.subr.mxu0 0.0
  %662 = vmatpush1.msra.mxu0 0.0
  %663 = vmatprep.subr.mxu0 0.0
  %664 = vmatpush1.msra.mxu0 0.0
  %665 = vmatprep.subr.mxu0 0.0
  %666 = vmatpush1.msra.mxu0 0.0
  %667 = vmatprep.subr.mxu0 0.0
  %668 = vmatpush1.msra.mxu0 0.0
  %669 = vmatprep.subr.mxu0 0.0
  %670 = vmatpush1.msra.mxu0 0.0
  %671 = vmatprep.subr.mxu0 0.0
  %672 = vmatpush1.msra.mxu0 0.0
  %673 = vmatprep.subr.mxu0 0.0
  %674 = vmatpush1.msra.mxu0 0.0
  %675 = vmatprep.subr.mxu0 0.0
  %676 = vmatpush1.msra.mxu0 0.0
  %677 = vmatprep.subr.mxu0 0.0
  %678 = vmatpush1.msra.mxu0 0.0
  %679 = vmatprep.subr.mxu0 0.0
  %680 = vmatpush1.msra.mxu0 0.0
  %681 = vmatprep.subr.mxu0 0.0
  %682 = vmatpush1.msra.mxu0 0.0
  %683 = vmatprep.subr.mxu0 0.0
  %684 = vmatpush1.msra.mxu0 0.0
  %685 = vmatprep.subr.mxu0 0.0
  %686 = vmatpush1.msra.mxu0 0.0
  %687 = vmatprep.subr.mxu0 0.0
  %688 = vmatpush1.msra.mxu0 0.0
  %689 = vmatprep.subr.mxu0 0.0
  %690 = vmatpush1.msra.mxu0 0.0
  %691 = vmatprep.subr.mxu0 0.0
  %692 = vmatpush1.msra.mxu0 0.0
  %693 = vmatprep.subr.mxu0 0.0
  %694 = vmatpush1.msra.mxu0 0.0
  %695 = vmatprep.mubr.f32.mxu0 0.0
  %v696 = vand.u32 %v530, 4294901760
  %697 = vmatmul.mubr.f32.gmra.mrb[0].mxu0 %v696
  %v698 = vpop.f32.mrb[0].mxu0
  %v699 = vadd.f32 %v608, %v698
  %v700 = vpop.f32.mrb[0].mxu0
  %701 = vdwg.mxu0
  %702 = vmatprep.subr.mxu0 0.0
  %v703 = vand.u32 %v11, 4294901760
  %v704 = vsub.f32 %v11, %v703
  %705 = vmatpush1.msra.mxu0 %v704
  %706 = vmatprep.subr.mxu0 0.0
  %v707 = vand.u32 %v12, 4294901760
  %v708 = vsub.f32 %v12, %v707
  %709 = vmatpush1.msra.mxu0 %v708
  %710 = vmatprep.subr.mxu0 0.0
  %v711 = vand.u32 %v13, 4294901760
  %v712 = vsub.f32 %v13, %v711
  %713 = vmatpush1.msra.mxu0 %v712
  %714 = vmatprep.subr.mxu0 0.0
  %v715 = vand.u32 %v14, 4294901760
  %v716 = vsub.f32 %v14, %v715
  %717 = vmatpush1.msra.mxu0 %v716
  %718 = vmatprep.subr.mxu0 0.0
  %719 = vmatpush1.msra.mxu0 0.0
  %720 = vmatprep.subr.mxu0 0.0
  %721 = vmatpush1.msra.mxu0 0.0
  %722 = vmatprep.subr.mxu0 0.0
  %723 = vmatpush1.msra.mxu0 0.0
  %724 = vmatprep.subr.mxu0 0.0
  %725 = vmatpush1.msra.mxu0 0.0
  %726 = vmatprep.subr.mxu0 0.0
  %727 = vmatpush1.msra.mxu0 0.0
  %728 = vmatprep.subr.mxu0 0.0
  %729 = vmatpush1.msra.mxu0 0.0
  %730 = vmatprep.subr.mxu0 0.0
  %731 = vmatpush1.msra.mxu0 0.0
  %732 = vmatprep.subr.mxu0 0.0
  %733 = vmatpush1.msra.mxu0 0.0
  %734 = vmatprep.subr.mxu0 0.0
  %735 = vmatpush1.msra.mxu0 0.0
  %736 = vmatprep.subr.mxu0 0.0
  %737 = vmatpush1.msra.mxu0 0.0
  %738 = vmatprep.subr.mxu0 0.0
  %739 = vmatpush1.msra.mxu0 0.0
  %740 = vmatprep.subr.mxu0 0.0
  %741 = vmatpush1.msra.mxu0 0.0
  %742 = vmatprep.subr.mxu0 0.0
  %743 = vmatpush1.msra.mxu0 0.0
  %744 = vmatprep.subr.mxu0 0.0
  %745 = vmatpush1.msra.mxu0 0.0
  %746 = vmatprep.subr.mxu0 0.0
  %747 = vmatpush1.msra.mxu0 0.0
  %748 = vmatprep.subr.mxu0 0.0
  %749 = vmatpush1.msra.mxu0 0.0
  %750 = vmatprep.subr.mxu0 0.0
  %751 = vmatpush1.msra.mxu0 0.0
  %752 = vmatprep.subr.mxu0 0.0
  %753 = vmatpush1.msra.mxu0 0.0
  %754 = vmatprep.subr.mxu0 0.0
  %755 = vmatpush1.msra.mxu0 0.0
  %756 = vmatprep.subr.mxu0 0.0
  %757 = vmatpush1.msra.mxu0 0.0
  %758 = vmatprep.subr.mxu0 0.0
  %759 = vmatpush1.msra.mxu0 0.0
  %760 = vmatprep.subr.mxu0 0.0
  %761 = vmatpush1.msra.mxu0 0.0
  %762 = vmatprep.subr.mxu0 0.0
  %763 = vmatpush1.msra.mxu0 0.0
  %764 = vmatprep.subr.mxu0 0.0
  %765 = vmatpush1.msra.mxu0 0.0
  %766 = vmatprep.subr.mxu0 0.0
  %767 = vmatpush1.msra.mxu0 0.0
  %768 = vmatprep.subr.mxu0 0.0
  %769 = vmatpush1.msra.mxu0 0.0
  %770 = vmatprep.subr.mxu0 0.0
  %771 = vmatpush1.msra.mxu0 0.0
  %772 = vmatprep.subr.mxu0 0.0
  %773 = vmatpush1.msra.mxu0 0.0
  %774 = vmatprep.mubr.f32.mxu0 0.0
  %v775 = vand.u32 %v530, 4294901760
  %v776 = vsub.f32 %v530, %v775
  %777 = vmatmul.mubr.f32.gmra.mrb[0].mxu0 %v776
  %v778 = vpop.f32.mrb[0].mxu0
  %v779 = vadd.f32 %v699, %v778
  %v780 = vpop.f32.mrb[0].mxu0
  %781 = vdwg.mxu0
  %782 = vmatprep.subr.mxu0 0.0
  %v783 = vand.u32 %v11, 4294901760
  %784 = vmatpush1.msra.mxu0 %v783
  %785 = vmatprep.subr.mxu0 0.0
  %v786 = vand.u32 %v12, 4294901760
  %787 = vmatpush1.msra.mxu0 %v786
  %788 = vmatprep.subr.mxu0 0.0
  %v789 = vand.u32 %v13, 4294901760
  %790 = vmatpush1.msra.mxu0 %v789
  %791 = vmatprep.subr.mxu0 0.0
  %v792 = vand.u32 %v14, 4294901760
  %793 = vmatpush1.msra.mxu0 %v792
  %794 = vmatprep.subr.mxu0 0.0
  %795 = vmatpush1.msra.mxu0 0.0
  %796 = vmatprep.subr.mxu0 0.0
  %797 = vmatpush1.msra.mxu0 0.0
  %798 = vmatprep.subr.mxu0 0.0
  %799 = vmatpush1.msra.mxu0 0.0
  %800 = vmatprep.subr.mxu0 0.0
  %801 = vmatpush1.msra.mxu0 0.0
  %802 = vmatprep.subr.mxu0 0.0
  %803 = vmatpush1.msra.mxu0 0.0
  %804 = vmatprep.subr.mxu0 0.0
  %805 = vmatpush1.msra.mxu0 0.0
  %806 = vmatprep.subr.mxu0 0.0
  %807 = vmatpush1.msra.mxu0 0.0
  %808 = vmatprep.subr.mxu0 0.0
  %809 = vmatpush1.msra.mxu0 0.0
  %810 = vmatprep.subr.mxu0 0.0
  %811 = vmatpush1.msra.mxu0 0.0
  %812 = vmatprep.subr.mxu0 0.0
  %813 = vmatpush1.msra.mxu0 0.0
  %814 = vmatprep.subr.mxu0 0.0
  %815 = vmatpush1.msra.mxu0 0.0
  %816 = vmatprep.subr.mxu0 0.0
  %817 = vmatpush1.msra.mxu0 0.0
  %818 = vmatprep.subr.mxu0 0.0
  %819 = vmatpush1.msra.mxu0 0.0
  %820 = vmatprep.subr.mxu0 0.0
  %821 = vmatpush1.msra.mxu0 0.0
  %822 = vmatprep.subr.mxu0 0.0
  %823 = vmatpush1.msra.mxu0 0.0
  %824 = vmatprep.subr.mxu0 0.0
  %825 = vmatpush1.msra.mxu0 0.0
  %826 = vmatprep.subr.mxu0 0.0
  %827 = vmatpush1.msra.mxu0 0.0
  %828 = vmatprep.subr.mxu0 0.0
  %829 = vmatpush1.msra.mxu0 0.0
  %830 = vmatprep.subr.mxu0 0.0
  %831 = vmatpush1.msra.mxu0 0.0
  %832 = vmatprep.subr.mxu0 0.0
  %833 = vmatpush1.msra.mxu0 0.0
  %834 = vmatprep.subr.mxu0 0.0
  %835 = vmatpush1.msra.mxu0 0.0
  %836 = vmatprep.subr.mxu0 0.0
  %837 = vmatpush1.msra.mxu0 0.0
  %838 = vmatprep.subr.mxu0 0.0
  %839 = vmatpush1.msra.mxu0 0.0
  %840 = vmatprep.subr.mxu0 0.0
  %841 = vmatpush1.msra.mxu0 0.0
  %842 = vmatprep.subr.mxu0 0.0
  %843 = vmatpush1.msra.mxu0 0.0
  %844 = vmatprep.subr.mxu0 0.0
  %845 = vmatpush1.msra.mxu0 0.0
  %846 = vmatprep.subr.mxu0 0.0
  %847 = vmatpush1.msra.mxu0 0.0
  %848 = vmatprep.subr.mxu0 0.0
  %849 = vmatpush1.msra.mxu0 0.0
  %850 = vmatprep.mubr.f32.mxu0 0.0
  %v851 = vand.u32 %v530, 4294901760
  %v852 = vsub.f32 %v530, %v851
  %v853 = vand.u32 %v852, 4294901760
  %854 = vmatmul.mubr.f32.gmra.mrb[0].mxu0 %v853
  %v855 = vpop.f32.mrb[0].mxu0
  %v856 = vadd.f32 %v779, %v855
  %v857 = vpop.f32.mrb[0].mxu0
  %858 = vdwg.mxu0
  %859 = vmatprep.subr.mxu0 0.0
  %v860 = vand.u32 %v11, 4294901760
  %v861 = vsub.f32 %v11, %v860
  %v862 = vand.u32 %v861, 4294901760
  %863 = vmatpush1.msra.mxu0 %v862
  %864 = vmatprep.subr.mxu0 0.0
  %v865 = vand.u32 %v12, 4294901760
  %v866 = vsub.f32 %v12, %v865
  %v867 = vand.u32 %v866, 4294901760
  %868 = vmatpush1.msra.mxu0 %v867
  %869 = vmatprep.subr.mxu0 0.0
  %v870 = vand.u32 %v13, 4294901760
  %v871 = vsub.f32 %v13, %v870
  %v872 = vand.u32 %v871, 4294901760
  %873 = vmatpush1.msra.mxu0 %v872
  %874 = vmatprep.subr.mxu0 0.0
  %v875 = vand.u32 %v14, 4294901760
  %v876 = vsub.f32 %v14, %v875
  %v877 = vand.u32 %v876, 4294901760
  %878 = vmatpush1.msra.mxu0 %v877
  %879 = vmatprep.subr.mxu0 0.0
  %880 = vmatpush1.msra.mxu0 0.0
  %881 = vmatprep.subr.mxu0 0.0
  %882 = vmatpush1.msra.mxu0 0.0
  %883 = vmatprep.subr.mxu0 0.0
  %884 = vmatpush1.msra.mxu0 0.0
  %885 = vmatprep.subr.mxu0 0.0
  %886 = vmatpush1.msra.mxu0 0.0
  %887 = vmatprep.subr.mxu0 0.0
  %888 = vmatpush1.msra.mxu0 0.0
  %889 = vmatprep.subr.mxu0 0.0
  %890 = vmatpush1.msra.mxu0 0.0
  %891 = vmatprep.subr.mxu0 0.0
  %892 = vmatpush1.msra.mxu0 0.0
  %893 = vmatprep.subr.mxu0 0.0
  %894 = vmatpush1.msra.mxu0 0.0
  %895 = vmatprep.subr.mxu0 0.0
  %896 = vmatpush1.msra.mxu0 0.0
  %897 = vmatprep.subr.mxu0 0.0
  %898 = vmatpush1.msra.mxu0 0.0
  %899 = vmatprep.subr.mxu0 0.0
  %900 = vmatpush1.msra.mxu0 0.0
  %901 = vmatprep.subr.mxu0 0.0
  %902 = vmatpush1.msra.mxu0 0.0
  %903 = vmatprep.subr.mxu0 0.0
  %904 = vmatpush1.msra.mxu0 0.0
  %905 = vmatprep.subr.mxu0 0.0
  %906 = vmatpush1.msra.mxu0 0.0
  %907 = vmatprep.subr.mxu0 0.0
  %908 = vmatpush1.msra.mxu0 0.0
  %909 = vmatprep.subr.mxu0 0.0
  %910 = vmatpush1.msra.mxu0 0.0
  %911 = vmatprep.subr.mxu0 0.0
  %912 = vmatpush1.msra.mxu0 0.0
  %913 = vmatprep.subr.mxu0 0.0
  %914 = vmatpush1.msra.mxu0 0.0
  %915 = vmatprep.subr.mxu0 0.0
  %916 = vmatpush1.msra.mxu0 0.0
  %917 = vmatprep.subr.mxu0 0.0
  %918 = vmatpush1.msra.mxu0 0.0
  %919 = vmatprep.subr.mxu0 0.0
  %920 = vmatpush1.msra.mxu0 0.0
  %921 = vmatprep.subr.mxu0 0.0
  %922 = vmatpush1.msra.mxu0 0.0
  %923 = vmatprep.subr.mxu0 0.0
  %924 = vmatpush1.msra.mxu0 0.0
  %925 = vmatprep.subr.mxu0 0.0
  %926 = vmatpush1.msra.mxu0 0.0
  %927 = vmatprep.subr.mxu0 0.0
  %928 = vmatpush1.msra.mxu0 0.0
  %929 = vmatprep.subr.mxu0 0.0
  %930 = vmatpush1.msra.mxu0 0.0
  %931 = vmatprep.subr.mxu0 0.0
  %932 = vmatpush1.msra.mxu0 0.0
  %933 = vmatprep.subr.mxu0 0.0
  %934 = vmatpush1.msra.mxu0 0.0
  %935 = vmatprep.mubr.f32.mxu0 0.0
  %v936 = vand.u32 %v530, 4294901760
  %937 = vmatmul.mubr.f32.gmra.mrb[0].mxu0 %v936
  %v938 = vpop.f32.mrb[0].mxu0
  %v939 = vadd.f32 %v856, %v938
  %v940 = vpop.f32.mrb[0].mxu0
  %941 = vdwg.mxu0
  %942 = vmatprep.subr.mxu0 0.0
  %v943 = vand.u32 %v11, 4294901760
  %944 = vmatpush1.msra.mxu0 %v943
  %945 = vmatprep.subr.mxu0 0.0
  %v946 = vand.u32 %v12, 4294901760
  %947 = vmatpush1.msra.mxu0 %v946
  %948 = vmatprep.subr.mxu0 0.0
  %v949 = vand.u32 %v13, 4294901760
  %950 = vmatpush1.msra.mxu0 %v949
  %951 = vmatprep.subr.mxu0 0.0
  %v952 = vand.u32 %v14, 4294901760
  %953 = vmatpush1.msra.mxu0 %v952
  %954 = vmatprep.subr.mxu0 0.0
  %955 = vmatpush1.msra.mxu0 0.0
  %956 = vmatprep.subr.mxu0 0.0
  %957 = vmatpush1.msra.mxu0 0.0
  %958 = vmatprep.subr.mxu0 0.0
  %959 = vmatpush1.msra.mxu0 0.0
  %960 = vmatprep.subr.mxu0 0.0
  %961 = vmatpush1.msra.mxu0 0.0
  %962 = vmatprep.subr.mxu0 0.0
  %963 = vmatpush1.msra.mxu0 0.0
  %964 = vmatprep.subr.mxu0 0.0
  %965 = vmatpush1.msra.mxu0 0.0
  %966 = vmatprep.subr.mxu0 0.0
  %967 = vmatpush1.msra.mxu0 0.0
  %968 = vmatprep.subr.mxu0 0.0
  %969 = vmatpush1.msra.mxu0 0.0
  %970 = vmatprep.subr.mxu0 0.0
  %971 = vmatpush1.msra.mxu0 0.0
  %972 = vmatprep.subr.mxu0 0.0
  %973 = vmatpush1.msra.mxu0 0.0
  %974 = vmatprep.subr.mxu0 0.0
  %975 = vmatpush1.msra.mxu0 0.0
  %976 = vmatprep.subr.mxu0 0.0
  %977 = vmatpush1.msra.mxu0 0.0
  %978 = vmatprep.subr.mxu0 0.0
  %979 = vmatpush1.msra.mxu0 0.0
  %980 = vmatprep.subr.mxu0 0.0
  %981 = vmatpush1.msra.mxu0 0.0
  %982 = vmatprep.subr.mxu0 0.0
  %983 = vmatpush1.msra.mxu0 0.0
  %984 = vmatprep.subr.mxu0 0.0
  %985 = vmatpush1.msra.mxu0 0.0
  %986 = vmatprep.subr.mxu0 0.0
  %987 = vmatpush1.msra.mxu0 0.0
  %988 = vmatprep.subr.mxu0 0.0
  %989 = vmatpush1.msra.mxu0 0.0
  %990 = vmatprep.subr.mxu0 0.0
  %991 = vmatpush1.msra.mxu0 0.0
  %992 = vmatprep.subr.mxu0 0.0
  %993 = vmatpush1.msra.mxu0 0.0
  %994 = vmatprep.subr.mxu0 0.0
  %995 = vmatpush1.msra.mxu0 0.0
  %996 = vmatprep.subr.mxu0 0.0
  %997 = vmatpush1.msra.mxu0 0.0
  %998 = vmatprep.subr.mxu0 0.0
  %999 = vmatpush1.msra.mxu0 0.0
  %1000 = vmatprep.subr.mxu0 0.0
  %1001 = vmatpush1.msra.mxu0 0.0
  %1002 = vmatprep.subr.mxu0 0.0
  %1003 = vmatpush1.msra.mxu0 0.0
  %1004 = vmatprep.subr.mxu0 0.0
  %1005 = vmatpush1.msra.mxu0 0.0
  %1006 = vmatprep.subr.mxu0 0.0
  %1007 = vmatpush1.msra.mxu0 0.0
  %1008 = vmatprep.subr.mxu0 0.0
  %1009 = vmatpush1.msra.mxu0 0.0
  %1010 = vmatprep.mubr.f32.mxu0 0.0
  %v1011 = vand.u32 %v530, 4294901760
  %1012 = vmatmul.mubr.f32.gmra.mrb[0].mxu0 %v1011
  %v1013 = vpop.f32.mrb[0].mxu0
  %v1014 = vadd.f32 %v939, %v1013
  %v1015 = vpop.f32.mrb[0].mxu0
  %1016 = vdwg.mxu0
  %v1017 = vadd.f32 %v526, %v1014
  %v1018 = vtanh.pop %v1017
  %v1019 = vmul.f32 %v1018, 0.5
  %v1020 = vadd.f32 %v1019, 0.5
  %v1021 = vmul.f32 %v1020, %v519
  %1023 = vrot.lane.b32.xlu0 %v1018, 64
  %v1024 = vpop.permute.xlu0 %1023
  %v1026 = vmul.f32 %v1020, %v1024
  %1028 = vrot.lane.b32.xlu0 %v1026, 32
  %v1029 = vpop.permute.xlu0 %1028
  %v1031 = vadd.f32 %v1021, %v1029
  %v1032 = vtanh.pop %v1031
  %1034 = vrot.lane.b32.xlu0 %v1032, 64
  %v1035 = vpop.permute.xlu0 %1034
  %v1037 = vmul.f32 %v1020, %v1035
  %v1038 = vld [vmem:[%s0 + $0x10] sm:$0xff]
  %1040 = vrot.lane.b32.xlu0 %v1037, 32
  %v1041 = vpop.permute.xlu0 %1040
  %v1042 = vsel %vm16, %v1041, 0
  %1044 = vmatprep.subr.mxu0 0.0
  %v1045 = vand.u32 %v11, 4294901760
  %1046 = vmatpush1.msra.mxu0 %v1045
  %1047 = vmatprep.subr.mxu0 0.0
  %v1048 = vand.u32 %v12, 4294901760
  %1049 = vmatpush1.msra.mxu0 %v1048
  %1050 = vmatprep.subr.mxu0 0.0
  %v1051 = vand.u32 %v13, 4294901760
  %1052 = vmatpush1.msra.mxu0 %v1051
  %1053 = vmatprep.subr.mxu0 0.0
  %v1054 = vand.u32 %v14, 4294901760
  %1055 = vmatpush1.msra.mxu0 %v1054
  %1056 = vmatprep.subr.mxu0 0.0
  %1057 = vmatpush1.msra.mxu0 0.0
  %1058 = vmatprep.subr.mxu0 0.0
  %1059 = vmatpush1.msra.mxu0 0.0
  %1060 = vmatprep.subr.mxu0 0.0
  %1061 = vmatpush1.msra.mxu0 0.0
  %1062 = vmatprep.subr.mxu0 0.0
  %1063 = vmatpush1.msra.mxu0 0.0
  %1064 = vmatprep.subr.mxu0 0.0
  %1065 = vmatpush1.msra.mxu0 0.0
  %1066 = vmatprep.subr.mxu0 0.0
  %1067 = vmatpush1.msra.mxu0 0.0
  %1068 = vmatprep.subr.mxu0 0.0
  %1069 = vmatpush1.msra.mxu0 0.0
  %1070 = vmatprep.subr.mxu0 0.0
  %1071 = vmatpush1.msra.mxu0 0.0
  %1072 = vmatprep.subr.mxu0 0.0
  %1073 = vmatpush1.msra.mxu0 0.0
  %1074 = vmatprep.subr.mxu0 0.0
  %1075 = vmatpush1.msra.mxu0 0.0
  %1076 = vmatprep.subr.mxu0 0.0
  %1077 = vmatpush1.msra.mxu0 0.0
  %1078 = vmatprep.subr.mxu0 0.0
  %1079 = vmatpush1.msra.mxu0 0.0
  %1080 = vmatprep.subr.mxu0 0.0
  %1081 = vmatpush1.msra.mxu0 0.0
  %1082 = vmatprep.subr.mxu0 0.0
  %1083 = vmatpush1.msra.mxu0 0.0
  %1084 = vmatprep.subr.mxu0 0.0
  %1085 = vmatpush1.msra.mxu0 0.0
  %1086 = vmatprep.subr.mxu0 0.0
  %1087 = vmatpush1.msra.mxu0 0.0
  %1088 = vmatprep.subr.mxu0 0.0
  %1089 = vmatpush1.msra.mxu0 0.0
  %1090 = vmatprep.subr.mxu0 0.0
  %1091 = vmatpush1.msra.mxu0 0.0
  %1092 = vmatprep.subr.mxu0 0.0
  %1093 = vmatpush1.msra.mxu0 0.0
  %1094 = vmatprep.subr.mxu0 0.0
  %1095 = vmatpush1.msra.mxu0 0.0
  %1096 = vmatprep.subr.mxu0 0.0
  %1097 = vmatpush1.msra.mxu0 0.0
  %1098 = vmatprep.subr.mxu0 0.0
  %1099 = vmatpush1.msra.mxu0 0.0
  %1100 = vmatprep.subr.mxu0 0.0
  %1101 = vmatpush1.msra.mxu0 0.0
  %1102 = vmatprep.subr.mxu0 0.0
  %1103 = vmatpush1.msra.mxu0 0.0
  %1104 = vmatprep.subr.mxu0 0.0
  %1105 = vmatpush1.msra.mxu0 0.0
  %1106 = vmatprep.subr.mxu0 0.0
  %1107 = vmatpush1.msra.mxu0 0.0
  %1108 = vmatprep.subr.mxu0 0.0
  %1109 = vmatpush1.msra.mxu0 0.0
  %1110 = vmatprep.subr.mxu0 0.0
  %1111 = vmatpush1.msra.mxu0 0.0
  %1112 = vmatprep.mubr.f32.mxu0 0.0
  %v1113 = vand.u32 %v1042, 4294901760
  %v1114 = vsub.f32 %v1042, %v1113
  %v1115 = vand.u32 %v1114, 4294901760
  %v1116 = vsub.f32 %v1114, %v1115
  %v1117 = vand.u32 %v1116, 4294901760
  %1118 = vmatmul.mubr.f32.gmra.mrb[0].mxu0 %v1117
  %v1119 = vpop.f32.mrb[0].mxu0
  %v1120 = vadd.f32 0.0, %v1119
  %v1121 = vpop.f32.mrb[0].mxu0
  %1122 = vdwg.mxu0
  %1123 = vmatprep.subr.mxu0 0.0
  %v1124 = vand.u32 %v11, 4294901760
  %v1125 = vsub.f32 %v11, %v1124
  %v1126 = vand.u32 %v1125, 4294901760
  %v1127 = vsub.f32 %v1125, %v1126
  %v1128 = vand.u32 %v1127, 4294901760
  %1129 = vmatpush1.msra.mxu0 %v1128
  %1130 = vmatprep.subr.mxu0 0.0
  %v1131 = vand.u32 %v12, 4294901760
  %v1132 = vsub.f32 %v12, %v1131
  %v1133 = vand.u32 %v1132, 4294901760
  %v1134 = vsub.f32 %v1132, %v1133
  %v1135 = vand.u32 %v1134, 4294901760
  %1136 = vmatpush1.msra.mxu0 %v1135
  %1137 = vmatprep.subr.mxu0 0.0
  %v1138 = vand.u32 %v13, 4294901760
  %v1139 = vsub.f32 %v13, %v1138
  %v1140 = vand.u32 %v1139, 4294901760
  %v1141 = vsub.f32 %v1139, %v1140
  %v1142 = vand.u32 %v1141, 4294901760
  %1143 = vmatpush1.msra.mxu0 %v1142
  %1144 = vmatprep.subr.mxu0 0.0
  %v1145 = vand.u32 %v14, 4294901760
  %v1146 = vsub.f32 %v14, %v1145
  %v1147 = vand.u32 %v1146, 4294901760
  %v1148 = vsub.f32 %v1146, %v1147
  %v1149 = vand.u32 %v1148, 4294901760
  %1150 = vmatpush1.msra.mxu0 %v1149
  %1151 = vmatprep.subr.mxu0 0.0
  %1152 = vmatpush1.msra.mxu0 0.0
  %1153 = vmatprep.subr.mxu0 0.0
  %1154 = vmatpush1.msra.mxu0 0.0
  %1155 = vmatprep.subr.mxu0 0.0
  %1156 = vmatpush1.msra.mxu0 0.0
  %1157 = vmatprep.subr.mxu0 0.0
  %1158 = vmatpush1.msra.mxu0 0.0
  %1159 = vmatprep.subr.mxu0 0.0
  %1160 = vmatpush1.msra.mxu0 0.0
  %1161 = vmatprep.subr.mxu0 0.0
  %1162 = vmatpush1.msra.mxu0 0.0
  %1163 = vmatprep.subr.mxu0 0.0
  %1164 = vmatpush1.msra.mxu0 0.0
  %1165 = vmatprep.subr.mxu0 0.0
  %1166 = vmatpush1.msra.mxu0 0.0
  %1167 = vmatprep.subr.mxu0 0.0
  %1168 = vmatpush1.msra.mxu0 0.0
  %1169 = vmatprep.subr.mxu0 0.0
  %1170 = vmatpush1.msra.mxu0 0.0
  %1171 = vmatprep.subr.mxu0 0.0
  %1172 = vmatpush1.msra.mxu0 0.0
  %1173 = vmatprep.subr.mxu0 0.0
  %1174 = vmatpush1.msra.mxu0 0.0
  %1175 = vmatprep.subr.mxu0 0.0
  %1176 = vmatpush1.msra.mxu0 0.0
  %1177 = vmatprep.subr.mxu0 0.0
  %1178 = vmatpush1.msra.mxu0 0.0
  %1179 = vmatprep.subr.mxu0 0.0
  %1180 = vmatpush1.msra.mxu0 0.0
  %1181 = vmatprep.subr.mxu0 0.0
  %1182 = vmatpush1.msra.mxu0 0.0
  %1183 = vmatprep.subr.mxu0 0.0
  %1184 = vmatpush1.msra.mxu0 0.0
  %1185 = vmatprep.subr.mxu0 0.0
  %1186 = vmatpush1.msra.mxu0 0.0
  %1187 = vmatprep.subr.mxu0 0.0
  %1188 = vmatpush1.msra.mxu0 0.0
  %1189 = vmatprep.subr.mxu0 0.0
  %1190 = vmatpush1.msra.mxu0 0.0
  %1191 = vmatprep.subr.mxu0 0.0
  %1192 = vmatpush1.msra.mxu0 0.0
  %1193 = vmatprep.subr.mxu0 0.0
  %1194 = vmatpush1.msra.mxu0 0.0
  %1195 = vmatprep.subr.mxu0 0.0
  %1196 = vmatpush1.msra.mxu0 0.0
  %1197 = vmatprep.subr.mxu0 0.0
  %1198 = vmatpush1.msra.mxu0 0.0
  %1199 = vmatprep.subr.mxu0 0.0
  %1200 = vmatpush1.msra.mxu0 0.0
  %1201 = vmatprep.subr.mxu0 0.0
  %1202 = vmatpush1.msra.mxu0 0.0
  %1203 = vmatprep.subr.mxu0 0.0
  %1204 = vmatpush1.msra.mxu0 0.0
  %1205 = vmatprep.subr.mxu0 0.0
  %1206 = vmatpush1.msra.mxu0 0.0
  %1207 = vmatprep.mubr.f32.mxu0 0.0
  %v1208 = vand.u32 %v1042, 4294901760
  %1209 = vmatmul.mubr.f32.gmra.mrb[0].mxu0 %v1208
  %v1210 = vpop.f32.mrb[0].mxu0
  %v1211 = vadd.f32 %v1120, %v1210
  %v1212 = vpop.f32.mrb[0].mxu0
  %1213 = vdwg.mxu0
  %1214 = vmatprep.subr.mxu0 0.0
  %v1215 = vand.u32 %v11, 4294901760
  %v1216 = vsub.f32 %v11, %v1215
  %1217 = vmatpush1.msra.mxu0 %v1216
  %1218 = vmatprep.subr.mxu0 0.0
  %v1219 = vand.u32 %v12, 4294901760
  %v1220 = vsub.f32 %v12, %v1219
  %1221 = vmatpush1.msra.mxu0 %v1220
  %1222 = vmatprep.subr.mxu0 0.0
  %v1223 = vand.u32 %v13, 4294901760
  %v1224 = vsub.f32 %v13, %v1223
  %1225 = vmatpush1.msra.mxu0 %v1224
  %1226 = vmatprep.subr.mxu0 0.0
  %v1227 = vand.u32 %v14, 4294901760
  %v1228 = vsub.f32 %v14, %v1227
  %1229 = vmatpush1.msra.mxu0 %v1228
  %1230 = vmatprep.subr.mxu0 0.0
  %1231 = vmatpush1.msra.mxu0 0.0
  %1232 = vmatprep.subr.mxu0 0.0
  %1233 = vmatpush1.msra.mxu0 0.0
  %1234 = vmatprep.subr.mxu0 0.0
  %1235 = vmatpush1.msra.mxu0 0.0
  %1236 = vmatprep.subr.mxu0 0.0
  %1237 = vmatpush1.msra.mxu0 0.0
  %1238 = vmatprep.subr.mxu0 0.0
  %1239 = vmatpush1.msra.mxu0 0.0
  %1240 = vmatprep.subr.mxu0 0.0
  %1241 = vmatpush1.msra.mxu0 0.0
  %1242 = vmatprep.subr.mxu0 0.0
  %1243 = vmatpush1.msra.mxu0 0.0
  %1244 = vmatprep.subr.mxu0 0.0
  %1245 = vmatpush1.msra.mxu0 0.0
  %1246 = vmatprep.subr.mxu0 0.0
  %1247 = vmatpush1.msra.mxu0 0.0
  %1248 = vmatprep.subr.mxu0 0.0
  %1249 = vmatpush1.msra.mxu0 0.0
  %1250 = vmatprep.subr.mxu0 0.0
  %1251 = vmatpush1.msra.mxu0 0.0
  %1252 = vmatprep.subr.mxu0 0.0
  %1253 = vmatpush1.msra.mxu0 0.0
  %1254 = vmatprep.subr.mxu0 0.0
  %1255 = vmatpush1.msra.mxu0 0.0
  %1256 = vmatprep.subr.mxu0 0.0
  %1257 = vmatpush1.msra.mxu0 0.0
  %1258 = vmatprep.subr.mxu0 0.0
  %1259 = vmatpush1.msra.mxu0 0.0
  %1260 = vmatprep.subr.mxu0 0.0
  %1261 = vmatpush1.msra.mxu0 0.0
  %1262 = vmatprep.subr.mxu0 0.0
  %1263 = vmatpush1.msra.mxu0 0.0
  %1264 = vmatprep.subr.mxu0 0.0
  %1265 = vmatpush1.msra.mxu0 0.0
  %1266 = vmatprep.subr.mxu0 0.0
  %1267 = vmatpush1.msra.mxu0 0.0
  %1268 = vmatprep.subr.mxu0 0.0
  %1269 = vmatpush1.msra.mxu0 0.0
  %1270 = vmatprep.subr.mxu0 0.0
  %1271 = vmatpush1.msra.mxu0 0.0
  %1272 = vmatprep.subr.mxu0 0.0
  %1273 = vmatpush1.msra.mxu0 0.0
  %1274 = vmatprep.subr.mxu0 0.0
  %1275 = vmatpush1.msra.mxu0 0.0
  %1276 = vmatprep.subr.mxu0 0.0
  %1277 = vmatpush1.msra.mxu0 0.0
  %1278 = vmatprep.subr.mxu0 0.0
  %1279 = vmatpush1.msra.mxu0 0.0
  %1280 = vmatprep.subr.mxu0 0.0
  %1281 = vmatpush1.msra.mxu0 0.0
  %1282 = vmatprep.subr.mxu0 0.0
  %1283 = vmatpush1.msra.mxu0 0.0
  %1284 = vmatprep.subr.mxu0 0.0
  %1285 = vmatpush1.msra.mxu0 0.0
  %1286 = vmatprep.mubr.f32.mxu0 0.0
  %v1287 = vand.u32 %v1042, 4294901760
  %v1288 = vsub.f32 %v1042, %v1287
  %1289 = vmatmul.mubr.f32.gmra.mrb[0].mxu0 %v1288
  %v1290 = vpop.f32.mrb[0].mxu0
  %v1291 = vadd.f32 %v1211, %v1290
  %v1292 = vpop.f32.mrb[0].mxu0
  %1293 = vdwg.mxu0
  %1294 = vmatprep.subr.mxu0 0.0
  %v1295 = vand.u32 %v11, 4294901760
  %1296 = vmatpush1.msra.mxu0 %v1295
  %1297 = vmatprep.subr.mxu0 0.0
  %v1298 = vand.u32 %v12, 4294901760
  %1299 = vmatpush1.msra.mxu0 %v1298
  %1300 = vmatprep.subr.mxu0 0.0
  %v1301 = vand.u32 %v13, 4294901760
  %1302 = vmatpush1.msra.mxu0 %v1301
  %1303 = vmatprep.subr.mxu0 0.0
  %v1304 = vand.u32 %v14, 4294901760
  %1305 = vmatpush1.msra.mxu0 %v1304
  %1306 = vmatprep.subr.mxu0 0.0
  %1307 = vmatpush1.msra.mxu0 0.0
  %1308 = vmatprep.subr.mxu0 0.0
  %1309 = vmatpush1.msra.mxu0 0.0
  %1310 = vmatprep.subr.mxu0 0.0
  %1311 = vmatpush1.msra.mxu0 0.0
  %1312 = vmatprep.subr.mxu0 0.0
  %1313 = vmatpush1.msra.mxu0 0.0
  %1314 = vmatprep.subr.mxu0 0.0
  %1315 = vmatpush1.msra.mxu0 0.0
  %1316 = vmatprep.subr.mxu0 0.0
  %1317 = vmatpush1.msra.mxu0 0.0
  %1318 = vmatprep.subr.mxu0 0.0
  %1319 = vmatpush1.msra.mxu0 0.0
  %1320 = vmatprep.subr.mxu0 0.0
  %1321 = vmatpush1.msra.mxu0 0.0
  %1322 = vmatprep.subr.mxu0 0.0
  %1323 = vmatpush1.msra.mxu0 0.0
  %1324 = vmatprep.subr.mxu0 0.0
  %1325 = vmatpush1.msra.mxu0 0.0
  %1326 = vmatprep.subr.mxu0 0.0
  %1327 = vmatpush1.msra.mxu0 0.0
  %1328 = vmatprep.subr.mxu0 0.0
  %1329 = vmatpush1.msra.mxu0 0.0
  %1330 = vmatprep.subr.mxu0 0.0
  %1331 = vmatpush1.msra.mxu0 0.0
  %1332 = vmatprep.subr.mxu0 0.0
  %1333 = vmatpush1.msra.mxu0 0.0
  %1334 = vmatprep.subr.mxu0 0.0
  %1335 = vmatpush1.msra.mxu0 0.0
  %1336 = vmatprep.subr.mxu0 0.0
  %1337 = vmatpush1.msra.mxu0 0.0
  %1338 = vmatprep.subr.mxu0 0.0
  %1339 = vmatpush1.msra.mxu0 0.0
  %1340 = vmatprep.subr.mxu0 0.0
  %1341 = vmatpush1.msra.mxu0 0.0
  %1342 = vmatprep.subr.mxu0 0.0
  %1343 = vmatpush1.msra.mxu0 0.0
  %1344 = vmatprep.subr.mxu0 0.0
  %1345 = vmatpush1.msra.mxu0 0.0
  %1346 = vmatprep.subr.mxu0 0.0
  %1347 = vmatpush1.msra.mxu0 0.0
  %1348 = vmatprep.subr.mxu0 0.0
  %1349 = vmatpush1.msra.mxu0 0.0
  %1350 = vmatprep.subr.mxu0 0.0
  %1351 = vmatpush1.msra.mxu0 0.0
  %1352 = vmatprep.subr.mxu0 0.0
  %1353 = vmatpush1.msra.mxu0 0.0
  %1354 = vmatprep.subr.mxu0 0.0
  %1355 = vmatpush1.msra.mxu0 0.0
  %1356 = vmatprep.subr.mxu0 0.0
  %1357 = vmatpush1.msra.mxu0 0.0
  %1358 = vmatprep.subr.mxu0 0.0
  %1359 = vmatpush1.msra.mxu0 0.0
  %1360 = vmatprep.subr.mxu0 0.0
  %1361 = vmatpush1.msra.mxu0 0.0
  %1362 = vmatprep.mubr.f32.mxu0 0.0
  %v1363 = vand.u32 %v1042, 4294901760
  %v1364 = vsub.f32 %v1042, %v1363
  %v1365 = vand.u32 %v1364, 4294901760
  %1366 = vmatmul.mubr.f32.gmra.mrb[0].mxu0 %v1365
  %v1367 = vpop.f32.mrb[0].mxu0
  %v1368 = vadd.f32 %v1291, %v1367
  %v1369 = vpop.f32.mrb[0].mxu0
  %1370 = vdwg.mxu0
  %1371 = vmatprep.subr.mxu0 0.0
  %v1372 = vand.u32 %v11, 4294901760
  %v1373 = vsub.f32 %v11, %v1372
  %v1374 = vand.u32 %v1373, 4294901760
  %1375 = vmatpush1.msra.mxu0 %v1374
  %1376 = vmatprep.subr.mxu0 0.0
  %v1377 = vand.u32 %v12, 4294901760
  %v1378 = vsub.f32 %v12, %v1377
  %v1379 = vand.u32 %v1378, 4294901760
  %1380 = vmatpush1.msra.mxu0 %v1379
  %1381 = vmatprep.subr.mxu0 0.0
  %v1382 = vand.u32 %v13, 4294901760
  %v1383 = vsub.f32 %v13, %v1382
  %v1384 = vand.u32 %v1383, 4294901760
  %1385 = vmatpush1.msra.mxu0 %v1384
  %1386 = vmatprep.subr.mxu0 0.0
  %v1387 = vand.u32 %v14, 4294901760
  %v1388 = vsub.f32 %v14, %v1387
  %v1389 = vand.u32 %v1388, 4294901760
  %1390 = vmatpush1.msra.mxu0 %v1389
  %1391 = vmatprep.subr.mxu0 0.0
  %1392 = vmatpush1.msra.mxu0 0.0
  %1393 = vmatprep.subr.mxu0 0.0
  %1394 = vmatpush1.msra.mxu0 0.0
  %1395 = vmatprep.subr.mxu0 0.0
  %1396 = vmatpush1.msra.mxu0 0.0
  %1397 = vmatprep.subr.mxu0 0.0
  %1398 = vmatpush1.msra.mxu0 0.0
  %1399 = vmatprep.subr.mxu0 0.0
  %1400 = vmatpush1.msra.mxu0 0.0
  %1401 = vmatprep.subr.mxu0 0.0
  %1402 = vmatpush1.msra.mxu0 0.0
  %1403 = vmatprep.subr.mxu0 0.0
  %1404 = vmatpush1.msra.mxu0 0.0
  %1405 = vmatprep.subr.mxu0 0.0
  %1406 = vmatpush1.msra.mxu0 0.0
  %1407 = vmatprep.subr.mxu0 0.0
  %1408 = vmatpush1.msra.mxu0 0.0
  %1409 = vmatprep.subr.mxu0 0.0
  %1410 = vmatpush1.msra.mxu0 0.0
  %1411 = vmatprep.subr.mxu0 0.0
  %1412 = vmatpush1.msra.mxu0 0.0
  %1413 = vmatprep.subr.mxu0 0.0
  %1414 = vmatpush1.msra.mxu0 0.0
  %1415 = vmatprep.subr.mxu0 0.0
  %1416 = vmatpush1.msra.mxu0 0.0
  %1417 = vmatprep.subr.mxu0 0.0
  %1418 = vmatpush1.msra.mxu0 0.0
  %1419 = vmatprep.subr.mxu0 0.0
  %1420 = vmatpush1.msra.mxu0 0.0
  %1421 = vmatprep.subr.mxu0 0.0
  %1422 = vmatpush1.msra.mxu0 0.0
  %1423 = vmatprep.subr.mxu0 0.0
  %1424 = vmatpush1.msra.mxu0 0.0
  %1425 = vmatprep.subr.mxu0 0.0
  %1426 = vmatpush1.msra.mxu0 0.0
  %1427 = vmatprep.subr.mxu0 0.0
  %1428 = vmatpush1.msra.mxu0 0.0
  %1429 = vmatprep.subr.mxu0 0.0
  %1430 = vmatpush1.msra.mxu0 0.0
  %1431 = vmatprep.subr.mxu0 0.0
  %1432 = vmatpush1.msra.mxu0 0.0
  %1433 = vmatprep.subr.mxu0 0.0
  %1434 = vmatpush1.msra.mxu0 0.0
  %1435 = vmatprep.subr.mxu0 0.0
  %1436 = vmatpush1.msra.mxu0 0.0
  %1437 = vmatprep.subr.mxu0 0.0
  %1438 = vmatpush1.msra.mxu0 0.0
  %1439 = vmatprep.subr.mxu0 0.0
  %1440 = vmatpush1.msra.mxu0 0.0
  %1441 = vmatprep.subr.mxu0 0.0
  %1442 = vmatpush1.msra.mxu0 0.0
  %1443 = vmatprep.subr.mxu0 0.0
  %1444 = vmatpush1.msra.mxu0 0.0
  %1445 = vmatprep.subr.mxu0 0.0
  %1446 = vmatpush1.msra.mxu0 0.0
  %1447 = vmatprep.mubr.f32.mxu0 0.0
  %v1448 = vand.u32 %v1042, 4294901760
  %1449 = vmatmul.mubr.f32.gmra.mrb[0].mxu0 %v1448
  %v1450 = vpop.f32.mrb[0].mxu0
  %v1451 = vadd.f32 %v1368, %v1450
  %v1452 = vpop.f32.mrb[0].mxu0
  %1453 = vdwg.mxu0
  %1454 = vmatprep.subr.mxu0 0.0
  %v1455 = vand.u32 %v11, 4294901760
  %1456 = vmatpush1.msra.mxu0 %v1455
  %1457 = vmatprep.subr.mxu0 0.0
  %v1458 = vand.u32 %v12, 4294901760
  %1459 = vmatpush1.msra.mxu0 %v1458
  %1460 = vmatprep.subr.mxu0 0.0
  %v1461 = vand.u32 %v13, 4294901760
  %1462 = vmatpush1.msra.mxu0 %v1461
  %1463 = vmatprep.subr.mxu0 0.0
  %v1464 = vand.u32 %v14, 4294901760
  %1465 = vmatpush1.msra.mxu0 %v1464
  %1466 = vmatprep.subr.mxu0 0.0
  %1467 = vmatpush1.msra.mxu0 0.0
  %1468 = vmatprep.subr.mxu0 0.0
  %1469 = vmatpush1.msra.mxu0 0.0
  %1470 = vmatprep.subr.mxu0 0.0
  %1471 = vmatpush1.msra.mxu0 0.0
  %1472 = vmatprep.subr.mxu0 0.0
  %1473 = vmatpush1.msra.mxu0 0.0
  %1474 = vmatprep.subr.mxu0 0.0
  %1475 = vmatpush1.msra.mxu0 0.0
  %1476 = vmatprep.subr.mxu0 0.0
  %1477 = vmatpush1.msra.mxu0 0.0
  %1478 = vmatprep.subr.mxu0 0.0
  %1479 = vmatpush1.msra.mxu0 0.0
  %1480 = vmatprep.subr.mxu0 0.0
  %1481 = vmatpush1.msra.mxu0 0.0
  %1482 = vmatprep.subr.mxu0 0.0
  %1483 = vmatpush1.msra.mxu0 0.0
  %1484 = vmatprep.subr.mxu0 0.0
  %1485 = vmatpush1.msra.mxu0 0.0
  %1486 = vmatprep.subr.mxu0 0.0
  %1487 = vmatpush1.msra.mxu0 0.0
  %1488 = vmatprep.subr.mxu0 0.0
  %1489 = vmatpush1.msra.mxu0 0.0
  %1490 = vmatprep.subr.mxu0 0.0
  %1491 = vmatpush1.msra.mxu0 0.0
  %1492 = vmatprep.subr.mxu0 0.0
  %1493 = vmatpush1.msra.mxu0 0.0
  %1494 = vmatprep.subr.mxu0 0.0
  %1495 = vmatpush1.msra.mxu0 0.0
  %1496 = vmatprep.subr.mxu0 0.0
  %1497 = vmatpush1.msra.mxu0 0.0
  %1498 = vmatprep.subr.mxu0 0.0
  %1499 = vmatpush1.msra.mxu0 0.0
  %1500 = vmatprep.subr.mxu0 0.0
  %1501 = vmatpush1.msra.mxu0 0.0
  %1502 = vmatprep.subr.mxu0 0.0
  %1503 = vmatpush1.msra.mxu0 0.0
  %1504 = vmatprep.subr.mxu0 0.0
  %1505 = vmatpush1.msra.mxu0 0.0
  %1506 = vmatprep.subr.mxu0 0.0
  %1507 = vmatpush1.msra.mxu0 0.0
  %1508 = vmatprep.subr.mxu0 0.0
  %1509 = vmatpush1.msra.mxu0 0.0
  %1510 = vmatprep.subr.mxu0 0.0
  %1511 = vmatpush1.msra.mxu0 0.0
  %1512 = vmatprep.subr.mxu0 0.0
  %1513 = vmatpush1.msra.mxu0 0.0
  %1514 = vmatprep.subr.mxu0 0.0
  %1515 = vmatpush1.msra.mxu0 0.0
  %1516 = vmatprep.subr.mxu0 0.0
  %1517 = vmatpush1.msra.mxu0 0.0
  %1518 = vmatprep.subr.mxu0 0.0
  %1519 = vmatpush1.msra.mxu0 0.0
  %1520 = vmatprep.subr.mxu0 0.0
  %1521 = vmatpush1.msra.mxu0 0.0
  %1522 = vmatprep.mubr.f32.mxu0 0.0
  %v1523 = vand.u32 %v1042, 4294901760
  %1524 = vmatmul.mubr.f32.gmra.mrb[0].mxu0 %v1523
  %v1525 = vpop.f32.mrb[0].mxu0
  %v1526 = vadd.f32 %v1451, %v1525
  %v1527 = vpop.f32.mrb[0].mxu0
  %1528 = vdwg.mxu0
  %v1529 = vadd.f32 %v1038, %v1526
  %v1530 = vtanh.pop %v1529
  %v1531 = vmul.f32 %v1530, 0.5
  %v1532 = vadd.f32 %v1531, 0.5
  %v1533 = vmul.f32 %v1532, %v1031
  %1535 = vrot.lane.b32.xlu0 %v1530, 64
  %v1536 = vpop.permute.xlu0 %1535
  %v1538 = vmul.f32 %v1532, %v1536
  %1540 = vrot.lane.b32.xlu0 %v1538, 32
  %v1541 = vpop.permute.xlu0 %1540
  %v1543 = vadd.f32 %v1533, %v1541
  %v1544 = vtanh.pop %v1543
  %1546 = vrot.lane.b32.xlu0 %v1544, 64
  %v1547 = vpop.permute.xlu0 %1546
  %v1549 = vmul.f32 %v1532, %v1547
  %v1550 = vld [vmem:[%s0 + $0x18] sm:$0xff]
  %1552 = vrot.lane.b32.xlu0 %v1549, 32
  %v1553 = vpop.permute.xlu0 %1552
  %v1554 = vsel %vm16, %v1553, 0
  %1556 = vmatprep.subr.mxu0 0.0
  %v1557 = vand.u32 %v11, 4294901760
  %1558 = vmatpush1.msra.mxu0 %v1557
  %1559 = vmatprep.subr.mxu0 0.0
  %v1560 = vand.u32 %v12, 4294901760
  %1561 = vmatpush1.msra.mxu0 %v1560
  %1562 = vmatprep.subr.mxu0 0.0
  %v1563 = vand.u32 %v13, 4294901760
  %1564 = vmatpush1.msra.mxu0 %v1563
  %1565 = vmatprep.subr.mxu0 0.0
  %v1566 = vand.u32 %v14, 4294901760
  %1567 = vmatpush1.msra.mxu0 %v1566
  %1568 = vmatprep.subr.mxu0 0.0
  %1569 = vmatpush1.msra.mxu0 0.0
  %1570 = vmatprep.subr.mxu0 0.0
  %1571 = vmatpush1.msra.mxu0 0.0
  %1572 = vmatprep.subr.mxu0 0.0
  %1573 = vmatpush1.msra.mxu0 0.0
  %1574 = vmatprep.subr.mxu0 0.0
  %1575 = vmatpush1.msra.mxu0 0.0
  %1576 = vmatprep.subr.mxu0 0.0
  %1577 = vmatpush1.msra.mxu0 0.0
  %1578 = vmatprep.subr.mxu0 0.0
  %1579 = vmatpush1.msra.mxu0 0.0
  %1580 = vmatprep.subr.mxu0 0.0
  %1581 = vmatpush1.msra.mxu0 0.0
  %1582 = vmatprep.subr.mxu0 0.0
  %1583 = vmatpush1.msra.mxu0 0.0
  %1584 = vmatprep.subr.mxu0 0.0
  %1585 = vmatpush1.msra.mxu0 0.0
  %1586 = vmatprep.subr.mxu0 0.0
  %1587 = vmatpush1.msra.mxu0 0.0
  %1588 = vmatprep.subr.mxu0 0.0
  %1589 = vmatpush1.msra.mxu0 0.0
  %1590 = vmatprep.subr.mxu0 0.0
  %1591 = vmatpush1.msra.mxu0 0.0
  %1592 = vmatprep.subr.mxu0 0.0
  %1593 = vmatpush1.msra.mxu0 0.0
  %1594 = vmatprep.subr.mxu0 0.0
  %1595 = vmatpush1.msra.mxu0 0.0
  %1596 = vmatprep.subr.mxu0 0.0
  %1597 = vmatpush1.msra.mxu0 0.0
  %1598 = vmatprep.subr.mxu0 0.0
  %1599 = vmatpush1.msra.mxu0 0.0
  %1600 = vmatprep.subr.mxu0 0.0
  %1601 = vmatpush1.msra.mxu0 0.0
  %1602 = vmatprep.subr.mxu0 0.0
  %1603 = vmatpush1.msra.mxu0 0.0
  %1604 = vmatprep.subr.mxu0 0.0
  %1605 = vmatpush1.msra.mxu0 0.0
  %1606 = vmatprep.subr.mxu0 0.0
  %1607 = vmatpush1.msra.mxu0 0.0
  %1608 = vmatprep.subr.mxu0 0.0
  %1609 = vmatpush1.msra.mxu0 0.0
  %1610 = vmatprep.subr.mxu0 0.0
  %1611 = vmatpush1.msra.mxu0 0.0
  %1612 = vmatprep.subr.mxu0 0.0
  %1613 = vmatpush1.msra.mxu0 0.0
  %1614 = vmatprep.subr.mxu0 0.0
  %1615 = vmatpush1.msra.mxu0 0.0
  %1616 = vmatprep.subr.mxu0 0.0
  %1617 = vmatpush1.msra.mxu0 0.0
  %1618 = vmatprep.subr.mxu0 0.0
  %1619 = vmatpush1.msra.mxu0 0.0
  %1620 = vmatprep.subr.mxu0 0.0
  %1621 = vmatpush1.msra.mxu0 0.0
  %1622 = vmatprep.subr.mxu0 0.0
  %1623 = vmatpush1.msra.mxu0 0.0
  %1624 = vmatprep.mubr.f32.mxu0 0.0
  %v1625 = vand.u32 %v1554, 4294901760
  %v1626 = vsub.f32 %v1554, %v1625
  %v1627 = vand.u32 %v1626, 4294901760
  %v1628 = vsub.f32 %v1626, %v1627
  %v1629 = vand.u32 %v1628, 4294901760
  %1630 = vmatmul.mubr.f32.gmra.mrb[0].mxu0 %v1629
  %v1631 = vpop.f32.mrb[0].mxu0
  %v1632 = vadd.f32 0.0, %v1631
  %v1633 = vpop.f32.mrb[0].mxu0
  %1634 = vdwg.mxu0
  %1635 = vmatprep.subr.mxu0 0.0
  %v1636 = vand.u32 %v11, 4294901760
  %v1637 = vsub.f32 %v11, %v1636
  %v1638 = vand.u32 %v1637, 4294901760
  %v1639 = vsub.f32 %v1637, %v1638
  %v1640 = vand.u32 %v1639, 4294901760
  %1641 = vmatpush1.msra.mxu0 %v1640
  %1642 = vmatprep.subr.mxu0 0.0
  %v1643 = vand.u32 %v12, 4294901760
  %v1644 = vsub.f32 %v12, %v1643
  %v1645 = vand.u32 %v1644, 4294901760
  %v1646 = vsub.f32 %v1644, %v1645
  %v1647 = vand.u32 %v1646, 4294901760
  %1648 = vmatpush1.msra.mxu0 %v1647
  %1649 = vmatprep.subr.mxu0 0.0
  %v1650 = vand.u32 %v13, 4294901760
  %v1651 = vsub.f32 %v13, %v1650
  %v1652 = vand.u32 %v1651, 4294901760
  %v1653 = vsub.f32 %v1651, %v1652
  %v1654 = vand.u32 %v1653, 4294901760
  %1655 = vmatpush1.msra.mxu0 %v1654
  %1656 = vmatprep.subr.mxu0 0.0
  %v1657 = vand.u32 %v14, 4294901760
  %v1658 = vsub.f32 %v14, %v1657
  %v1659 = vand.u32 %v1658, 4294901760
  %v1660 = vsub.f32 %v1658, %v1659
  %v1661 = vand.u32 %v1660, 4294901760
  %1662 = vmatpush1.msra.mxu0 %v1661
  %1663 = vmatprep.subr.mxu0 0.0
  %1664 = vmatpush1.msra.mxu0 0.0
  %1665 = vmatprep.subr.mxu0 0.0
  %1666 = vmatpush1.msra.mxu0 0.0
  %1667 = vmatprep.subr.mxu0 0.0
  %1668 = vmatpush1.msra.mxu0 0.0
  %1669 = vmatprep.subr.mxu0 0.0
  %1670 = vmatpush1.msra.mxu0 0.0
  %1671 = vmatprep.subr.mxu0 0.0
  %1672 = vmatpush1.msra.mxu0 0.0
  %1673 = vmatprep.subr.mxu0 0.0
  %1674 = vmatpush1.msra.mxu0 0.0
  %1675 = vmatprep.subr.mxu0 0.0
  %1676 = vmatpush1.msra.mxu0 0.0
  %1677 = vmatprep.subr.mxu0 0.0
  %1678 = vmatpush1.msra.mxu0 0.0
  %1679 = vmatprep.subr.mxu0 0.0
  %1680 = vmatpush1.msra.mxu0 0.0
  %1681 = vmatprep.subr.mxu0 0.0
  %1682 = vmatpush1.msra.mxu0 0.0
  %1683 = vmatprep.subr.mxu0 0.0
  %1684 = vmatpush1.msra.mxu0 0.0
  %1685 = vmatprep.subr.mxu0 0.0
  %1686 = vmatpush1.msra.mxu0 0.0
  %1687 = vmatprep.subr.mxu0 0.0
  %1688 = vmatpush1.msra.mxu0 0.0
  %1689 = vmatprep.subr.mxu0 0.0
  %1690 = vmatpush1.msra.mxu0 0.0
  %1691 = vmatprep.subr.mxu0 0.0
  %1692 = vmatpush1.msra.mxu0 0.0
  %1693 = vmatprep.subr.mxu0 0.0
  %1694 = vmatpush1.msra.mxu0 0.0
  %1695 = vmatprep.subr.mxu0 0.0
  %1696 = vmatpush1.msra.mxu0 0.0
  %1697 = vmatprep.subr.mxu0 0.0
  %1698 = vmatpush1.msra.mxu0 0.0
  %1699 = vmatprep.subr.mxu0 0.0
  %1700 = vmatpush1.msra.mxu0 0.0
  %1701 = vmatprep.subr.mxu0 0.0
  %1702 = vmatpush1.msra.mxu0 0.0
  %1703 = vmatprep.subr.mxu0 0.0
  %1704 = vmatpush1.msra.mxu0 0.0
  %1705 = vmatprep.subr.mxu0 0.0
  %1706 = vmatpush1.msra.mxu0 0.0
  %1707 = vmatprep.subr.mxu0 0.0
  %1708 = vmatpush1.msra.mxu0 0.0
  %1709 = vmatprep.subr.mxu0 0.0
  %1710 = vmatpush1.msra.mxu0 0.0
  %1711 = vmatprep.subr.mxu0 0.0
  %1712 = vmatpush1.msra.mxu0 0.0
  %1713 = vmatprep.subr.mxu0 0.0
  %1714 = vmatpush1.msra.mxu0 0.0
  %1715 = vmatprep.subr.mxu0 0.0
  %1716 = vmatpush1.msra.mxu0 0.0
  %1717 = vmatprep.subr.mxu0 0.0
  %1718 = vmatpush1.msra.mxu0 0.0
  %1719 = vmatprep.mubr.f32.mxu0 0.0
  %v1720 = vand.u32 %v1554, 4294901760
  %1721 = vmatmul.mubr.f32.gmra.mrb[0].mxu0 %v1720
  %v1722 = vpop.f32.mrb[0].mxu0
  %v1723 = vadd.f32 %v1632, %v1722
  %v1724 = vpop.f32.mrb[0].mxu0
  %1725 = vdwg.mxu0
  %1726 = vmatprep.subr.mxu0 0.0
  %v1727 = vand.u32 %v11, 4294901760
  %v1728 = vsub.f32 %v11, %v1727
  %1729 = vmatpush1.msra.mxu0 %v1728
  %1730 = vmatprep.subr.mxu0 0.0
  %v1731 = vand.u32 %v12, 4294901760
  %v1732 = vsub.f32 %v12, %v1731
  %1733 = vmatpush1.msra.mxu0 %v1732
  %1734 = vmatprep.subr.mxu0 0.0
  %v1735 = vand.u32 %v13, 4294901760
  %v1736 = vsub.f32 %v13, %v1735
  %1737 = vmatpush1.msra.mxu0 %v1736
  %1738 = vmatprep.subr.mxu0 0.0
  %v1739 = vand.u32 %v14, 4294901760
  %v1740 = vsub.f32 %v14, %v1739
  %1741 = vmatpush1.msra.mxu0 %v1740
  %1742 = vmatprep.subr.mxu0 0.0
  %1743 = vmatpush1.msra.mxu0 0.0
  %1744 = vmatprep.subr.mxu0 0.0
  %1745 = vmatpush1.msra.mxu0 0.0
  %1746 = vmatprep.subr.mxu0 0.0
  %1747 = vmatpush1.msra.mxu0 0.0
  %1748 = vmatprep.subr.mxu0 0.0
  %1749 = vmatpush1.msra.mxu0 0.0
  %1750 = vmatprep.subr.mxu0 0.0
  %1751 = vmatpush1.msra.mxu0 0.0
  %1752 = vmatprep.subr.mxu0 0.0
  %1753 = vmatpush1.msra.mxu0 0.0
  %1754 = vmatprep.subr.mxu0 0.0
  %1755 = vmatpush1.msra.mxu0 0.0
  %1756 = vmatprep.subr.mxu0 0.0
  %1757 = vmatpush1.msra.mxu0 0.0
  %1758 = vmatprep.subr.mxu0 0.0
  %1759 = vmatpush1.msra.mxu0 0.0
  %1760 = vmatprep.subr.mxu0 0.0
  %1761 = vmatpush1.msra.mxu0 0.0
  %1762 = vmatprep.subr.mxu0 0.0
  %1763 = vmatpush1.msra.mxu0 0.0
  %1764 = vmatprep.subr.mxu0 0.0
  %1765 = vmatpush1.msra.mxu0 0.0
  %1766 = vmatprep.subr.mxu0 0.0
  %1767 = vmatpush1.msra.mxu0 0.0
  %1768 = vmatprep.subr.mxu0 0.0
  %1769 = vmatpush1.msra.mxu0 0.0
  %1770 = vmatprep.subr.mxu0 0.0
  %1771 = vmatpush1.msra.mxu0 0.0
  %1772 = vmatprep.subr.mxu0 0.0
  %1773 = vmatpush1.msra.mxu0 0.0
  %1774 = vmatprep.subr.mxu0 0.0
  %1775 = vmatpush1.msra.mxu0 0.0
  %1776 = vmatprep.subr.mxu0 0.0
  %1777 = vmatpush1.msra.mxu0 0.0
  %1778 = vmatprep.subr.mxu0 0.0
  %1779 = vmatpush1.msra.mxu0 0.0
  %1780 = vmatprep.subr.mxu0 0.0
  %1781 = vmatpush1.msra.mxu0 0.0
  %1782 = vmatprep.subr.mxu0 0.0
  %1783 = vmatpush1.msra.mxu0 0.0
  %1784 = vmatprep.subr.mxu0 0.0
  %1785 = vmatpush1.msra.mxu0 0.0
  %1786 = vmatprep.subr.mxu0 0.0
  %1787 = vmatpush1.msra.mxu0 0.0
  %1788 = vmatprep.subr.mxu0 0.0
  %1789 = vmatpush1.msra.mxu0 0.0
  %1790 = vmatprep.subr.mxu0 0.0
  %1791 = vmatpush1.msra.mxu0 0.0
  %1792 = vmatprep.subr.mxu0 0.0
  %1793 = vmatpush1.msra.mxu0 0.0
  %1794 = vmatprep.subr.mxu0 0.0
  %1795 = vmatpush1.msra.mxu0 0.0
  %1796 = vmatprep.subr.mxu0 0.0
  %1797 = vmatpush1.msra.mxu0 0.0
  %1798 = vmatprep.mubr.f32.mxu0 0.0
  %v1799 = vand.u32 %v1554, 4294901760
  %v1800 = vsub.f32 %v1554, %v1799
  %1801 = vmatmul.mubr.f32.gmra.mrb[0].mxu0 %v1800
  %v1802 = vpop.f32.mrb[0].mxu0
  %v1803 = vadd.f32 %v1723, %v1802
  %v1804 = vpop.f32.mrb[0].mxu0
  %1805 = vdwg.mxu0
  %1806 = vmatprep.subr.mxu0 0.0
  %v1807 = vand.u32 %v11, 4294901760
  %1808 = vmatpush1.msra.mxu0 %v1807
  %1809 = vmatprep.subr.mxu0 0.0
  %v1810 = vand.u32 %v12, 4294901760
  %1811 = vmatpush1.msra.mxu0 %v1810
  %1812 = vmatprep.subr.mxu0 0.0
  %v1813 = vand.u32 %v13, 4294901760
  %1814 = vmatpush1.msra.mxu0 %v1813
  %1815 = vmatprep.subr.mxu0 0.0
  %v1816 = vand.u32 %v14, 4294901760
  %1817 = vmatpush1.msra.mxu0 %v1816
  %1818 = vmatprep.subr.mxu0 0.0
  %1819 = vmatpush1.msra.mxu0 0.0
  %1820 = vmatprep.subr.mxu0 0.0
  %1821 = vmatpush1.msra.mxu0 0.0
  %1822 = vmatprep.subr.mxu0 0.0
  %1823 = vmatpush1.msra.mxu0 0.0
  %1824 = vmatprep.subr.mxu0 0.0
  %1825 = vmatpush1.msra.mxu0 0.0
  %1826 = vmatprep.subr.mxu0 0.0
  %1827 = vmatpush1.msra.mxu0 0.0
  %1828 = vmatprep.subr.mxu0 0.0
  %1829 = vmatpush1.msra.mxu0 0.0
  %1830 = vmatprep.subr.mxu0 0.0
  %1831 = vmatpush1.msra.mxu0 0.0
  %1832 = vmatprep.subr.mxu0 0.0
  %1833 = vmatpush1.msra.mxu0 0.0
  %1834 = vmatprep.subr.mxu0 0.0
  %1835 = vmatpush1.msra.mxu0 0.0
  %1836 = vmatprep.subr.mxu0 0.0
  %1837 = vmatpush1.msra.mxu0 0.0
  %1838 = vmatprep.subr.mxu0 0.0
  %1839 = vmatpush1.msra.mxu0 0.0
  %1840 = vmatprep.subr.mxu0 0.0
  %1841 = vmatpush1.msra.mxu0 0.0
  %1842 = vmatprep.subr.mxu0 0.0
  %1843 = vmatpush1.msra.mxu0 0.0
  %1844 = vmatprep.subr.mxu0 0.0
  %1845 = vmatpush1.msra.mxu0 0.0
  %1846 = vmatprep.subr.mxu0 0.0
  %1847 = vmatpush1.msra.mxu0 0.0
  %1848 = vmatprep.subr.mxu0 0.0
  %1849 = vmatpush1.msra.mxu0 0.0
  %1850 = vmatprep.subr.mxu0 0.0
  %1851 = vmatpush1.msra.mxu0 0.0
  %1852 = vmatprep.subr.mxu0 0.0
  %1853 = vmatpush1.msra.mxu0 0.0
  %1854 = vmatprep.subr.mxu0 0.0
  %1855 = vmatpush1.msra.mxu0 0.0
  %1856 = vmatprep.subr.mxu0 0.0
  %1857 = vmatpush1.msra.mxu0 0.0
  %1858 = vmatprep.subr.mxu0 0.0
  %1859 = vmatpush1.msra.mxu0 0.0
  %1860 = vmatprep.subr.mxu0 0.0
  %1861 = vmatpush1.msra.mxu0 0.0
  %1862 = vmatprep.subr.mxu0 0.0
  %1863 = vmatpush1.msra.mxu0 0.0
  %1864 = vmatprep.subr.mxu0 0.0
  %1865 = vmatpush1.msra.mxu0 0.0
  %1866 = vmatprep.subr.mxu0 0.0
  %1867 = vmatpush1.msra.mxu0 0.0
  %1868 = vmatprep.subr.mxu0 0.0
  %1869 = vmatpush1.msra.mxu0 0.0
  %1870 = vmatprep.subr.mxu0 0.0
  %1871 = vmatpush1.msra.mxu0 0.0
  %1872 = vmatprep.subr.mxu0 0.0
  %1873 = vmatpush1.msra.mxu0 0.0
  %1874 = vmatprep.mubr.f32.mxu0 0.0
  %v1875 = vand.u32 %v1554, 4294901760
  %v1876 = vsub.f32 %v1554, %v1875
  %v1877 = vand.u32 %v1876, 4294901760
  %1878 = vmatmul.mubr.f32.gmra.mrb[0].mxu0 %v1877
  %v1879 = vpop.f32.mrb[0].mxu0
  %v1880 = vadd.f32 %v1803, %v1879
  %v1881 = vpop.f32.mrb[0].mxu0
  %1882 = vdwg.mxu0
  %1883 = vmatprep.subr.mxu0 0.0
  %v1884 = vand.u32 %v11, 4294901760
  %v1885 = vsub.f32 %v11, %v1884
  %v1886 = vand.u32 %v1885, 4294901760
  %1887 = vmatpush1.msra.mxu0 %v1886
  %1888 = vmatprep.subr.mxu0 0.0
  %v1889 = vand.u32 %v12, 4294901760
  %v1890 = vsub.f32 %v12, %v1889
  %v1891 = vand.u32 %v1890, 4294901760
  %1892 = vmatpush1.msra.mxu0 %v1891
  %1893 = vmatprep.subr.mxu0 0.0
  %v1894 = vand.u32 %v13, 4294901760
  %v1895 = vsub.f32 %v13, %v1894
  %v1896 = vand.u32 %v1895, 4294901760
  %1897 = vmatpush1.msra.mxu0 %v1896
  %1898 = vmatprep.subr.mxu0 0.0
  %v1899 = vand.u32 %v14, 4294901760
  %v1900 = vsub.f32 %v14, %v1899
  %v1901 = vand.u32 %v1900, 4294901760
  %1902 = vmatpush1.msra.mxu0 %v1901
  %1903 = vmatprep.subr.mxu0 0.0
  %1904 = vmatpush1.msra.mxu0 0.0
  %1905 = vmatprep.subr.mxu0 0.0
  %1906 = vmatpush1.msra.mxu0 0.0
  %1907 = vmatprep.subr.mxu0 0.0
  %1908 = vmatpush1.msra.mxu0 0.0
  %1909 = vmatprep.subr.mxu0 0.0
  %1910 = vmatpush1.msra.mxu0 0.0
  %1911 = vmatprep.subr.mxu0 0.0
  %1912 = vmatpush1.msra.mxu0 0.0
  %1913 = vmatprep.subr.mxu0 0.0
  %1914 = vmatpush1.msra.mxu0 0.0
  %1915 = vmatprep.subr.mxu0 0.0
  %1916 = vmatpush1.msra.mxu0 0.0
  %1917 = vmatprep.subr.mxu0 0.0
  %1918 = vmatpush1.msra.mxu0 0.0
  %1919 = vmatprep.subr.mxu0 0.0
  %1920 = vmatpush1.msra.mxu0 0.0
  %1921 = vmatprep.subr.mxu0 0.0
  %1922 = vmatpush1.msra.mxu0 0.0
  %1923 = vmatprep.subr.mxu0 0.0
  %1924 = vmatpush1.msra.mxu0 0.0
  %1925 = vmatprep.subr.mxu0 0.0
  %1926 = vmatpush1.msra.mxu0 0.0
  %1927 = vmatprep.subr.mxu0 0.0
  %1928 = vmatpush1.msra.mxu0 0.0
  %1929 = vmatprep.subr.mxu0 0.0
  %1930 = vmatpush1.msra.mxu0 0.0
  %1931 = vmatprep.subr.mxu0 0.0
  %1932 = vmatpush1.msra.mxu0 0.0
  %1933 = vmatprep.subr.mxu0 0.0
  %1934 = vmatpush1.msra.mxu0 0.0
  %1935 = vmatprep.subr.mxu0 0.0
  %1936 = vmatpush1.msra.mxu0 0.0
  %1937 = vmatprep.subr.mxu0 0.0
  %1938 = vmatpush1.msra.mxu0 0.0
  %1939 = vmatprep.subr.mxu0 0.0
  %1940 = vmatpush1.msra.mxu0 0.0
  %1941 = vmatprep.subr.mxu0 0.0
  %1942 = vmatpush1.msra.mxu0 0.0
  %1943 = vmatprep.subr.mxu0 0.0
  %1944 = vmatpush1.msra.mxu0 0.0
  %1945 = vmatprep.subr.mxu0 0.0
  %1946 = vmatpush1.msra.mxu0 0.0
  %1947 = vmatprep.subr.mxu0 0.0
  %1948 = vmatpush1.msra.mxu0 0.0
  %1949 = vmatprep.subr.mxu0 0.0
  %1950 = vmatpush1.msra.mxu0 0.0
  %1951 = vmatprep.subr.mxu0 0.0
  %1952 = vmatpush1.msra.mxu0 0.0
  %1953 = vmatprep.subr.mxu0 0.0
  %1954 = vmatpush1.msra.mxu0 0.0
  %1955 = vmatprep.subr.mxu0 0.0
  %1956 = vmatpush1.msra.mxu0 0.0
  %1957 = vmatprep.subr.mxu0 0.0
  %1958 = vmatpush1.msra.mxu0 0.0
  %1959 = vmatprep.mubr.f32.mxu0 0.0
  %v1960 = vand.u32 %v1554, 4294901760
  %1961 = vmatmul.mubr.f32.gmra.mrb[0].mxu0 %v1960
  %v1962 = vpop.f32.mrb[0].mxu0
  %v1963 = vadd.f32 %v1880, %v1962
  %v1964 = vpop.f32.mrb[0].mxu0
  %1965 = vdwg.mxu0
  %1966 = vmatprep.subr.mxu0 0.0
  %v1967 = vand.u32 %v11, 4294901760
  %1968 = vmatpush1.msra.mxu0 %v1967
  %1969 = vmatprep.subr.mxu0 0.0
  %v1970 = vand.u32 %v12, 4294901760
  %1971 = vmatpush1.msra.mxu0 %v1970
  %1972 = vmatprep.subr.mxu0 0.0
  %v1973 = vand.u32 %v13, 4294901760
  %1974 = vmatpush1.msra.mxu0 %v1973
  %1975 = vmatprep.subr.mxu0 0.0
  %v1976 = vand.u32 %v14, 4294901760
  %1977 = vmatpush1.msra.mxu0 %v1976
  %1978 = vmatprep.subr.mxu0 0.0
  %1979 = vmatpush1.msra.mxu0 0.0
  %1980 = vmatprep.subr.mxu0 0.0
  %1981 = vmatpush1.msra.mxu0 0.0
  %1982 = vmatprep.subr.mxu0 0.0
  %1983 = vmatpush1.msra.mxu0 0.0
  %1984 = vmatprep.subr.mxu0 0.0
  %1985 = vmatpush1.msra.mxu0 0.0
  %1986 = vmatprep.subr.mxu0 0.0
  %1987 = vmatpush1.msra.mxu0 0.0
  %1988 = vmatprep.subr.mxu0 0.0
  %1989 = vmatpush1.msra.mxu0 0.0
  %1990 = vmatprep.subr.mxu0 0.0
  %1991 = vmatpush1.msra.mxu0 0.0
  %1992 = vmatprep.subr.mxu0 0.0
  %1993 = vmatpush1.msra.mxu0 0.0
  %1994 = vmatprep.subr.mxu0 0.0
  %1995 = vmatpush1.msra.mxu0 0.0
  %1996 = vmatprep.subr.mxu0 0.0
  %1997 = vmatpush1.msra.mxu0 0.0
  %1998 = vmatprep.subr.mxu0 0.0
  %1999 = vmatpush1.msra.mxu0 0.0
  %2000 = vmatprep.subr.mxu0 0.0
  %2001 = vmatpush1.msra.mxu0 0.0
  %2002 = vmatprep.subr.mxu0 0.0
  %2003 = vmatpush1.msra.mxu0 0.0
  %2004 = vmatprep.subr.mxu0 0.0
  %2005 = vmatpush1.msra.mxu0 0.0
  %2006 = vmatprep.subr.mxu0 0.0
  %2007 = vmatpush1.msra.mxu0 0.0
  %2008 = vmatprep.subr.mxu0 0.0
  %2009 = vmatpush1.msra.mxu0 0.0
  %2010 = vmatprep.subr.mxu0 0.0
  %2011 = vmatpush1.msra.mxu0 0.0
  %2012 = vmatprep.subr.mxu0 0.0
  %2013 = vmatpush1.msra.mxu0 0.0
  %2014 = vmatprep.subr.mxu0 0.0
  %2015 = vmatpush1.msra.mxu0 0.0
  %2016 = vmatprep.subr.mxu0 0.0
  %2017 = vmatpush1.msra.mxu0 0.0
  %2018 = vmatprep.subr.mxu0 0.0
  %2019 = vmatpush1.msra.mxu0 0.0
  %2020 = vmatprep.subr.mxu0 0.0
  %2021 = vmatpush1.msra.mxu0 0.0
  %2022 = vmatprep.subr.mxu0 0.0
  %2023 = vmatpush1.msra.mxu0 0.0
  %2024 = vmatprep.subr.mxu0 0.0
  %2025 = vmatpush1.msra.mxu0 0.0
  %2026 = vmatprep.subr.mxu0 0.0
  %2027 = vmatpush1.msra.mxu0 0.0
  %2028 = vmatprep.subr.mxu0 0.0
  %2029 = vmatpush1.msra.mxu0 0.0
  %2030 = vmatprep.subr.mxu0 0.0
  %2031 = vmatpush1.msra.mxu0 0.0
  %2032 = vmatprep.subr.mxu0 0.0
  %2033 = vmatpush1.msra.mxu0 0.0
  %2034 = vmatprep.mubr.f32.mxu0 0.0
  %v2035 = vand.u32 %v1554, 4294901760
  %2036 = vmatmul.mubr.f32.gmra.mrb[0].mxu0 %v2035
  %v2037 = vpop.f32.mrb[0].mxu0
  %v2038 = vadd.f32 %v1963, %v2037
  %v2039 = vpop.f32.mrb[0].mxu0
  %2040 = vdwg.mxu0
  %v2041 = vadd.f32 %v1550, %v2038
  %v2042 = vtanh.pop %v2041
  %v2043 = vmul.f32 %v2042, 0.5
  %v2044 = vadd.f32 %v2043, 0.5
  %v2045 = vmul.f32 %v2044, %v1543
  %2047 = vrot.lane.b32.xlu0 %v2042, 64
  %v2048 = vpop.permute.xlu0 %2047
  %v2050 = vmul.f32 %v2044, %v2048
  %2052 = vrot.lane.b32.xlu0 %v2050, 32
  %v2053 = vpop.permute.xlu0 %2052
  %v2055 = vadd.f32 %v2045, %v2053
  %v2056 = vtanh.pop %v2055
  %2058 = vrot.lane.b32.xlu0 %v2056, 64
  %v2059 = vpop.permute.xlu0 %2058
  %v2061 = vmul.f32 %v2044, %v2059
  %v2062 = vld [vmem:[%s0 + $0x20] sm:$0xff]
  %2064 = vrot.lane.b32.xlu0 %v2061, 32
  %v2065 = vpop.permute.xlu0 %2064
  %v2066 = vsel %vm16, %v2065, 0
  %2068 = vmatprep.subr.mxu0 0.0
  %v2069 = vand.u32 %v11, 4294901760
  %2070 = vmatpush1.msra.mxu0 %v2069
  %2071 = vmatprep.subr.mxu0 0.0
  %v2072 = vand.u32 %v12, 4294901760
  %2073 = vmatpush1.msra.mxu0 %v2072
  %2074 = vmatprep.subr.mxu0 0.0
  %v2075 = vand.u32 %v13, 4294901760
  %2076 = vmatpush1.msra.mxu0 %v2075
  %2077 = vmatprep.subr.mxu0 0.0
  %v2078 = vand.u32 %v14, 4294901760
  %2079 = vmatpush1.msra.mxu0 %v2078
  %2080 = vmatprep.subr.mxu0 0.0
  %2081 = vmatpush1.msra.mxu0 0.0
  %2082 = vmatprep.subr.mxu0 0.0
  %2083 = vmatpush1.msra.mxu0 0.0
  %2084 = vmatprep.subr.mxu0 0.0
  %2085 = vmatpush1.msra.mxu0 0.0
  %2086 = vmatprep.subr.mxu0 0.0
  %2087 = vmatpush1.msra.mxu0 0.0
  %2088 = vmatprep.subr.mxu0 0.0
  %2089 = vmatpush1.msra.mxu0 0.0
  %2090 = vmatprep.subr.mxu0 0.0
  %2091 = vmatpush1.msra.mxu0 0.0
  %2092 = vmatprep.subr.mxu0 0.0
  %2093 = vmatpush1.msra.mxu0 0.0
  %2094 = vmatprep.subr.mxu0 0.0
  %2095 = vmatpush1.msra.mxu0 0.0
  %2096 = vmatprep.subr.mxu0 0.0
  %2097 = vmatpush1.msra.mxu0 0.0
  %2098 = vmatprep.subr.mxu0 0.0
  %2099 = vmatpush1.msra.mxu0 0.0
  %2100 = vmatprep.subr.mxu0 0.0
  %2101 = vmatpush1.msra.mxu0 0.0
  %2102 = vmatprep.subr.mxu0 0.0
  %2103 = vmatpush1.msra.mxu0 0.0
  %2104 = vmatprep.subr.mxu0 0.0
  %2105 = vmatpush1.msra.mxu0 0.0
  %2106 = vmatprep.subr.mxu0 0.0
  %2107 = vmatpush1.msra.mxu0 0.0
  %2108 = vmatprep.subr.mxu0 0.0
  %2109 = vmatpush1.msra.mxu0 0.0
  %2110 = vmatprep.subr.mxu0 0.0
  %2111 = vmatpush1.msra.mxu0 0.0
  %2112 = vmatprep.subr.mxu0 0.0
  %2113 = vmatpush1.msra.mxu0 0.0
  %2114 = vmatprep.subr.mxu0 0.0
  %2115 = vmatpush1.msra.mxu0 0.0
  %2116 = vmatprep.subr.mxu0 0.0
  %2117 = vmatpush1.msra.mxu0 0.0
  %2118 = vmatprep.subr.mxu0 0.0
  %2119 = vmatpush1.msra.mxu0 0.0
  %2120 = vmatprep.subr.mxu0 0.0
  %2121 = vmatpush1.msra.mxu0 0.0
  %2122 = vmatprep.subr.mxu0 0.0
  %2123 = vmatpush1.msra.mxu0 0.0
  %2124 = vmatprep.subr.mxu0 0.0
  %2125 = vmatpush1.msra.mxu0 0.0
  %2126 = vmatprep.subr.mxu0 0.0
  %2127 = vmatpush1.msra.mxu0 0.0
  %2128 = vmatprep.subr.mxu0 0.0
  %2129 = vmatpush1.msra.mxu0 0.0
  %2130 = vmatprep.subr.mxu0 0.0
  %2131 = vmatpush1.msra.mxu0 0.0
  %2132 = vmatprep.subr.mxu0 0.0
  %2133 = vmatpush1.msra.mxu0 0.0
  %2134 = vmatprep.subr.mxu0 0.0
  %2135 = vmatpush1.msra.mxu0 0.0
  %2136 = vmatprep.mubr.f32.mxu0 0.0
  %v2137 = vand.u32 %v2066, 4294901760
  %v2138 = vsub.f32 %v2066, %v2137
  %v2139 = vand.u32 %v2138, 4294901760
  %v2140 = vsub.f32 %v2138, %v2139
  %v2141 = vand.u32 %v2140, 4294901760
  %2142 = vmatmul.mubr.f32.gmra.mrb[0].mxu0 %v2141
  %v2143 = vpop.f32.mrb[0].mxu0
  %v2144 = vadd.f32 0.0, %v2143
  %v2145 = vpop.f32.mrb[0].mxu0
  %2146 = vdwg.mxu0
  %2147 = vmatprep.subr.mxu0 0.0
  %v2148 = vand.u32 %v11, 4294901760
  %v2149 = vsub.f32 %v11, %v2148
  %v2150 = vand.u32 %v2149, 4294901760
  %v2151 = vsub.f32 %v2149, %v2150
  %v2152 = vand.u32 %v2151, 4294901760
  %2153 = vmatpush1.msra.mxu0 %v2152
  %2154 = vmatprep.subr.mxu0 0.0
  %v2155 = vand.u32 %v12, 4294901760
  %v2156 = vsub.f32 %v12, %v2155
  %v2157 = vand.u32 %v2156, 4294901760
  %v2158 = vsub.f32 %v2156, %v2157
  %v2159 = vand.u32 %v2158, 4294901760
  %2160 = vmatpush1.msra.mxu0 %v2159
  %2161 = vmatprep.subr.mxu0 0.0
  %v2162 = vand.u32 %v13, 4294901760
  %v2163 = vsub.f32 %v13, %v2162
  %v2164 = vand.u32 %v2163, 4294901760
  %v2165 = vsub.f32 %v2163, %v2164
  %v2166 = vand.u32 %v2165, 4294901760
  %2167 = vmatpush1.msra.mxu0 %v2166
  %2168 = vmatprep.subr.mxu0 0.0
  %v2169 = vand.u32 %v14, 4294901760
  %v2170 = vsub.f32 %v14, %v2169
  %v2171 = vand.u32 %v2170, 4294901760
  %v2172 = vsub.f32 %v2170, %v2171
  %v2173 = vand.u32 %v2172, 4294901760
  %2174 = vmatpush1.msra.mxu0 %v2173
  %2175 = vmatprep.subr.mxu0 0.0
  %2176 = vmatpush1.msra.mxu0 0.0
  %2177 = vmatprep.subr.mxu0 0.0
  %2178 = vmatpush1.msra.mxu0 0.0
  %2179 = vmatprep.subr.mxu0 0.0
  %2180 = vmatpush1.msra.mxu0 0.0
  %2181 = vmatprep.subr.mxu0 0.0
  %2182 = vmatpush1.msra.mxu0 0.0
  %2183 = vmatprep.subr.mxu0 0.0
  %2184 = vmatpush1.msra.mxu0 0.0
  %2185 = vmatprep.subr.mxu0 0.0
  %2186 = vmatpush1.msra.mxu0 0.0
  %2187 = vmatprep.subr.mxu0 0.0
  %2188 = vmatpush1.msra.mxu0 0.0
  %2189 = vmatprep.subr.mxu0 0.0
  %2190 = vmatpush1.msra.mxu0 0.0
  %2191 = vmatprep.subr.mxu0 0.0
  %2192 = vmatpush1.msra.mxu0 0.0
  %2193 = vmatprep.subr.mxu0 0.0
  %2194 = vmatpush1.msra.mxu0 0.0
  %2195 = vmatprep.subr.mxu0 0.0
  %2196 = vmatpush1.msra.mxu0 0.0
  %2197 = vmatprep.subr.mxu0 0.0
  %2198 = vmatpush1.msra.mxu0 0.0
  %2199 = vmatprep.subr.mxu0 0.0
  %2200 = vmatpush1.msra.mxu0 0.0
  %2201 = vmatprep.subr.mxu0 0.0
  %2202 = vmatpush1.msra.mxu0 0.0
  %2203 = vmatprep.subr.mxu0 0.0
  %2204 = vmatpush1.msra.mxu0 0.0
  %2205 = vmatprep.subr.mxu0 0.0
  %2206 = vmatpush1.msra.mxu0 0.0
  %2207 = vmatprep.subr.mxu0 0.0
  %2208 = vmatpush1.msra.mxu0 0.0
  %2209 = vmatprep.subr.mxu0 0.0
  %2210 = vmatpush1.msra.mxu0 0.0
  %2211 = vmatprep.subr.mxu0 0.0
  %2212 = vmatpush1.msra.mxu0 0.0
  %2213 = vmatprep.subr.mxu0 0.0
  %2214 = vmatpush1.msra.mxu0 0.0
  %2215 = vmatprep.subr.mxu0 0.0
  %2216 = vmatpush1.msra.mxu0 0.0
  %2217 = vmatprep.subr.mxu0 0.0
  %2218 = vmatpush1.msra.mxu0 0.0
  %2219 = vmatprep.subr.mxu0 0.0
  %2220 = vmatpush1.msra.mxu0 0.0
  %2221 = vmatprep.subr.mxu0 0.0
  %2222 = vmatpush1.msra.mxu0 0.0
  %2223 = vmatprep.subr.mxu0 0.0
  %2224 = vmatpush1.msra.mxu0 0.0
  %2225 = vmatprep.subr.mxu0 0.0
  %2226 = vmatpush1.msra.mxu0 0.0
  %2227 = vmatprep.subr.mxu0 0.0
  %2228 = vmatpush1.msra.mxu0 0.0
  %2229 = vmatprep.subr.mxu0 0.0
  %2230 = vmatpush1.msra.mxu0 0.0
  %2231 = vmatprep.mubr.f32.mxu0 0.0
  %v2232 = vand.u32 %v2066, 4294901760
  %2233 = vmatmul.mubr.f32.gmra.mrb[0].mxu0 %v2232
  %v2234 = vpop.f32.mrb[0].mxu0
  %v2235 = vadd.f32 %v2144, %v2234
  %v2236 = vpop.f32.mrb[0].mxu0
  %2237 = vdwg.mxu0
  %2238 = vmatprep.subr.mxu0 0.0
  %v2239 = vand.u32 %v11, 4294901760
  %v2240 = vsub.f32 %v11, %v2239
  %2241 = vmatpush1.msra.mxu0 %v2240
  %2242 = vmatprep.subr.mxu0 0.0
  %v2243 = vand.u32 %v12, 4294901760
  %v2244 = vsub.f32 %v12, %v2243
  %2245 = vmatpush1.msra.mxu0 %v2244
  %2246 = vmatprep.subr.mxu0 0.0
  %v2247 = vand.u32 %v13, 4294901760
  %v2248 = vsub.f32 %v13, %v2247
  %2249 = vmatpush1.msra.mxu0 %v2248
  %2250 = vmatprep.subr.mxu0 0.0
  %v2251 = vand.u32 %v14, 4294901760
  %v2252 = vsub.f32 %v14, %v2251
  %2253 = vmatpush1.msra.mxu0 %v2252
  %2254 = vmatprep.subr.mxu0 0.0
  %2255 = vmatpush1.msra.mxu0 0.0
  %2256 = vmatprep.subr.mxu0 0.0
  %2257 = vmatpush1.msra.mxu0 0.0
  %2258 = vmatprep.subr.mxu0 0.0
  %2259 = vmatpush1.msra.mxu0 0.0
  %2260 = vmatprep.subr.mxu0 0.0
  %2261 = vmatpush1.msra.mxu0 0.0
  %2262 = vmatprep.subr.mxu0 0.0
  %2263 = vmatpush1.msra.mxu0 0.0
  %2264 = vmatprep.subr.mxu0 0.0
  %2265 = vmatpush1.msra.mxu0 0.0
  %2266 = vmatprep.subr.mxu0 0.0
  %2267 = vmatpush1.msra.mxu0 0.0
  %2268 = vmatprep.subr.mxu0 0.0
  %2269 = vmatpush1.msra.mxu0 0.0
  %2270 = vmatprep.subr.mxu0 0.0
  %2271 = vmatpush1.msra.mxu0 0.0
  %2272 = vmatprep.subr.mxu0 0.0
  %2273 = vmatpush1.msra.mxu0 0.0
  %2274 = vmatprep.subr.mxu0 0.0
  %2275 = vmatpush1.msra.mxu0 0.0
  %2276 = vmatprep.subr.mxu0 0.0
  %2277 = vmatpush1.msra.mxu0 0.0
  %2278 = vmatprep.subr.mxu0 0.0
  %2279 = vmatpush1.msra.mxu0 0.0
  %2280 = vmatprep.subr.mxu0 0.0
  %2281 = vmatpush1.msra.mxu0 0.0
  %2282 = vmatprep.subr.mxu0 0.0
  %2283 = vmatpush1.msra.mxu0 0.0
  %2284 = vmatprep.subr.mxu0 0.0
  %2285 = vmatpush1.msra.mxu0 0.0
  %2286 = vmatprep.subr.mxu0 0.0
  %2287 = vmatpush1.msra.mxu0 0.0
  %2288 = vmatprep.subr.mxu0 0.0
  %2289 = vmatpush1.msra.mxu0 0.0
  %2290 = vmatprep.subr.mxu0 0.0
  %2291 = vmatpush1.msra.mxu0 0.0
  %2292 = vmatprep.subr.mxu0 0.0
  %2293 = vmatpush1.msra.mxu0 0.0
  %2294 = vmatprep.subr.mxu0 0.0
  %2295 = vmatpush1.msra.mxu0 0.0
  %2296 = vmatprep.subr.mxu0 0.0
  %2297 = vmatpush1.msra.mxu0 0.0
  %2298 = vmatprep.subr.mxu0 0.0
  %2299 = vmatpush1.msra.mxu0 0.0
  %2300 = vmatprep.subr.mxu0 0.0
  %2301 = vmatpush1.msra.mxu0 0.0
  %2302 = vmatprep.subr.mxu0 0.0
  %2303 = vmatpush1.msra.mxu0 0.0
  %2304 = vmatprep.subr.mxu0 0.0
  %2305 = vmatpush1.msra.mxu0 0.0
  %2306 = vmatprep.subr.mxu0 0.0
  %2307 = vmatpush1.msra.mxu0 0.0
  %2308 = vmatprep.subr.mxu0 0.0
  %2309 = vmatpush1.msra.mxu0 0.0
  %2310 = vmatprep.mubr.f32.mxu0 0.0
  %v2311 = vand.u32 %v2066, 4294901760
  %v2312 = vsub.f32 %v2066, %v2311
  %2313 = vmatmul.mubr.f32.gmra.mrb[0].mxu0 %v2312
  %v2314 = vpop.f32.mrb[0].mxu0
  %v2315 = vadd.f32 %v2235, %v2314
  %v2316 = vpop.f32.mrb[0].mxu0
  %2317 = vdwg.mxu0
  %2318 = vmatprep.subr.mxu0 0.0
  %v2319 = vand.u32 %v11, 4294901760
  %2320 = vmatpush1.msra.mxu0 %v2319
  %2321 = vmatprep.subr.mxu0 0.0
  %v2322 = vand.u32 %v12, 4294901760
  %2323 = vmatpush1.msra.mxu0 %v2322
  %2324 = vmatprep.subr.mxu0 0.0
  %v2325 = vand.u32 %v13, 4294901760
  %2326 = vmatpush1.msra.mxu0 %v2325
  %2327 = vmatprep.subr.mxu0 0.0
  %v2328 = vand.u32 %v14, 4294901760
  %2329 = vmatpush1.msra.mxu0 %v2328
  %2330 = vmatprep.subr.mxu0 0.0
  %2331 = vmatpush1.msra.mxu0 0.0
  %2332 = vmatprep.subr.mxu0 0.0
  %2333 = vmatpush1.msra.mxu0 0.0
  %2334 = vmatprep.subr.mxu0 0.0
  %2335 = vmatpush1.msra.mxu0 0.0
  %2336 = vmatprep.subr.mxu0 0.0
  %2337 = vmatpush1.msra.mxu0 0.0
  %2338 = vmatprep.subr.mxu0 0.0
  %2339 = vmatpush1.msra.mxu0 0.0
  %2340 = vmatprep.subr.mxu0 0.0
  %2341 = vmatpush1.msra.mxu0 0.0
  %2342 = vmatprep.subr.mxu0 0.0
  %2343 = vmatpush1.msra.mxu0 0.0
  %2344 = vmatprep.subr.mxu0 0.0
  %2345 = vmatpush1.msra.mxu0 0.0
  %2346 = vmatprep.subr.mxu0 0.0
  %2347 = vmatpush1.msra.mxu0 0.0
  %2348 = vmatprep.subr.mxu0 0.0
  %2349 = vmatpush1.msra.mxu0 0.0
  %2350 = vmatprep.subr.mxu0 0.0
  %2351 = vmatpush1.msra.mxu0 0.0
  %2352 = vmatprep.subr.mxu0 0.0
  %2353 = vmatpush1.msra.mxu0 0.0
  %2354 = vmatprep.subr.mxu0 0.0
  %2355 = vmatpush1.msra.mxu0 0.0
  %2356 = vmatprep.subr.mxu0 0.0
  %2357 = vmatpush1.msra.mxu0 0.0
  %2358 = vmatprep.subr.mxu0 0.0
  %2359 = vmatpush1.msra.mxu0 0.0
  %2360 = vmatprep.subr.mxu0 0.0
  %2361 = vmatpush1.msra.mxu0 0.0
  %2362 = vmatprep.subr.mxu0 0.0
  %2363 = vmatpush1.msra.mxu0 0.0
  %2364 = vmatprep.subr.mxu0 0.0
  %2365 = vmatpush1.msra.mxu0 0.0
  %2366 = vmatprep.subr.mxu0 0.0
  %2367 = vmatpush1.msra.mxu0 0.0
  %2368 = vmatprep.subr.mxu0 0.0
  %2369 = vmatpush1.msra.mxu0 0.0
  %2370 = vmatprep.subr.mxu0 0.0
  %2371 = vmatpush1.msra.mxu0 0.0
  %2372 = vmatprep.subr.mxu0 0.0
  %2373 = vmatpush1.msra.mxu0 0.0
  %2374 = vmatprep.subr.mxu0 0.0
  %2375 = vmatpush1.msra.mxu0 0.0
  %2376 = vmatprep.subr.mxu0 0.0
  %2377 = vmatpush1.msra.mxu0 0.0
  %2378 = vmatprep.subr.mxu0 0.0
  %2379 = vmatpush1.msra.mxu0 0.0
  %2380 = vmatprep.subr.mxu0 0.0
  %2381 = vmatpush1.msra.mxu0 0.0
  %2382 = vmatprep.subr.mxu0 0.0
  %2383 = vmatpush1.msra.mxu0 0.0
  %2384 = vmatprep.subr.mxu0 0.0
  %2385 = vmatpush1.msra.mxu0 0.0
  %2386 = vmatprep.mubr.f32.mxu0 0.0
  %v2387 = vand.u32 %v2066, 4294901760
  %v2388 = vsub.f32 %v2066, %v2387
  %v2389 = vand.u32 %v2388, 4294901760
  %2390 = vmatmul.mubr.f32.gmra.mrb[0].mxu0 %v2389
  %v2391 = vpop.f32.mrb[0].mxu0
  %v2392 = vadd.f32 %v2315, %v2391
  %v2393 = vpop.f32.mrb[0].mxu0
  %2394 = vdwg.mxu0
  %2395 = vmatprep.subr.mxu0 0.0
  %v2396 = vand.u32 %v11, 4294901760
  %v2397 = vsub.f32 %v11, %v2396
  %v2398 = vand.u32 %v2397, 4294901760
  %2399 = vmatpush1.msra.mxu0 %v2398
  %2400 = vmatprep.subr.mxu0 0.0
  %v2401 = vand.u32 %v12, 4294901760
  %v2402 = vsub.f32 %v12, %v2401
  %v2403 = vand.u32 %v2402, 4294901760
  %2404 = vmatpush1.msra.mxu0 %v2403
  %2405 = vmatprep.subr.mxu0 0.0
  %v2406 = vand.u32 %v13, 4294901760
  %v2407 = vsub.f32 %v13, %v2406
  %v2408 = vand.u32 %v2407, 4294901760
  %2409 = vmatpush1.msra.mxu0 %v2408
  %2410 = vmatprep.subr.mxu0 0.0
  %v2411 = vand.u32 %v14, 4294901760
  %v2412 = vsub.f32 %v14, %v2411
  %v2413 = vand.u32 %v2412, 4294901760
  %2414 = vmatpush1.msra.mxu0 %v2413
  %2415 = vmatprep.subr.mxu0 0.0
  %2416 = vmatpush1.msra.mxu0 0.0
  %2417 = vmatprep.subr.mxu0 0.0
  %2418 = vmatpush1.msra.mxu0 0.0
  %2419 = vmatprep.subr.mxu0 0.0
  %2420 = vmatpush1.msra.mxu0 0.0
  %2421 = vmatprep.subr.mxu0 0.0
  %2422 = vmatpush1.msra.mxu0 0.0
  %2423 = vmatprep.subr.mxu0 0.0
  %2424 = vmatpush1.msra.mxu0 0.0
  %2425 = vmatprep.subr.mxu0 0.0
  %2426 = vmatpush1.msra.mxu0 0.0
  %2427 = vmatprep.subr.mxu0 0.0
  %2428 = vmatpush1.msra.mxu0 0.0
  %2429 = vmatprep.subr.mxu0 0.0
  %2430 = vmatpush1.msra.mxu0 0.0
  %2431 = vmatprep.subr.mxu0 0.0
  %2432 = vmatpush1.msra.mxu0 0.0
  %2433 = vmatprep.subr.mxu0 0.0
  %2434 = vmatpush1.msra.mxu0 0.0
  %2435 = vmatprep.subr.mxu0 0.0
  %2436 = vmatpush1.msra.mxu0 0.0
  %2437 = vmatprep.subr.mxu0 0.0
  %2438 = vmatpush1.msra.mxu0 0.0
  %2439 = vmatprep.subr.mxu0 0.0
  %2440 = vmatpush1.msra.mxu0 0.0
  %2441 = vmatprep.subr.mxu0 0.0
  %2442 = vmatpush1.msra.mxu0 0.0
  %2443 = vmatprep.subr.mxu0 0.0
  %2444 = vmatpush1.msra.mxu0 0.0
  %2445 = vmatprep.subr.mxu0 0.0
  %2446 = vmatpush1.msra.mxu0 0.0
  %2447 = vmatprep.subr.mxu0 0.0
  %2448 = vmatpush1.msra.mxu0 0.0
  %2449 = vmatprep.subr.mxu0 0.0
  %2450 = vmatpush1.msra.mxu0 0.0
  %2451 = vmatprep.subr.mxu0 0.0
  %2452 = vmatpush1.msra.mxu0 0.0
  %2453 = vmatprep.subr.mxu0 0.0
  %2454 = vmatpush1.msra.mxu0 0.0
  %2455 = vmatprep.subr.mxu0 0.0
  %2456 = vmatpush1.msra.mxu0 0.0
  %2457 = vmatprep.subr.mxu0 0.0
  %2458 = vmatpush1.msra.mxu0 0.0
  %2459 = vmatprep.subr.mxu0 0.0
  %2460 = vmatpush1.msra.mxu0 0.0
  %2461 = vmatprep.subr.mxu0 0.0
  %2462 = vmatpush1.msra.mxu0 0.0
  %2463 = vmatprep.subr.mxu0 0.0
  %2464 = vmatpush1.msra.mxu0 0.0
  %2465 = vmatprep.subr.mxu0 0.0
  %2466 = vmatpush1.msra.mxu0 0.0
  %2467 = vmatprep.subr.mxu0 0.0
  %2468 = vmatpush1.msra.mxu0 0.0
  %2469 = vmatprep.subr.mxu0 0.0
  %2470 = vmatpush1.msra.mxu0 0.0
  %2471 = vmatprep.mubr.f32.mxu0 0.0
  %v2472 = vand.u32 %v2066, 4294901760
  %2473 = vmatmul.mubr.f32.gmra.mrb[0].mxu0 %v2472
  %v2474 = vpop.f32.mrb[0].mxu0
  %v2475 = vadd.f32 %v2392, %v2474
  %v2476 = vpop.f32.mrb[0].mxu0
  %2477 = vdwg.mxu0
  %2478 = vmatprep.subr.mxu0 0.0
  %v2479 = vand.u32 %v11, 4294901760
  %2480 = vmatpush1.msra.mxu0 %v2479
  %2481 = vmatprep.subr.mxu0 0.0
  %v2482 = vand.u32 %v12, 4294901760
  %2483 = vmatpush1.msra.mxu0 %v2482
  %2484 = vmatprep.subr.mxu0 0.0
  %v2485 = vand.u32 %v13, 4294901760
  %2486 = vmatpush1.msra.mxu0 %v2485
  %2487 = vmatprep.subr.mxu0 0.0
  %v2488 = vand.u32 %v14, 4294901760
  %2489 = vmatpush1.msra.mxu0 %v2488
  %2490 = vmatprep.subr.mxu0 0.0
  %2491 = vmatpush1.msra.mxu0 0.0
  %2492 = vmatprep.subr.mxu0 0.0
  %2493 = vmatpush1.msra.mxu0 0.0
  %2494 = vmatprep.subr.mxu0 0.0
  %2495 = vmatpush1.msra.mxu0 0.0
  %2496 = vmatprep.subr.mxu0 0.0
  %2497 = vmatpush1.msra.mxu0 0.0
  %2498 = vmatprep.subr.mxu0 0.0
  %2499 = vmatpush1.msra.mxu0 0.0
  %2500 = vmatprep.subr.mxu0 0.0
  %2501 = vmatpush1.msra.mxu0 0.0
  %2502 = vmatprep.subr.mxu0 0.0
  %2503 = vmatpush1.msra.mxu0 0.0
  %2504 = vmatprep.subr.mxu0 0.0
  %2505 = vmatpush1.msra.mxu0 0.0
  %2506 = vmatprep.subr.mxu0 0.0
  %2507 = vmatpush1.msra.mxu0 0.0
  %2508 = vmatprep.subr.mxu0 0.0
  %2509 = vmatpush1.msra.mxu0 0.0
  %2510 = vmatprep.subr.mxu0 0.0
  %2511 = vmatpush1.msra.mxu0 0.0
  %2512 = vmatprep.subr.mxu0 0.0
  %2513 = vmatpush1.msra.mxu0 0.0
  %2514 = vmatprep.subr.mxu0 0.0
  %2515 = vmatpush1.msra.mxu0 0.0
  %2516 = vmatprep.subr.mxu0 0.0
  %2517 = vmatpush1.msra.mxu0 0.0
  %2518 = vmatprep.subr.mxu0 0.0
  %2519 = vmatpush1.msra.mxu0 0.0
  %2520 = vmatprep.subr.mxu0 0.0
  %2521 = vmatpush1.msra.mxu0 0.0
  %2522 = vmatprep.subr.mxu0 0.0
  %2523 = vmatpush1.msra.mxu0 0.0
  %2524 = vmatprep.subr.mxu0 0.0
  %2525 = vmatpush1.msra.mxu0 0.0
  %2526 = vmatprep.subr.mxu0 0.0
  %2527 = vmatpush1.msra.mxu0 0.0
  %2528 = vmatprep.subr.mxu0 0.0
  %2529 = vmatpush1.msra.mxu0 0.0
  %2530 = vmatprep.subr.mxu0 0.0
  %2531 = vmatpush1.msra.mxu0 0.0
  %2532 = vmatprep.subr.mxu0 0.0
  %2533 = vmatpush1.msra.mxu0 0.0
  %2534 = vmatprep.subr.mxu0 0.0
  %2535 = vmatpush1.msra.mxu0 0.0
  %2536 = vmatprep.subr.mxu0 0.0
  %2537 = vmatpush1.msra.mxu0 0.0
  %2538 = vmatprep.subr.mxu0 0.0
  %2539 = vmatpush1.msra.mxu0 0.0
  %2540 = vmatprep.subr.mxu0 0.0
  %2541 = vmatpush1.msra.mxu0 0.0
  %2542 = vmatprep.subr.mxu0 0.0
  %2543 = vmatpush1.msra.mxu0 0.0
  %2544 = vmatprep.subr.mxu0 0.0
  %2545 = vmatpush1.msra.mxu0 0.0
  %2546 = vmatprep.mubr.f32.mxu0 0.0
  %v2547 = vand.u32 %v2066, 4294901760
  %2548 = vmatmul.mubr.f32.gmra.mrb[0].mxu0 %v2547
  %v2549 = vpop.f32.mrb[0].mxu0
  %v2550 = vadd.f32 %v2475, %v2549
  %v2551 = vpop.f32.mrb[0].mxu0
  %2552 = vdwg.mxu0
  %v2553 = vadd.f32 %v2062, %v2550
  %v2554 = vtanh.pop %v2553
  %v2555 = vmul.f32 %v2554, 0.5
  %v2556 = vadd.f32 %v2555, 0.5
  %v2557 = vmul.f32 %v2556, %v2055
  %2559 = vrot.lane.b32.xlu0 %v2554, 64
  %v2560 = vpop.permute.xlu0 %2559
  %v2562 = vmul.f32 %v2556, %v2560
  %2564 = vrot.lane.b32.xlu0 %v2562, 32
  %v2565 = vpop.permute.xlu0 %2564
  %v2567 = vadd.f32 %v2557, %v2565
  %v2568 = vtanh.pop %v2567
  %2570 = vrot.lane.b32.xlu0 %v2568, 64
  %v2571 = vpop.permute.xlu0 %2570
  %v2573 = vmul.f32 %v2556, %v2571
  %v2574 = vld [vmem:[%s0 + $0x28] sm:$0xff]
  %2576 = vrot.lane.b32.xlu0 %v2573, 32
  %v2577 = vpop.permute.xlu0 %2576
  %v2578 = vsel %vm16, %v2577, 0
  %2580 = vmatprep.subr.mxu0 0.0
  %v2581 = vand.u32 %v11, 4294901760
  %2582 = vmatpush1.msra.mxu0 %v2581
  %2583 = vmatprep.subr.mxu0 0.0
  %v2584 = vand.u32 %v12, 4294901760
  %2585 = vmatpush1.msra.mxu0 %v2584
  %2586 = vmatprep.subr.mxu0 0.0
  %v2587 = vand.u32 %v13, 4294901760
  %2588 = vmatpush1.msra.mxu0 %v2587
  %2589 = vmatprep.subr.mxu0 0.0
  %v2590 = vand.u32 %v14, 4294901760
  %2591 = vmatpush1.msra.mxu0 %v2590
  %2592 = vmatprep.subr.mxu0 0.0
  %2593 = vmatpush1.msra.mxu0 0.0
  %2594 = vmatprep.subr.mxu0 0.0
  %2595 = vmatpush1.msra.mxu0 0.0
  %2596 = vmatprep.subr.mxu0 0.0
  %2597 = vmatpush1.msra.mxu0 0.0
  %2598 = vmatprep.subr.mxu0 0.0
  %2599 = vmatpush1.msra.mxu0 0.0
  %2600 = vmatprep.subr.mxu0 0.0
  %2601 = vmatpush1.msra.mxu0 0.0
  %2602 = vmatprep.subr.mxu0 0.0
  %2603 = vmatpush1.msra.mxu0 0.0
  %2604 = vmatprep.subr.mxu0 0.0
  %2605 = vmatpush1.msra.mxu0 0.0
  %2606 = vmatprep.subr.mxu0 0.0
  %2607 = vmatpush1.msra.mxu0 0.0
  %2608 = vmatprep.subr.mxu0 0.0
  %2609 = vmatpush1.msra.mxu0 0.0
  %2610 = vmatprep.subr.mxu0 0.0
  %2611 = vmatpush1.msra.mxu0 0.0
  %2612 = vmatprep.subr.mxu0 0.0
  %2613 = vmatpush1.msra.mxu0 0.0
  %2614 = vmatprep.subr.mxu0 0.0
  %2615 = vmatpush1.msra.mxu0 0.0
  %2616 = vmatprep.subr.mxu0 0.0
  %2617 = vmatpush1.msra.mxu0 0.0
  %2618 = vmatprep.subr.mxu0 0.0
  %2619 = vmatpush1.msra.mxu0 0.0
  %2620 = vmatprep.subr.mxu0 0.0
  %2621 = vmatpush1.msra.mxu0 0.0
  %2622 = vmatprep.subr.mxu0 0.0
  %2623 = vmatpush1.msra.mxu0 0.0
  %2624 = vmatprep.subr.mxu0 0.0
  %2625 = vmatpush1.msra.mxu0 0.0
  %2626 = vmatprep.subr.mxu0 0.0
  %2627 = vmatpush1.msra.mxu0 0.0
  %2628 = vmatprep.subr.mxu0 0.0
  %2629 = vmatpush1.msra.mxu0 0.0
  %2630 = vmatprep.subr.mxu0 0.0
  %2631 = vmatpush1.msra.mxu0 0.0
  %2632 = vmatprep.subr.mxu0 0.0
  %2633 = vmatpush1.msra.mxu0 0.0
  %2634 = vmatprep.subr.mxu0 0.0
  %2635 = vmatpush1.msra.mxu0 0.0
  %2636 = vmatprep.subr.mxu0 0.0
  %2637 = vmatpush1.msra.mxu0 0.0
  %2638 = vmatprep.subr.mxu0 0.0
  %2639 = vmatpush1.msra.mxu0 0.0
  %2640 = vmatprep.subr.mxu0 0.0
  %2641 = vmatpush1.msra.mxu0 0.0
  %2642 = vmatprep.subr.mxu0 0.0
  %2643 = vmatpush1.msra.mxu0 0.0
  %2644 = vmatprep.subr.mxu0 0.0
  %2645 = vmatpush1.msra.mxu0 0.0
  %2646 = vmatprep.subr.mxu0 0.0
  %2647 = vmatpush1.msra.mxu0 0.0
  %2648 = vmatprep.mubr.f32.mxu0 0.0
  %v2649 = vand.u32 %v2578, 4294901760
  %v2650 = vsub.f32 %v2578, %v2649
  %v2651 = vand.u32 %v2650, 4294901760
  %v2652 = vsub.f32 %v2650, %v2651
  %v2653 = vand.u32 %v2652, 4294901760
  %2654 = vmatmul.mubr.f32.gmra.mrb[0].mxu0 %v2653
  %v2655 = vpop.f32.mrb[0].mxu0
  %v2656 = vadd.f32 0.0, %v2655
  %v2657 = vpop.f32.mrb[0].mxu0
  %2658 = vdwg.mxu0
  %2659 = vmatprep.subr.mxu0 0.0
  %v2660 = vand.u32 %v11, 4294901760
  %v2661 = vsub.f32 %v11, %v2660
  %v2662 = vand.u32 %v2661, 4294901760
  %v2663 = vsub.f32 %v2661, %v2662
  %v2664 = vand.u32 %v2663, 4294901760
  %2665 = vmatpush1.msra.mxu0 %v2664
  %2666 = vmatprep.subr.mxu0 0.0
  %v2667 = vand.u32 %v12, 4294901760
  %v2668 = vsub.f32 %v12, %v2667
  %v2669 = vand.u32 %v2668, 4294901760
  %v2670 = vsub.f32 %v2668, %v2669
  %v2671 = vand.u32 %v2670, 4294901760
  %2672 = vmatpush1.msra.mxu0 %v2671
  %2673 = vmatprep.subr.mxu0 0.0
  %v2674 = vand.u32 %v13, 4294901760
  %v2675 = vsub.f32 %v13, %v2674
  %v2676 = vand.u32 %v2675, 4294901760
  %v2677 = vsub.f32 %v2675, %v2676
  %v2678 = vand.u32 %v2677, 4294901760
  %2679 = vmatpush1.msra.mxu0 %v2678
  %2680 = vmatprep.subr.mxu0 0.0
  %v2681 = vand.u32 %v14, 4294901760
  %v2682 = vsub.f32 %v14, %v2681
  %v2683 = vand.u32 %v2682, 4294901760
  %v2684 = vsub.f32 %v2682, %v2683
  %v2685 = vand.u32 %v2684, 4294901760
  %2686 = vmatpush1.msra.mxu0 %v2685
  %2687 = vmatprep.subr.mxu0 0.0
  %2688 = vmatpush1.msra.mxu0 0.0
  %2689 = vmatprep.subr.mxu0 0.0
  %2690 = vmatpush1.msra.mxu0 0.0
  %2691 = vmatprep.subr.mxu0 0.0
  %2692 = vmatpush1.msra.mxu0 0.0
  %2693 = vmatprep.subr.mxu0 0.0
  %2694 = vmatpush1.msra.mxu0 0.0
  %2695 = vmatprep.subr.mxu0 0.0
  %2696 = vmatpush1.msra.mxu0 0.0
  %2697 = vmatprep.subr.mxu0 0.0
  %2698 = vmatpush1.msra.mxu0 0.0
  %2699 = vmatprep.subr.mxu0 0.0
  %2700 = vmatpush1.msra.mxu0 0.0
  %2701 = vmatprep.subr.mxu0 0.0
  %2702 = vmatpush1.msra.mxu0 0.0
  %2703 = vmatprep.subr.mxu0 0.0
  %2704 = vmatpush1.msra.mxu0 0.0
  %2705 = vmatprep.subr.mxu0 0.0
  %2706 = vmatpush1.msra.mxu0 0.0
  %2707 = vmatprep.subr.mxu0 0.0
  %2708 = vmatpush1.msra.mxu0 0.0
  %2709 = vmatprep.subr.mxu0 0.0
  %2710 = vmatpush1.msra.mxu0 0.0
  %2711 = vmatprep.subr.mxu0 0.0
  %2712 = vmatpush1.msra.mxu0 0.0
  %2713 = vmatprep.subr.mxu0 0.0
  %2714 = vmatpush1.msra.mxu0 0.0
  %2715 = vmatprep.subr.mxu0 0.0
  %2716 = vmatpush1.msra.mxu0 0.0
  %2717 = vmatprep.subr.mxu0 0.0
  %2718 = vmatpush1.msra.mxu0 0.0
  %2719 = vmatprep.subr.mxu0 0.0
  %2720 = vmatpush1.msra.mxu0 0.0
  %2721 = vmatprep.subr.mxu0 0.0
  %2722 = vmatpush1.msra.mxu0 0.0
  %2723 = vmatprep.subr.mxu0 0.0
  %2724 = vmatpush1.msra.mxu0 0.0
  %2725 = vmatprep.subr.mxu0 0.0
  %2726 = vmatpush1.msra.mxu0 0.0
  %2727 = vmatprep.subr.mxu0 0.0
  %2728 = vmatpush1.msra.mxu0 0.0
  %2729 = vmatprep.subr.mxu0 0.0
  %2730 = vmatpush1.msra.mxu0 0.0
  %2731 = vmatprep.subr.mxu0 0.0
  %2732 = vmatpush1.msra.mxu0 0.0
  %2733 = vmatprep.subr.mxu0 0.0
  %2734 = vmatpush1.msra.mxu0 0.0
  %2735 = vmatprep.subr.mxu0 0.0
  %2736 = vmatpush1.msra.mxu0 0.0
  %2737 = vmatprep.subr.mxu0 0.0
  %2738 = vmatpush1.msra.mxu0 0.0
  %2739 = vmatprep.subr.mxu0 0.0
  %2740 = vmatpush1.msra.mxu0 0.0
  %2741 = vmatprep.subr.mxu0 0.0
  %2742 = vmatpush1.msra.mxu0 0.0
  %2743 = vmatprep.mubr.f32.mxu0 0.0
  %v2744 = vand.u32 %v2578, 4294901760
  %2745 = vmatmul.mubr.f32.gmra.mrb[0].mxu0 %v2744
  %v2746 = vpop.f32.mrb[0].mxu0
  %v2747 = vadd.f32 %v2656, %v2746
  %v2748 = vpop.f32.mrb[0].mxu0
  %2749 = vdwg.mxu0
  %2750 = vmatprep.subr.mxu0 0.0
  %v2751 = vand.u32 %v11, 4294901760
  %v2752 = vsub.f32 %v11, %v2751
  %2753 = vmatpush1.msra.mxu0 %v2752
  %2754 = vmatprep.subr.mxu0 0.0
  %v2755 = vand.u32 %v12, 4294901760
  %v2756 = vsub.f32 %v12, %v2755
  %2757 = vmatpush1.msra.mxu0 %v2756
  %2758 = vmatprep.subr.mxu0 0.0
  %v2759 = vand.u32 %v13, 4294901760
  %v2760 = vsub.f32 %v13, %v2759
  %2761 = vmatpush1.msra.mxu0 %v2760
  %2762 = vmatprep.subr.mxu0 0.0
  %v2763 = vand.u32 %v14, 4294901760
  %v2764 = vsub.f32 %v14, %v2763
  %2765 = vmatpush1.msra.mxu0 %v2764
  %2766 = vmatprep.subr.mxu0 0.0
  %2767 = vmatpush1.msra.mxu0 0.0
  %2768 = vmatprep.subr.mxu0 0.0
  %2769 = vmatpush1.msra.mxu0 0.0
  %2770 = vmatprep.subr.mxu0 0.0
  %2771 = vmatpush1.msra.mxu0 0.0
  %2772 = vmatprep.subr.mxu0 0.0
  %2773 = vmatpush1.msra.mxu0 0.0
  %2774 = vmatprep.subr.mxu0 0.0
  %2775 = vmatpush1.msra.mxu0 0.0
  %2776 = vmatprep.subr.mxu0 0.0
  %2777 = vmatpush1.msra.mxu0 0.0
  %2778 = vmatprep.subr.mxu0 0.0
  %2779 = vmatpush1.msra.mxu0 0.0
  %2780 = vmatprep.subr.mxu0 0.0
  %2781 = vmatpush1.msra.mxu0 0.0
  %2782 = vmatprep.subr.mxu0 0.0
  %2783 = vmatpush1.msra.mxu0 0.0
  %2784 = vmatprep.subr.mxu0 0.0
  %2785 = vmatpush1.msra.mxu0 0.0
  %2786 = vmatprep.subr.mxu0 0.0
  %2787 = vmatpush1.msra.mxu0 0.0
  %2788 = vmatprep.subr.mxu0 0.0
  %2789 = vmatpush1.msra.mxu0 0.0
  %2790 = vmatprep.subr.mxu0 0.0
  %2791 = vmatpush1.msra.mxu0 0.0
  %2792 = vmatprep.subr.mxu0 0.0
  %2793 = vmatpush1.msra.mxu0 0.0
  %2794 = vmatprep.subr.mxu0 0.0
  %2795 = vmatpush1.msra.mxu0 0.0
  %2796 = vmatprep.subr.mxu0 0.0
  %2797 = vmatpush1.msra.mxu0 0.0
  %2798 = vmatprep.subr.mxu0 0.0
  %2799 = vmatpush1.msra.mxu0 0.0
  %2800 = vmatprep.subr.mxu0 0.0
  %2801 = vmatpush1.msra.mxu0 0.0
  %2802 = vmatprep.subr.mxu0 0.0
  %2803 = vmatpush1.msra.mxu0 0.0
  %2804 = vmatprep.subr.mxu0 0.0
  %2805 = vmatpush1.msra.mxu0 0.0
  %2806 = vmatprep.subr.mxu0 0.0
  %2807 = vmatpush1.msra.mxu0 0.0
  %2808 = vmatprep.subr.mxu0 0.0
  %2809 = vmatpush1.msra.mxu0 0.0
  %2810 = vmatprep.subr.mxu0 0.0
  %2811 = vmatpush1.msra.mxu0 0.0
  %2812 = vmatprep.subr.mxu0 0.0
  %2813 = vmatpush1.msra.mxu0 0.0
  %2814 = vmatprep.subr.mxu0 0.0
  %2815 = vmatpush1.msra.mxu0 0.0
  %2816 = vmatprep.subr.mxu0 0.0
  %2817 = vmatpush1.msra.mxu0 0.0
  %2818 = vmatprep.subr.mxu0 0.0
  %2819 = vmatpush1.msra.mxu0 0.0
  %2820 = vmatprep.subr.mxu0 0.0
  %2821 = vmatpush1.msra.mxu0 0.0
  %2822 = vmatprep.mubr.f32.mxu0 0.0
  %v2823 = vand.u32 %v2578, 4294901760
  %v2824 = vsub.f32 %v2578, %v2823
  %2825 = vmatmul.mubr.f32.gmra.mrb[0].mxu0 %v2824
  %v2826 = vpop.f32.mrb[0].mxu0
  %v2827 = vadd.f32 %v2747, %v2826
  %v2828 = vpop.f32.mrb[0].mxu0
  %2829 = vdwg.mxu0
  %2830 = vmatprep.subr.mxu0 0.0
  %v2831 = vand.u32 %v11, 4294901760
  %2832 = vmatpush1.msra.mxu0 %v2831
  %2833 = vmatprep.subr.mxu0 0.0
  %v2834 = vand.u32 %v12, 4294901760
  %2835 = vmatpush1.msra.mxu0 %v2834
  %2836 = vmatprep.subr.mxu0 0.0
  %v2837 = vand.u32 %v13, 4294901760
  %2838 = vmatpush1.msra.mxu0 %v2837
  %2839 = vmatprep.subr.mxu0 0.0
  %v2840 = vand.u32 %v14, 4294901760
  %2841 = vmatpush1.msra.mxu0 %v2840
  %2842 = vmatprep.subr.mxu0 0.0
  %2843 = vmatpush1.msra.mxu0 0.0
  %2844 = vmatprep.subr.mxu0 0.0
  %2845 = vmatpush1.msra.mxu0 0.0
  %2846 = vmatprep.subr.mxu0 0.0
  %2847 = vmatpush1.msra.mxu0 0.0
  %2848 = vmatprep.subr.mxu0 0.0
  %2849 = vmatpush1.msra.mxu0 0.0
  %2850 = vmatprep.subr.mxu0 0.0
  %2851 = vmatpush1.msra.mxu0 0.0
  %2852 = vmatprep.subr.mxu0 0.0
  %2853 = vmatpush1.msra.mxu0 0.0
  %2854 = vmatprep.subr.mxu0 0.0
  %2855 = vmatpush1.msra.mxu0 0.0
  %2856 = vmatprep.subr.mxu0 0.0
  %2857 = vmatpush1.msra.mxu0 0.0
  %2858 = vmatprep.subr.mxu0 0.0
  %2859 = vmatpush1.msra.mxu0 0.0
  %2860 = vmatprep.subr.mxu0 0.0
  %2861 = vmatpush1.msra.mxu0 0.0
  %2862 = vmatprep.subr.mxu0 0.0
  %2863 = vmatpush1.msra.mxu0 0.0
  %2864 = vmatprep.subr.mxu0 0.0
  %2865 = vmatpush1.msra.mxu0 0.0
  %2866 = vmatprep.subr.mxu0 0.0
  %2867 = vmatpush1.msra.mxu0 0.0
  %2868 = vmatprep.subr.mxu0 0.0
  %2869 = vmatpush1.msra.mxu0 0.0
  %2870 = vmatprep.subr.mxu0 0.0
  %2871 = vmatpush1.msra.mxu0 0.0
  %2872 = vmatprep.subr.mxu0 0.0
  %2873 = vmatpush1.msra.mxu0 0.0
  %2874 = vmatprep.subr.mxu0 0.0
  %2875 = vmatpush1.msra.mxu0 0.0
  %2876 = vmatprep.subr.mxu0 0.0
  %2877 = vmatpush1.msra.mxu0 0.0
  %2878 = vmatprep.subr.mxu0 0.0
  %2879 = vmatpush1.msra.mxu0 0.0
  %2880 = vmatprep.subr.mxu0 0.0
  %2881 = vmatpush1.msra.mxu0 0.0
  %2882 = vmatprep.subr.mxu0 0.0
  %2883 = vmatpush1.msra.mxu0 0.0
  %2884 = vmatprep.subr.mxu0 0.0
  %2885 = vmatpush1.msra.mxu0 0.0
  %2886 = vmatprep.subr.mxu0 0.0
  %2887 = vmatpush1.msra.mxu0 0.0
  %2888 = vmatprep.subr.mxu0 0.0
  %2889 = vmatpush1.msra.mxu0 0.0
  %2890 = vmatprep.subr.mxu0 0.0
  %2891 = vmatpush1.msra.mxu0 0.0
  %2892 = vmatprep.subr.mxu0 0.0
  %2893 = vmatpush1.msra.mxu0 0.0
  %2894 = vmatprep.subr.mxu0 0.0
  %2895 = vmatpush1.msra.mxu0 0.0
  %2896 = vmatprep.subr.mxu0 0.0
  %2897 = vmatpush1.msra.mxu0 0.0
  %2898 = vmatprep.mubr.f32.mxu0 0.0
  %v2899 = vand.u32 %v2578, 4294901760
  %v2900 = vsub.f32 %v2578, %v2899
  %v2901 = vand.u32 %v2900, 4294901760
  %2902 = vmatmul.mubr.f32.gmra.mrb[0].mxu0 %v2901
  %v2903 = vpop.f32.mrb[0].mxu0
  %v2904 = vadd.f32 %v2827, %v2903
  %v2905 = vpop.f32.mrb[0].mxu0
  %2906 = vdwg.mxu0
  %2907 = vmatprep.subr.mxu0 0.0
  %v2908 = vand.u32 %v11, 4294901760
  %v2909 = vsub.f32 %v11, %v2908
  %v2910 = vand.u32 %v2909, 4294901760
  %2911 = vmatpush1.msra.mxu0 %v2910
  %2912 = vmatprep.subr.mxu0 0.0
  %v2913 = vand.u32 %v12, 4294901760
  %v2914 = vsub.f32 %v12, %v2913
  %v2915 = vand.u32 %v2914, 4294901760
  %2916 = vmatpush1.msra.mxu0 %v2915
  %2917 = vmatprep.subr.mxu0 0.0
  %v2918 = vand.u32 %v13, 4294901760
  %v2919 = vsub.f32 %v13, %v2918
  %v2920 = vand.u32 %v2919, 4294901760
  %2921 = vmatpush1.msra.mxu0 %v2920
  %2922 = vmatprep.subr.mxu0 0.0
  %v2923 = vand.u32 %v14, 4294901760
  %v2924 = vsub.f32 %v14, %v2923
  %v2925 = vand.u32 %v2924, 4294901760
  %2926 = vmatpush1.msra.mxu0 %v2925
  %2927 = vmatprep.subr.mxu0 0.0
  %2928 = vmatpush1.msra.mxu0 0.0
  %2929 = vmatprep.subr.mxu0 0.0
  %2930 = vmatpush1.msra.mxu0 0.0
  %2931 = vmatprep.subr.mxu0 0.0
  %2932 = vmatpush1.msra.mxu0 0.0
  %2933 = vmatprep.subr.mxu0 0.0
  %2934 = vmatpush1.msra.mxu0 0.0
  %2935 = vmatprep.subr.mxu0 0.0
  %2936 = vmatpush1.msra.mxu0 0.0
  %2937 = vmatprep.subr.mxu0 0.0
  %2938 = vmatpush1.msra.mxu0 0.0
  %2939 = vmatprep.subr.mxu0 0.0
  %2940 = vmatpush1.msra.mxu0 0.0
  %2941 = vmatprep.subr.mxu0 0.0
  %2942 = vmatpush1.msra.mxu0 0.0
  %2943 = vmatprep.subr.mxu0 0.0
  %2944 = vmatpush1.msra.mxu0 0.0
  %2945 = vmatprep.subr.mxu0 0.0
  %2946 = vmatpush1.msra.mxu0 0.0
  %2947 = vmatprep.subr.mxu0 0.0
  %2948 = vmatpush1.msra.mxu0 0.0
  %2949 = vmatprep.subr.mxu0 0.0
  %2950 = vmatpush1.msra.mxu0 0.0
  %2951 = vmatprep.subr.mxu0 0.0
  %2952 = vmatpush1.msra.mxu0 0.0
  %2953 = vmatprep.subr.mxu0 0.0
  %2954 = vmatpush1.msra.mxu0 0.0
  %2955 = vmatprep.subr.mxu0 0.0
  %2956 = vmatpush1.msra.mxu0 0.0
  %2957 = vmatprep.subr.mxu0 0.0
  %2958 = vmatpush1.msra.mxu0 0.0
  %2959 = vmatprep.subr.mxu0 0.0
  %2960 = vmatpush1.msra.mxu0 0.0
  %2961 = vmatprep.subr.mxu0 0.0
  %2962 = vmatpush1.msra.mxu0 0.0
  %2963 = vmatprep.subr.mxu0 0.0
  %2964 = vmatpush1.msra.mxu0 0.0
  %2965 = vmatprep.subr.mxu0 0.0
  %2966 = vmatpush1.msra.mxu0 0.0
  %2967 = vmatprep.subr.mxu0 0.0
  %2968 = vmatpush1.msra.mxu0 0.0
  %2969 = vmatprep.subr.mxu0 0.0
  %2970 = vmatpush1.msra.mxu0 0.0
  %2971 = vmatprep.subr.mxu0 0.0
  %2972 = vmatpush1.msra.mxu0 0.0
  %2973 = vmatprep.subr.mxu0 0.0
  %2974 = vmatpush1.msra.mxu0 0.0
  %2975 = vmatprep.subr.mxu0 0.0
  %2976 = vmatpush1.msra.mxu0 0.0
  %2977 = vmatprep.subr.mxu0 0.0
  %2978 = vmatpush1.msra.mxu0 0.0
  %2979 = vmatprep.subr.mxu0 0.0
  %2980 = vmatpush1.msra.mxu0 0.0
  %2981 = vmatprep.subr.mxu0 0.0
  %2982 = vmatpush1.msra.mxu0 0.0
  %2983 = vmatprep.mubr.f32.mxu0 0.0
  %v2984 = vand.u32 %v2578, 4294901760
  %2985 = vmatmul.mubr.f32.gmra.mrb[0].mxu0 %v2984
  %v2986 = vpop.f32.mrb[0].mxu0
  %v2987 = vadd.f32 %v2904, %v2986
  %v2988 = vpop.f32.mrb[0].mxu0
  %2989 = vdwg.mxu0
  %2990 = vmatprep.subr.mxu0 0.0
  %v2991 = vand.u32 %v11, 4294901760
  %2992 = vmatpush1.msra.mxu0 %v2991
  %2993 = vmatprep.subr.mxu0 0.0
  %v2994 = vand.u32 %v12, 4294901760
  %2995 = vmatpush1.msra.mxu0 %v2994
  %2996 = vmatprep.subr.mxu0 0.0
  %v2997 = vand.u32 %v13, 4294901760
  %2998 = vmatpush1.msra.mxu0 %v2997
  %2999 = vmatprep.subr.mxu0 0.0
  %v3000 = vand.u32 %v14, 4294901760
  %3001 = vmatpush1.msra.mxu0 %v3000
  %3002 = vmatprep.subr.mxu0 0.0
  %3003 = vmatpush1.msra.mxu0 0.0
  %3004 = vmatprep.subr.mxu0 0.0
  %3005 = vmatpush1.msra.mxu0 0.0
  %3006 = vmatprep.subr.mxu0 0.0
  %3007 = vmatpush1.msra.mxu0 0.0
  %3008 = vmatprep.subr.mxu0 0.0
  %3009 = vmatpush1.msra.mxu0 0.0
  %3010 = vmatprep.subr.mxu0 0.0
  %3011 = vmatpush1.msra.mxu0 0.0
  %3012 = vmatprep.subr.mxu0 0.0
  %3013 = vmatpush1.msra.mxu0 0.0
  %3014 = vmatprep.subr.mxu0 0.0
  %3015 = vmatpush1.msra.mxu0 0.0
  %3016 = vmatprep.subr.mxu0 0.0
  %3017 = vmatpush1.msra.mxu0 0.0
  %3018 = vmatprep.subr.mxu0 0.0
  %3019 = vmatpush1.msra.mxu0 0.0
  %3020 = vmatprep.subr.mxu0 0.0
  %3021 = vmatpush1.msra.mxu0 0.0
  %3022 = vmatprep.subr.mxu0 0.0
  %3023 = vmatpush1.msra.mxu0 0.0
  %3024 = vmatprep.subr.mxu0 0.0
  %3025 = vmatpush1.msra.mxu0 0.0
  %3026 = vmatprep.subr.mxu0 0.0
  %3027 = vmatpush1.msra.mxu0 0.0
  %3028 = vmatprep.subr.mxu0 0.0
  %3029 = vmatpush1.msra.mxu0 0.0
  %3030 = vmatprep.subr.mxu0 0.0
  %3031 = vmatpush1.msra.mxu0 0.0
  %3032 = vmatprep.subr.mxu0 0.0
  %3033 = vmatpush1.msra.mxu0 0.0
  %3034 = vmatprep.subr.mxu0 0.0
  %3035 = vmatpush1.msra.mxu0 0.0
  %3036 = vmatprep.subr.mxu0 0.0
  %3037 = vmatpush1.msra.mxu0 0.0
  %3038 = vmatprep.subr.mxu0 0.0
  %3039 = vmatpush1.msra.mxu0 0.0
  %3040 = vmatprep.subr.mxu0 0.0
  %3041 = vmatpush1.msra.mxu0 0.0
  %3042 = vmatprep.subr.mxu0 0.0
  %3043 = vmatpush1.msra.mxu0 0.0
  %3044 = vmatprep.subr.mxu0 0.0
  %3045 = vmatpush1.msra.mxu0 0.0
  %3046 = vmatprep.subr.mxu0 0.0
  %3047 = vmatpush1.msra.mxu0 0.0
  %3048 = vmatprep.subr.mxu0 0.0
  %3049 = vmatpush1.msra.mxu0 0.0
  %3050 = vmatprep.subr.mxu0 0.0
  %3051 = vmatpush1.msra.mxu0 0.0
  %3052 = vmatprep.subr.mxu0 0.0
  %3053 = vmatpush1.msra.mxu0 0.0
  %3054 = vmatprep.subr.mxu0 0.0
  %3055 = vmatpush1.msra.mxu0 0.0
  %3056 = vmatprep.subr.mxu0 0.0
  %3057 = vmatpush1.msra.mxu0 0.0
  %3058 = vmatprep.mubr.f32.mxu0 0.0
  %v3059 = vand.u32 %v2578, 4294901760
  %3060 = vmatmul.mubr.f32.gmra.mrb[0].mxu0 %v3059
  %v3061 = vpop.f32.mrb[0].mxu0
  %v3062 = vadd.f32 %v2987, %v3061
  %v3063 = vpop.f32.mrb[0].mxu0
  %3064 = vdwg.mxu0
  %v3065 = vadd.f32 %v2574, %v3062
  %v3066 = vtanh.pop %v3065
  %v3067 = vmul.f32 %v3066, 0.5
  %v3068 = vadd.f32 %v3067, 0.5
  %v3069 = vmul.f32 %v3068, %v2567
  %3071 = vrot.lane.b32.xlu0 %v3066, 64
  %v3072 = vpop.permute.xlu0 %3071
  %v3074 = vmul.f32 %v3068, %v3072
  %3076 = vrot.lane.b32.xlu0 %v3074, 32
  %v3077 = vpop.permute.xlu0 %3076
  %v3079 = vadd.f32 %v3069, %v3077
  %v3080 = vtanh.pop %v3079
  %3082 = vrot.lane.b32.xlu0 %v3080, 64
  %v3083 = vpop.permute.xlu0 %3082
  %v3085 = vmul.f32 %v3068, %v3083
  %v3086 = vld [vmem:[%s0 + $0x30] sm:$0xff]
  %3088 = vrot.lane.b32.xlu0 %v3085, 32
  %v3089 = vpop.permute.xlu0 %3088
  %v3090 = vsel %vm16, %v3089, 0
  %3092 = vmatprep.subr.mxu0 0.0
  %v3093 = vand.u32 %v11, 4294901760
  %3094 = vmatpush1.msra.mxu0 %v3093
  %3095 = vmatprep.subr.mxu0 0.0
  %v3096 = vand.u32 %v12, 4294901760
  %3097 = vmatpush1.msra.mxu0 %v3096
  %3098 = vmatprep.subr.mxu0 0.0
  %v3099 = vand.u32 %v13, 4294901760
  %3100 = vmatpush1.msra.mxu0 %v3099
  %3101 = vmatprep.subr.mxu0 0.0
  %v3102 = vand.u32 %v14, 4294901760
  %3103 = vmatpush1.msra.mxu0 %v3102
  %3104 = vmatprep.subr.mxu0 0.0
  %3105 = vmatpush1.msra.mxu0 0.0
  %3106 = vmatprep.subr.mxu0 0.0
  %3107 = vmatpush1.msra.mxu0 0.0
  %3108 = vmatprep.subr.mxu0 0.0
  %3109 = vmatpush1.msra.mxu0 0.0
  %3110 = vmatprep.subr.mxu0 0.0
  %3111 = vmatpush1.msra.mxu0 0.0
  %3112 = vmatprep.subr.mxu0 0.0
  %3113 = vmatpush1.msra.mxu0 0.0
  %3114 = vmatprep.subr.mxu0 0.0
  %3115 = vmatpush1.msra.mxu0 0.0
  %3116 = vmatprep.subr.mxu0 0.0
  %3117 = vmatpush1.msra.mxu0 0.0
  %3118 = vmatprep.subr.mxu0 0.0
  %3119 = vmatpush1.msra.mxu0 0.0
  %3120 = vmatprep.subr.mxu0 0.0
  %3121 = vmatpush1.msra.mxu0 0.0
  %3122 = vmatprep.subr.mxu0 0.0
  %3123 = vmatpush1.msra.mxu0 0.0
  %3124 = vmatprep.subr.mxu0 0.0
  %3125 = vmatpush1.msra.mxu0 0.0
  %3126 = vmatprep.subr.mxu0 0.0
  %3127 = vmatpush1.msra.mxu0 0.0
  %3128 = vmatprep.subr.mxu0 0.0
  %3129 = vmatpush1.msra.mxu0 0.0
  %3130 = vmatprep.subr.mxu0 0.0
  %3131 = vmatpush1.msra.mxu0 0.0
  %3132 = vmatprep.subr.mxu0 0.0
  %3133 = vmatpush1.msra.mxu0 0.0
  %3134 = vmatprep.subr.mxu0 0.0
  %3135 = vmatpush1.msra.mxu0 0.0
  %3136 = vmatprep.subr.mxu0 0.0
  %3137 = vmatpush1.msra.mxu0 0.0
  %3138 = vmatprep.subr.mxu0 0.0
  %3139 = vmatpush1.msra.mxu0 0.0
  %3140 = vmatprep.subr.mxu0 0.0
  %3141 = vmatpush1.msra.mxu0 0.0
  %3142 = vmatprep.subr.mxu0 0.0
  %3143 = vmatpush1.msra.mxu0 0.0
  %3144 = vmatprep.subr.mxu0 0.0
  %3145 = vmatpush1.msra.mxu0 0.0
  %3146 = vmatprep.subr.mxu0 0.0
  %3147 = vmatpush1.msra.mxu0 0.0
  %3148 = vmatprep.subr.mxu0 0.0
  %3149 = vmatpush1.msra.mxu0 0.0
  %3150 = vmatprep.subr.mxu0 0.0
  %3151 = vmatpush1.msra.mxu0 0.0
  %3152 = vmatprep.subr.mxu0 0.0
  %3153 = vmatpush1.msra.mxu0 0.0
  %3154 = vmatprep.subr.mxu0 0.0
  %3155 = vmatpush1.msra.mxu0 0.0
  %3156 = vmatprep.subr.mxu0 0.0
  %3157 = vmatpush1.msra.mxu0 0.0
  %3158 = vmatprep.subr.mxu0 0.0
  %3159 = vmatpush1.msra.mxu0 0.0
  %3160 = vmatprep.mubr.f32.mxu0 0.0
  %v3161 = vand.u32 %v3090, 4294901760
  %v3162 = vsub.f32 %v3090, %v3161
  %v3163 = vand.u32 %v3162, 4294901760
  %v3164 = vsub.f32 %v3162, %v3163
  %v3165 = vand.u32 %v3164, 4294901760
  %3166 = vmatmul.mubr.f32.gmra.mrb[0].mxu0 %v3165
  %v3167 = vpop.f32.mrb[0].mxu0
  %v3168 = vadd.f32 0.0, %v3167
  %v3169 = vpop.f32.mrb[0].mxu0
  %3170 = vdwg.mxu0
  %3171 = vmatprep.subr.mxu0 0.0
  %v3172 = vand.u32 %v11, 4294901760
  %v3173 = vsub.f32 %v11, %v3172
  %v3174 = vand.u32 %v3173, 4294901760
  %v3175 = vsub.f32 %v3173, %v3174
  %v3176 = vand.u32 %v3175, 4294901760
  %3177 = vmatpush1.msra.mxu0 %v3176
  %3178 = vmatprep.subr.mxu0 0.0
  %v3179 = vand.u32 %v12, 4294901760
  %v3180 = vsub.f32 %v12, %v3179
  %v3181 = vand.u32 %v3180, 4294901760
  %v3182 = vsub.f32 %v3180, %v3181
  %v3183 = vand.u32 %v3182, 4294901760
  %3184 = vmatpush1.msra.mxu0 %v3183
  %3185 = vmatprep.subr.mxu0 0.0
  %v3186 = vand.u32 %v13, 4294901760
  %v3187 = vsub.f32 %v13, %v3186
  %v3188 = vand.u32 %v3187, 4294901760
  %v3189 = vsub.f32 %v3187, %v3188
  %v3190 = vand.u32 %v3189, 4294901760
  %3191 = vmatpush1.msra.mxu0 %v3190
  %3192 = vmatprep.subr.mxu0 0.0
  %v3193 = vand.u32 %v14, 4294901760
  %v3194 = vsub.f32 %v14, %v3193
  %v3195 = vand.u32 %v3194, 4294901760
  %v3196 = vsub.f32 %v3194, %v3195
  %v3197 = vand.u32 %v3196, 4294901760
  %3198 = vmatpush1.msra.mxu0 %v3197
  %3199 = vmatprep.subr.mxu0 0.0
  %3200 = vmatpush1.msra.mxu0 0.0
  %3201 = vmatprep.subr.mxu0 0.0
  %3202 = vmatpush1.msra.mxu0 0.0
  %3203 = vmatprep.subr.mxu0 0.0
  %3204 = vmatpush1.msra.mxu0 0.0
  %3205 = vmatprep.subr.mxu0 0.0
  %3206 = vmatpush1.msra.mxu0 0.0
  %3207 = vmatprep.subr.mxu0 0.0
  %3208 = vmatpush1.msra.mxu0 0.0
  %3209 = vmatprep.subr.mxu0 0.0
  %3210 = vmatpush1.msra.mxu0 0.0
  %3211 = vmatprep.subr.mxu0 0.0
  %3212 = vmatpush1.msra.mxu0 0.0
  %3213 = vmatprep.subr.mxu0 0.0
  %3214 = vmatpush1.msra.mxu0 0.0
  %3215 = vmatprep.subr.mxu0 0.0
  %3216 = vmatpush1.msra.mxu0 0.0
  %3217 = vmatprep.subr.mxu0 0.0
  %3218 = vmatpush1.msra.mxu0 0.0
  %3219 = vmatprep.subr.mxu0 0.0
  %3220 = vmatpush1.msra.mxu0 0.0
  %3221 = vmatprep.subr.mxu0 0.0
  %3222 = vmatpush1.msra.mxu0 0.0
  %3223 = vmatprep.subr.mxu0 0.0
  %3224 = vmatpush1.msra.mxu0 0.0
  %3225 = vmatprep.subr.mxu0 0.0
  %3226 = vmatpush1.msra.mxu0 0.0
  %3227 = vmatprep.subr.mxu0 0.0
  %3228 = vmatpush1.msra.mxu0 0.0
  %3229 = vmatprep.subr.mxu0 0.0
  %3230 = vmatpush1.msra.mxu0 0.0
  %3231 = vmatprep.subr.mxu0 0.0
  %3232 = vmatpush1.msra.mxu0 0.0
  %3233 = vmatprep.subr.mxu0 0.0
  %3234 = vmatpush1.msra.mxu0 0.0
  %3235 = vmatprep.subr.mxu0 0.0
  %3236 = vmatpush1.msra.mxu0 0.0
  %3237 = vmatprep.subr.mxu0 0.0
  %3238 = vmatpush1.msra.mxu0 0.0
  %3239 = vmatprep.subr.mxu0 0.0
  %3240 = vmatpush1.msra.mxu0 0.0
  %3241 = vmatprep.subr.mxu0 0.0
  %3242 = vmatpush1.msra.mxu0 0.0
  %3243 = vmatprep.subr.mxu0 0.0
  %3244 = vmatpush1.msra.mxu0 0.0
  %3245 = vmatprep.subr.mxu0 0.0
  %3246 = vmatpush1.msra.mxu0 0.0
  %3247 = vmatprep.subr.mxu0 0.0
  %3248 = vmatpush1.msra.mxu0 0.0
  %3249 = vmatprep.subr.mxu0 0.0
  %3250 = vmatpush1.msra.mxu0 0.0
  %3251 = vmatprep.subr.mxu0 0.0
  %3252 = vmatpush1.msra.mxu0 0.0
  %3253 = vmatprep.subr.mxu0 0.0
  %3254 = vmatpush1.msra.mxu0 0.0
  %3255 = vmatprep.mubr.f32.mxu0 0.0
  %v3256 = vand.u32 %v3090, 4294901760
  %3257 = vmatmul.mubr.f32.gmra.mrb[0].mxu0 %v3256
  %v3258 = vpop.f32.mrb[0].mxu0
  %v3259 = vadd.f32 %v3168, %v3258
  %v3260 = vpop.f32.mrb[0].mxu0
  %3261 = vdwg.mxu0
  %3262 = vmatprep.subr.mxu0 0.0
  %v3263 = vand.u32 %v11, 4294901760
  %v3264 = vsub.f32 %v11, %v3263
  %3265 = vmatpush1.msra.mxu0 %v3264
  %3266 = vmatprep.subr.mxu0 0.0
  %v3267 = vand.u32 %v12, 4294901760
  %v3268 = vsub.f32 %v12, %v3267
  %3269 = vmatpush1.msra.mxu0 %v3268
  %3270 = vmatprep.subr.mxu0 0.0
  %v3271 = vand.u32 %v13, 4294901760
  %v3272 = vsub.f32 %v13, %v3271
  %3273 = vmatpush1.msra.mxu0 %v3272
  %3274 = vmatprep.subr.mxu0 0.0
  %v3275 = vand.u32 %v14, 4294901760
  %v3276 = vsub.f32 %v14, %v3275
  %3277 = vmatpush1.msra.mxu0 %v3276
  %3278 = vmatprep.subr.mxu0 0.0
  %3279 = vmatpush1.msra.mxu0 0.0
  %3280 = vmatprep.subr.mxu0 0.0
  %3281 = vmatpush1.msra.mxu0 0.0
  %3282 = vmatprep.subr.mxu0 0.0
  %3283 = vmatpush1.msra.mxu0 0.0
  %3284 = vmatprep.subr.mxu0 0.0
  %3285 = vmatpush1.msra.mxu0 0.0
  %3286 = vmatprep.subr.mxu0 0.0
  %3287 = vmatpush1.msra.mxu0 0.0
  %3288 = vmatprep.subr.mxu0 0.0
  %3289 = vmatpush1.msra.mxu0 0.0
  %3290 = vmatprep.subr.mxu0 0.0
  %3291 = vmatpush1.msra.mxu0 0.0
  %3292 = vmatprep.subr.mxu0 0.0
  %3293 = vmatpush1.msra.mxu0 0.0
  %3294 = vmatprep.subr.mxu0 0.0
  %3295 = vmatpush1.msra.mxu0 0.0
  %3296 = vmatprep.subr.mxu0 0.0
  %3297 = vmatpush1.msra.mxu0 0.0
  %3298 = vmatprep.subr.mxu0 0.0
  %3299 = vmatpush1.msra.mxu0 0.0
  %3300 = vmatprep.subr.mxu0 0.0
  %3301 = vmatpush1.msra.mxu0 0.0
  %3302 = vmatprep.subr.mxu0 0.0
  %3303 = vmatpush1.msra.mxu0 0.0
  %3304 = vmatprep.subr.mxu0 0.0
  %3305 = vmatpush1.msra.mxu0 0.0
  %3306 = vmatprep.subr.mxu0 0.0
  %3307 = vmatpush1.msra.mxu0 0.0
  %3308 = vmatprep.subr.mxu0 0.0
  %3309 = vmatpush1.msra.mxu0 0.0
  %3310 = vmatprep.subr.mxu0 0.0
  %3311 = vmatpush1.msra.mxu0 0.0
  %3312 = vmatprep.subr.mxu0 0.0
  %3313 = vmatpush1.msra.mxu0 0.0
  %3314 = vmatprep.subr.mxu0 0.0
  %3315 = vmatpush1.msra.mxu0 0.0
  %3316 = vmatprep.subr.mxu0 0.0
  %3317 = vmatpush1.msra.mxu0 0.0
  %3318 = vmatprep.subr.mxu0 0.0
  %3319 = vmatpush1.msra.mxu0 0.0
  %3320 = vmatprep.subr.mxu0 0.0
  %3321 = vmatpush1.msra.mxu0 0.0
  %3322 = vmatprep.subr.mxu0 0.0
  %3323 = vmatpush1.msra.mxu0 0.0
  %3324 = vmatprep.subr.mxu0 0.0
  %3325 = vmatpush1.msra.mxu0 0.0
  %3326 = vmatprep.subr.mxu0 0.0
  %3327 = vmatpush1.msra.mxu0 0.0
  %3328 = vmatprep.subr.mxu0 0.0
  %3329 = vmatpush1.msra.mxu0 0.0
  %3330 = vmatprep.subr.mxu0 0.0
  %3331 = vmatpush1.msra.mxu0 0.0
  %3332 = vmatprep.subr.mxu0 0.0
  %3333 = vmatpush1.msra.mxu0 0.0
  %3334 = vmatprep.mubr.f32.mxu0 0.0
  %v3335 = vand.u32 %v3090, 4294901760
  %v3336 = vsub.f32 %v3090, %v3335
  %3337 = vmatmul.mubr.f32.gmra.mrb[0].mxu0 %v3336
  %v3338 = vpop.f32.mrb[0].mxu0
  %v3339 = vadd.f32 %v3259, %v3338
  %v3340 = vpop.f32.mrb[0].mxu0
  %3341 = vdwg.mxu0
  %3342 = vmatprep.subr.mxu0 0.0
  %v3343 = vand.u32 %v11, 4294901760
  %3344 = vmatpush1.msra.mxu0 %v3343
  %3345 = vmatprep.subr.mxu0 0.0
  %v3346 = vand.u32 %v12, 4294901760
  %3347 = vmatpush1.msra.mxu0 %v3346
  %3348 = vmatprep.subr.mxu0 0.0
  %v3349 = vand.u32 %v13, 4294901760
  %3350 = vmatpush1.msra.mxu0 %v3349
  %3351 = vmatprep.subr.mxu0 0.0
  %v3352 = vand.u32 %v14, 4294901760
  %3353 = vmatpush1.msra.mxu0 %v3352
  %3354 = vmatprep.subr.mxu0 0.0
  %3355 = vmatpush1.msra.mxu0 0.0
  %3356 = vmatprep.subr.mxu0 0.0
  %3357 = vmatpush1.msra.mxu0 0.0
  %3358 = vmatprep.subr.mxu0 0.0
  %3359 = vmatpush1.msra.mxu0 0.0
  %3360 = vmatprep.subr.mxu0 0.0
  %3361 = vmatpush1.msra.mxu0 0.0
  %3362 = vmatprep.subr.mxu0 0.0
  %3363 = vmatpush1.msra.mxu0 0.0
  %3364 = vmatprep.subr.mxu0 0.0
  %3365 = vmatpush1.msra.mxu0 0.0
  %3366 = vmatprep.subr.mxu0 0.0
  %3367 = vmatpush1.msra.mxu0 0.0
  %3368 = vmatprep.subr.mxu0 0.0
  %3369 = vmatpush1.msra.mxu0 0.0
  %3370 = vmatprep.subr.mxu0 0.0
  %3371 = vmatpush1.msra.mxu0 0.0
  %3372 = vmatprep.subr.mxu0 0.0
  %3373 = vmatpush1.msra.mxu0 0.0
  %3374 = vmatprep.subr.mxu0 0.0
  %3375 = vmatpush1.msra.mxu0 0.0
  %3376 = vmatprep.subr.mxu0 0.0
  %3377 = vmatpush1.msra.mxu0 0.0
  %3378 = vmatprep.subr.mxu0 0.0
  %3379 = vmatpush1.msra.mxu0 0.0
  %3380 = vmatprep.subr.mxu0 0.0
  %3381 = vmatpush1.msra.mxu0 0.0
  %3382 = vmatprep.subr.mxu0 0.0
  %3383 = vmatpush1.msra.mxu0 0.0
  %3384 = vmatprep.subr.mxu0 0.0
  %3385 = vmatpush1.msra.mxu0 0.0
  %3386 = vmatprep.subr.mxu0 0.0
  %3387 = vmatpush1.msra.mxu0 0.0
  %3388 = vmatprep.subr.mxu0 0.0
  %3389 = vmatpush1.msra.mxu0 0.0
  %3390 = vmatprep.subr.mxu0 0.0
  %3391 = vmatpush1.msra.mxu0 0.0
  %3392 = vmatprep.subr.mxu0 0.0
  %3393 = vmatpush1.msra.mxu0 0.0
  %3394 = vmatprep.subr.mxu0 0.0
  %3395 = vmatpush1.msra.mxu0 0.0
  %3396 = vmatprep.subr.mxu0 0.0
  %3397 = vmatpush1.msra.mxu0 0.0
  %3398 = vmatprep.subr.mxu0 0.0
  %3399 = vmatpush1.msra.mxu0 0.0
  %3400 = vmatprep.subr.mxu0 0.0
  %3401 = vmatpush1.msra.mxu0 0.0
  %3402 = vmatprep.subr.mxu0 0.0
  %3403 = vmatpush1.msra.mxu0 0.0
  %3404 = vmatprep.subr.mxu0 0.0
  %3405 = vmatpush1.msra.mxu0 0.0
  %3406 = vmatprep.subr.mxu0 0.0
  %3407 = vmatpush1.msra.mxu0 0.0
  %3408 = vmatprep.subr.mxu0 0.0
  %3409 = vmatpush1.msra.mxu0 0.0
  %3410 = vmatprep.mubr.f32.mxu0 0.0
  %v3411 = vand.u32 %v3090, 4294901760
  %v3412 = vsub.f32 %v3090, %v3411
  %v3413 = vand.u32 %v3412, 4294901760
  %3414 = vmatmul.mubr.f32.gmra.mrb[0].mxu0 %v3413
  %v3415 = vpop.f32.mrb[0].mxu0
  %v3416 = vadd.f32 %v3339, %v3415
  %v3417 = vpop.f32.mrb[0].mxu0
  %3418 = vdwg.mxu0
  %3419 = vmatprep.subr.mxu0 0.0
  %v3420 = vand.u32 %v11, 4294901760
  %v3421 = vsub.f32 %v11, %v3420
  %v3422 = vand.u32 %v3421, 4294901760
  %3423 = vmatpush1.msra.mxu0 %v3422
  %3424 = vmatprep.subr.mxu0 0.0
  %v3425 = vand.u32 %v12, 4294901760
  %v3426 = vsub.f32 %v12, %v3425
  %v3427 = vand.u32 %v3426, 4294901760
  %3428 = vmatpush1.msra.mxu0 %v3427
  %3429 = vmatprep.subr.mxu0 0.0
  %v3430 = vand.u32 %v13, 4294901760
  %v3431 = vsub.f32 %v13, %v3430
  %v3432 = vand.u32 %v3431, 4294901760
  %3433 = vmatpush1.msra.mxu0 %v3432
  %3434 = vmatprep.subr.mxu0 0.0
  %v3435 = vand.u32 %v14, 4294901760
  %v3436 = vsub.f32 %v14, %v3435
  %v3437 = vand.u32 %v3436, 4294901760
  %3438 = vmatpush1.msra.mxu0 %v3437
  %3439 = vmatprep.subr.mxu0 0.0
  %3440 = vmatpush1.msra.mxu0 0.0
  %3441 = vmatprep.subr.mxu0 0.0
  %3442 = vmatpush1.msra.mxu0 0.0
  %3443 = vmatprep.subr.mxu0 0.0
  %3444 = vmatpush1.msra.mxu0 0.0
  %3445 = vmatprep.subr.mxu0 0.0
  %3446 = vmatpush1.msra.mxu0 0.0
  %3447 = vmatprep.subr.mxu0 0.0
  %3448 = vmatpush1.msra.mxu0 0.0
  %3449 = vmatprep.subr.mxu0 0.0
  %3450 = vmatpush1.msra.mxu0 0.0
  %3451 = vmatprep.subr.mxu0 0.0
  %3452 = vmatpush1.msra.mxu0 0.0
  %3453 = vmatprep.subr.mxu0 0.0
  %3454 = vmatpush1.msra.mxu0 0.0
  %3455 = vmatprep.subr.mxu0 0.0
  %3456 = vmatpush1.msra.mxu0 0.0
  %3457 = vmatprep.subr.mxu0 0.0
  %3458 = vmatpush1.msra.mxu0 0.0
  %3459 = vmatprep.subr.mxu0 0.0
  %3460 = vmatpush1.msra.mxu0 0.0
  %3461 = vmatprep.subr.mxu0 0.0
  %3462 = vmatpush1.msra.mxu0 0.0
  %3463 = vmatprep.subr.mxu0 0.0
  %3464 = vmatpush1.msra.mxu0 0.0
  %3465 = vmatprep.subr.mxu0 0.0
  %3466 = vmatpush1.msra.mxu0 0.0
  %3467 = vmatprep.subr.mxu0 0.0
  %3468 = vmatpush1.msra.mxu0 0.0
  %3469 = vmatprep.subr.mxu0 0.0
  %3470 = vmatpush1.msra.mxu0 0.0
  %3471 = vmatprep.subr.mxu0 0.0
  %3472 = vmatpush1.msra.mxu0 0.0
  %3473 = vmatprep.subr.mxu0 0.0
  %3474 = vmatpush1.msra.mxu0 0.0
  %3475 = vmatprep.subr.mxu0 0.0
  %3476 = vmatpush1.msra.mxu0 0.0
  %3477 = vmatprep.subr.mxu0 0.0
  %3478 = vmatpush1.msra.mxu0 0.0
  %3479 = vmatprep.subr.mxu0 0.0
  %3480 = vmatpush1.msra.mxu0 0.0
  %3481 = vmatprep.subr.mxu0 0.0
  %3482 = vmatpush1.msra.mxu0 0.0
  %3483 = vmatprep.subr.mxu0 0.0
  %3484 = vmatpush1.msra.mxu0 0.0
  %3485 = vmatprep.subr.mxu0 0.0
  %3486 = vmatpush1.msra.mxu0 0.0
  %3487 = vmatprep.subr.mxu0 0.0
  %3488 = vmatpush1.msra.mxu0 0.0
  %3489 = vmatprep.subr.mxu0 0.0
  %3490 = vmatpush1.msra.mxu0 0.0
  %3491 = vmatprep.subr.mxu0 0.0
  %3492 = vmatpush1.msra.mxu0 0.0
  %3493 = vmatprep.subr.mxu0 0.0
  %3494 = vmatpush1.msra.mxu0 0.0
  %3495 = vmatprep.mubr.f32.mxu0 0.0
  %v3496 = vand.u32 %v3090, 4294901760
  %3497 = vmatmul.mubr.f32.gmra.mrb[0].mxu0 %v3496
  %v3498 = vpop.f32.mrb[0].mxu0
  %v3499 = vadd.f32 %v3416, %v3498
  %v3500 = vpop.f32.mrb[0].mxu0
  %3501 = vdwg.mxu0
  %3502 = vmatprep.subr.mxu0 0.0
  %v3503 = vand.u32 %v11, 4294901760
  %3504 = vmatpush1.msra.mxu0 %v3503
  %3505 = vmatprep.subr.mxu0 0.0
  %v3506 = vand.u32 %v12, 4294901760
  %3507 = vmatpush1.msra.mxu0 %v3506
  %3508 = vmatprep.subr.mxu0 0.0
  %v3509 = vand.u32 %v13, 4294901760
  %3510 = vmatpush1.msra.mxu0 %v3509
  %3511 = vmatprep.subr.mxu0 0.0
  %v3512 = vand.u32 %v14, 4294901760
  %3513 = vmatpush1.msra.mxu0 %v3512
  %3514 = vmatprep.subr.mxu0 0.0
  %3515 = vmatpush1.msra.mxu0 0.0
  %3516 = vmatprep.subr.mxu0 0.0
  %3517 = vmatpush1.msra.mxu0 0.0
  %3518 = vmatprep.subr.mxu0 0.0
  %3519 = vmatpush1.msra.mxu0 0.0
  %3520 = vmatprep.subr.mxu0 0.0
  %3521 = vmatpush1.msra.mxu0 0.0
  %3522 = vmatprep.subr.mxu0 0.0
  %3523 = vmatpush1.msra.mxu0 0.0
  %3524 = vmatprep.subr.mxu0 0.0
  %3525 = vmatpush1.msra.mxu0 0.0
  %3526 = vmatprep.subr.mxu0 0.0
  %3527 = vmatpush1.msra.mxu0 0.0
  %3528 = vmatprep.subr.mxu0 0.0
  %3529 = vmatpush1.msra.mxu0 0.0
  %3530 = vmatprep.subr.mxu0 0.0
  %3531 = vmatpush1.msra.mxu0 0.0
  %3532 = vmatprep.subr.mxu0 0.0
  %3533 = vmatpush1.msra.mxu0 0.0
  %3534 = vmatprep.subr.mxu0 0.0
  %3535 = vmatpush1.msra.mxu0 0.0
  %3536 = vmatprep.subr.mxu0 0.0
  %3537 = vmatpush1.msra.mxu0 0.0
  %3538 = vmatprep.subr.mxu0 0.0
  %3539 = vmatpush1.msra.mxu0 0.0
  %3540 = vmatprep.subr.mxu0 0.0
  %3541 = vmatpush1.msra.mxu0 0.0
  %3542 = vmatprep.subr.mxu0 0.0
  %3543 = vmatpush1.msra.mxu0 0.0
  %3544 = vmatprep.subr.mxu0 0.0
  %3545 = vmatpush1.msra.mxu0 0.0
  %3546 = vmatprep.subr.mxu0 0.0
  %3547 = vmatpush1.msra.mxu0 0.0
  %3548 = vmatprep.subr.mxu0 0.0
  %3549 = vmatpush1.msra.mxu0 0.0
  %3550 = vmatprep.subr.mxu0 0.0
  %3551 = vmatpush1.msra.mxu0 0.0
  %3552 = vmatprep.subr.mxu0 0.0
  %3553 = vmatpush1.msra.mxu0 0.0
  %3554 = vmatprep.subr.mxu0 0.0
  %3555 = vmatpush1.msra.mxu0 0.0
  %3556 = vmatprep.subr.mxu0 0.0
  %3557 = vmatpush1.msra.mxu0 0.0
  %3558 = vmatprep.subr.mxu0 0.0
  %3559 = vmatpush1.msra.mxu0 0.0
  %3560 = vmatprep.subr.mxu0 0.0
  %3561 = vmatpush1.msra.mxu0 0.0
  %3562 = vmatprep.subr.mxu0 0.0
  %3563 = vmatpush1.msra.mxu0 0.0
  %3564 = vmatprep.subr.mxu0 0.0
  %3565 = vmatpush1.msra.mxu0 0.0
  %3566 = vmatprep.subr.mxu0 0.0
  %3567 = vmatpush1.msra.mxu0 0.0
  %3568 = vmatprep.subr.mxu0 0.0
  %3569 = vmatpush1.msra.mxu0 0.0
  %3570 = vmatprep.mubr.f32.mxu0 0.0
  %v3571 = vand.u32 %v3090, 4294901760
  %3572 = vmatmul.mubr.f32.gmra.mrb[0].mxu0 %v3571
  %v3573 = vpop.f32.mrb[0].mxu0
  %v3574 = vadd.f32 %v3499, %v3573
  %v3575 = vpop.f32.mrb[0].mxu0
  %3576 = vdwg.mxu0
  %v3577 = vadd.f32 %v3086, %v3574
  %v3578 = vtanh.pop %v3577
  %v3579 = vmul.f32 %v3578, 0.5
  %v3580 = vadd.f32 %v3579, 0.5
  %v3581 = vmul.f32 %v3580, %v3079
  %3583 = vrot.lane.b32.xlu0 %v3578, 64
  %v3584 = vpop.permute.xlu0 %3583
  %v3586 = vmul.f32 %v3580, %v3584
  %3588 = vrot.lane.b32.xlu0 %v3586, 32
  %v3589 = vpop.permute.xlu0 %3588
  %v3591 = vadd.f32 %v3581, %v3589
  %v3592 = vtanh.pop %v3591
  %3594 = vrot.lane.b32.xlu0 %v3592, 64
  %v3595 = vpop.permute.xlu0 %3594
  %v3597 = vmul.f32 %v3580, %v3595
  %v3598 = vld [vmem:[%s0 + $0x38] sm:$0xff]
  %3600 = vrot.lane.b32.xlu0 %v3597, 32
  %v3601 = vpop.permute.xlu0 %3600
  %v3602 = vsel %vm16, %v3601, 0
  %3604 = vmatprep.subr.mxu0 0.0
  %v3605 = vand.u32 %v11, 4294901760
  %3606 = vmatpush1.msra.mxu0 %v3605
  %3607 = vmatprep.subr.mxu0 0.0
  %v3608 = vand.u32 %v12, 4294901760
  %3609 = vmatpush1.msra.mxu0 %v3608
  %3610 = vmatprep.subr.mxu0 0.0
  %v3611 = vand.u32 %v13, 4294901760
  %3612 = vmatpush1.msra.mxu0 %v3611
  %3613 = vmatprep.subr.mxu0 0.0
  %v3614 = vand.u32 %v14, 4294901760
  %3615 = vmatpush1.msra.mxu0 %v3614
  %3616 = vmatprep.subr.mxu0 0.0
  %3617 = vmatpush1.msra.mxu0 0.0
  %3618 = vmatprep.subr.mxu0 0.0
  %3619 = vmatpush1.msra.mxu0 0.0
  %3620 = vmatprep.subr.mxu0 0.0
  %3621 = vmatpush1.msra.mxu0 0.0
  %3622 = vmatprep.subr.mxu0 0.0
  %3623 = vmatpush1.msra.mxu0 0.0
  %3624 = vmatprep.subr.mxu0 0.0
  %3625 = vmatpush1.msra.mxu0 0.0
  %3626 = vmatprep.subr.mxu0 0.0
  %3627 = vmatpush1.msra.mxu0 0.0
  %3628 = vmatprep.subr.mxu0 0.0
  %3629 = vmatpush1.msra.mxu0 0.0
  %3630 = vmatprep.subr.mxu0 0.0
  %3631 = vmatpush1.msra.mxu0 0.0
  %3632 = vmatprep.subr.mxu0 0.0
  %3633 = vmatpush1.msra.mxu0 0.0
  %3634 = vmatprep.subr.mxu0 0.0
  %3635 = vmatpush1.msra.mxu0 0.0
  %3636 = vmatprep.subr.mxu0 0.0
  %3637 = vmatpush1.msra.mxu0 0.0
  %3638 = vmatprep.subr.mxu0 0.0
  %3639 = vmatpush1.msra.mxu0 0.0
  %3640 = vmatprep.subr.mxu0 0.0
  %3641 = vmatpush1.msra.mxu0 0.0
  %3642 = vmatprep.subr.mxu0 0.0
  %3643 = vmatpush1.msra.mxu0 0.0
  %3644 = vmatprep.subr.mxu0 0.0
  %3645 = vmatpush1.msra.mxu0 0.0
  %3646 = vmatprep.subr.mxu0 0.0
  %3647 = vmatpush1.msra.mxu0 0.0
  %3648 = vmatprep.subr.mxu0 0.0
  %3649 = vmatpush1.msra.mxu0 0.0
  %3650 = vmatprep.subr.mxu0 0.0
  %3651 = vmatpush1.msra.mxu0 0.0
  %3652 = vmatprep.subr.mxu0 0.0
  %3653 = vmatpush1.msra.mxu0 0.0
  %3654 = vmatprep.subr.mxu0 0.0
  %3655 = vmatpush1.msra.mxu0 0.0
  %3656 = vmatprep.subr.mxu0 0.0
  %3657 = vmatpush1.msra.mxu0 0.0
  %3658 = vmatprep.subr.mxu0 0.0
  %3659 = vmatpush1.msra.mxu0 0.0
  %3660 = vmatprep.subr.mxu0 0.0
  %3661 = vmatpush1.msra.mxu0 0.0
  %3662 = vmatprep.subr.mxu0 0.0
  %3663 = vmatpush1.msra.mxu0 0.0
  %3664 = vmatprep.subr.mxu0 0.0
  %3665 = vmatpush1.msra.mxu0 0.0
  %3666 = vmatprep.subr.mxu0 0.0
  %3667 = vmatpush1.msra.mxu0 0.0
  %3668 = vmatprep.subr.mxu0 0.0
  %3669 = vmatpush1.msra.mxu0 0.0
  %3670 = vmatprep.subr.mxu0 0.0
  %3671 = vmatpush1.msra.mxu0 0.0
  %3672 = vmatprep.mubr.f32.mxu0 0.0
  %v3673 = vand.u32 %v3602, 4294901760
  %v3674 = vsub.f32 %v3602, %v3673
  %v3675 = vand.u32 %v3674, 4294901760
  %v3676 = vsub.f32 %v3674, %v3675
  %v3677 = vand.u32 %v3676, 4294901760
  %3678 = vmatmul.mubr.f32.gmra.mrb[0].mxu0 %v3677
  %v3679 = vpop.f32.mrb[0].mxu0
  %v3680 = vadd.f32 0.0, %v3679
  %v3681 = vpop.f32.mrb[0].mxu0
  %3682 = vdwg.mxu0
  %3683 = vmatprep.subr.mxu0 0.0
  %v3684 = vand.u32 %v11, 4294901760
  %v3685 = vsub.f32 %v11, %v3684
  %v3686 = vand.u32 %v3685, 4294901760
  %v3687 = vsub.f32 %v3685, %v3686
  %v3688 = vand.u32 %v3687, 4294901760
  %3689 = vmatpush1.msra.mxu0 %v3688
  %3690 = vmatprep.subr.mxu0 0.0
  %v3691 = vand.u32 %v12, 4294901760
  %v3692 = vsub.f32 %v12, %v3691
  %v3693 = vand.u32 %v3692, 4294901760
  %v3694 = vsub.f32 %v3692, %v3693
  %v3695 = vand.u32 %v3694, 4294901760
  %3696 = vmatpush1.msra.mxu0 %v3695
  %3697 = vmatprep.subr.mxu0 0.0
  %v3698 = vand.u32 %v13, 4294901760
  %v3699 = vsub.f32 %v13, %v3698
  %v3700 = vand.u32 %v3699, 4294901760
  %v3701 = vsub.f32 %v3699, %v3700
  %v3702 = vand.u32 %v3701, 4294901760
  %3703 = vmatpush1.msra.mxu0 %v3702
  %3704 = vmatprep.subr.mxu0 0.0
  %v3705 = vand.u32 %v14, 4294901760
  %v3706 = vsub.f32 %v14, %v3705
  %v3707 = vand.u32 %v3706, 4294901760
  %v3708 = vsub.f32 %v3706, %v3707
  %v3709 = vand.u32 %v3708, 4294901760
  %3710 = vmatpush1.msra.mxu0 %v3709
  %3711 = vmatprep.subr.mxu0 0.0
  %3712 = vmatpush1.msra.mxu0 0.0
  %3713 = vmatprep.subr.mxu0 0.0
  %3714 = vmatpush1.msra.mxu0 0.0
  %3715 = vmatprep.subr.mxu0 0.0
  %3716 = vmatpush1.msra.mxu0 0.0
  %3717 = vmatprep.subr.mxu0 0.0
  %3718 = vmatpush1.msra.mxu0 0.0
  %3719 = vmatprep.subr.mxu0 0.0
  %3720 = vmatpush1.msra.mxu0 0.0
  %3721 = vmatprep.subr.mxu0 0.0
  %3722 = vmatpush1.msra.mxu0 0.0
  %3723 = vmatprep.subr.mxu0 0.0
  %3724 = vmatpush1.msra.mxu0 0.0
  %3725 = vmatprep.subr.mxu0 0.0
  %3726 = vmatpush1.msra.mxu0 0.0
  %3727 = vmatprep.subr.mxu0 0.0
  %3728 = vmatpush1.msra.mxu0 0.0
  %3729 = vmatprep.subr.mxu0 0.0
  %3730 = vmatpush1.msra.mxu0 0.0
  %3731 = vmatprep.subr.mxu0 0.0
  %3732 = vmatpush1.msra.mxu0 0.0
  %3733 = vmatprep.subr.mxu0 0.0
  %3734 = vmatpush1.msra.mxu0 0.0
  %3735 = vmatprep.subr.mxu0 0.0
  %3736 = vmatpush1.msra.mxu0 0.0
  %3737 = vmatprep.subr.mxu0 0.0
  %3738 = vmatpush1.msra.mxu0 0.0
  %3739 = vmatprep.subr.mxu0 0.0
  %3740 = vmatpush1.msra.mxu0 0.0
  %3741 = vmatprep.subr.mxu0 0.0
  %3742 = vmatpush1.msra.mxu0 0.0
  %3743 = vmatprep.subr.mxu0 0.0
  %3744 = vmatpush1.msra.mxu0 0.0
  %3745 = vmatprep.subr.mxu0 0.0
  %3746 = vmatpush1.msra.mxu0 0.0
  %3747 = vmatprep.subr.mxu0 0.0
  %3748 = vmatpush1.msra.mxu0 0.0
  %3749 = vmatprep.subr.mxu0 0.0
  %3750 = vmatpush1.msra.mxu0 0.0
  %3751 = vmatprep.subr.mxu0 0.0
  %3752 = vmatpush1.msra.mxu0 0.0
  %3753 = vmatprep.subr.mxu0 0.0
  %3754 = vmatpush1.msra.mxu0 0.0
  %3755 = vmatprep.subr.mxu0 0.0
  %3756 = vmatpush1.msra.mxu0 0.0
  %3757 = vmatprep.subr.mxu0 0.0
  %3758 = vmatpush1.msra.mxu0 0.0
  %3759 = vmatprep.subr.mxu0 0.0
  %3760 = vmatpush1.msra.mxu0 0.0
  %3761 = vmatprep.subr.mxu0 0.0
  %3762 = vmatpush1.msra.mxu0 0.0
  %3763 = vmatprep.subr.mxu0 0.0
  %3764 = vmatpush1.msra.mxu0 0.0
  %3765 = vmatprep.subr.mxu0 0.0
  %3766 = vmatpush1.msra.mxu0 0.0
  %3767 = vmatprep.mubr.f32.mxu0 0.0
  %v3768 = vand.u32 %v3602, 4294901760
  %3769 = vmatmul.mubr.f32.gmra.mrb[0].mxu0 %v3768
  %v3770 = vpop.f32.mrb[0].mxu0
  %v3771 = vadd.f32 %v3680, %v3770
  %v3772 = vpop.f32.mrb[0].mxu0
  %3773 = vdwg.mxu0
  %3774 = vmatprep.subr.mxu0 0.0
  %v3775 = vand.u32 %v11, 4294901760
  %v3776 = vsub.f32 %v11, %v3775
  %3777 = vmatpush1.msra.mxu0 %v3776
  %3778 = vmatprep.subr.mxu0 0.0
  %v3779 = vand.u32 %v12, 4294901760
  %v3780 = vsub.f32 %v12, %v3779
  %3781 = vmatpush1.msra.mxu0 %v3780
  %3782 = vmatprep.subr.mxu0 0.0
  %v3783 = vand.u32 %v13, 4294901760
  %v3784 = vsub.f32 %v13, %v3783
  %3785 = vmatpush1.msra.mxu0 %v3784
  %3786 = vmatprep.subr.mxu0 0.0
  %v3787 = vand.u32 %v14, 4294901760
  %v3788 = vsub.f32 %v14, %v3787
  %3789 = vmatpush1.msra.mxu0 %v3788
  %3790 = vmatprep.subr.mxu0 0.0
  %3791 = vmatpush1.msra.mxu0 0.0
  %3792 = vmatprep.subr.mxu0 0.0
  %3793 = vmatpush1.msra.mxu0 0.0
  %3794 = vmatprep.subr.mxu0 0.0
  %3795 = vmatpush1.msra.mxu0 0.0
  %3796 = vmatprep.subr.mxu0 0.0
  %3797 = vmatpush1.msra.mxu0 0.0
  %3798 = vmatprep.subr.mxu0 0.0
  %3799 = vmatpush1.msra.mxu0 0.0
  %3800 = vmatprep.subr.mxu0 0.0
  %3801 = vmatpush1.msra.mxu0 0.0
  %3802 = vmatprep.subr.mxu0 0.0
  %3803 = vmatpush1.msra.mxu0 0.0
  %3804 = vmatprep.subr.mxu0 0.0
  %3805 = vmatpush1.msra.mxu0 0.0
  %3806 = vmatprep.subr.mxu0 0.0
  %3807 = vmatpush1.msra.mxu0 0.0
  %3808 = vmatprep.subr.mxu0 0.0
  %3809 = vmatpush1.msra.mxu0 0.0
  %3810 = vmatprep.subr.mxu0 0.0
  %3811 = vmatpush1.msra.mxu0 0.0
  %3812 = vmatprep.subr.mxu0 0.0
  %3813 = vmatpush1.msra.mxu0 0.0
  %3814 = vmatprep.subr.mxu0 0.0
  %3815 = vmatpush1.msra.mxu0 0.0
  %3816 = vmatprep.subr.mxu0 0.0
  %3817 = vmatpush1.msra.mxu0 0.0
  %3818 = vmatprep.subr.mxu0 0.0
  %3819 = vmatpush1.msra.mxu0 0.0
  %3820 = vmatprep.subr.mxu0 0.0
  %3821 = vmatpush1.msra.mxu0 0.0
  %3822 = vmatprep.subr.mxu0 0.0
  %3823 = vmatpush1.msra.mxu0 0.0
  %3824 = vmatprep.subr.mxu0 0.0
  %3825 = vmatpush1.msra.mxu0 0.0
  %3826 = vmatprep.subr.mxu0 0.0
  %3827 = vmatpush1.msra.mxu0 0.0
  %3828 = vmatprep.subr.mxu0 0.0
  %3829 = vmatpush1.msra.mxu0 0.0
  %3830 = vmatprep.subr.mxu0 0.0
  %3831 = vmatpush1.msra.mxu0 0.0
  %3832 = vmatprep.subr.mxu0 0.0
  %3833 = vmatpush1.msra.mxu0 0.0
  %3834 = vmatprep.subr.mxu0 0.0
  %3835 = vmatpush1.msra.mxu0 0.0
  %3836 = vmatprep.subr.mxu0 0.0
  %3837 = vmatpush1.msra.mxu0 0.0
  %3838 = vmatprep.subr.mxu0 0.0
  %3839 = vmatpush1.msra.mxu0 0.0
  %3840 = vmatprep.subr.mxu0 0.0
  %3841 = vmatpush1.msra.mxu0 0.0
  %3842 = vmatprep.subr.mxu0 0.0
  %3843 = vmatpush1.msra.mxu0 0.0
  %3844 = vmatprep.subr.mxu0 0.0
  %3845 = vmatpush1.msra.mxu0 0.0
  %3846 = vmatprep.mubr.f32.mxu0 0.0
  %v3847 = vand.u32 %v3602, 4294901760
  %v3848 = vsub.f32 %v3602, %v3847
  %3849 = vmatmul.mubr.f32.gmra.mrb[0].mxu0 %v3848
  %v3850 = vpop.f32.mrb[0].mxu0
  %v3851 = vadd.f32 %v3771, %v3850
  %v3852 = vpop.f32.mrb[0].mxu0
  %3853 = vdwg.mxu0
  %3854 = vmatprep.subr.mxu0 0.0
  %v3855 = vand.u32 %v11, 4294901760
  %3856 = vmatpush1.msra.mxu0 %v3855
  %3857 = vmatprep.subr.mxu0 0.0
  %v3858 = vand.u32 %v12, 4294901760
  %3859 = vmatpush1.msra.mxu0 %v3858
  %3860 = vmatprep.subr.mxu0 0.0
  %v3861 = vand.u32 %v13, 4294901760
  %3862 = vmatpush1.msra.mxu0 %v3861
  %3863 = vmatprep.subr.mxu0 0.0
  %v3864 = vand.u32 %v14, 4294901760
  %3865 = vmatpush1.msra.mxu0 %v3864
  %3866 = vmatprep.subr.mxu0 0.0
  %3867 = vmatpush1.msra.mxu0 0.0
  %3868 = vmatprep.subr.mxu0 0.0
  %3869 = vmatpush1.msra.mxu0 0.0
  %3870 = vmatprep.subr.mxu0 0.0
  %3871 = vmatpush1.msra.mxu0 0.0
  %3872 = vmatprep.subr.mxu0 0.0
  %3873 = vmatpush1.msra.mxu0 0.0
  %3874 = vmatprep.subr.mxu0 0.0
  %3875 = vmatpush1.msra.mxu0 0.0
  %3876 = vmatprep.subr.mxu0 0.0
  %3877 = vmatpush1.msra.mxu0 0.0
  %3878 = vmatprep.subr.mxu0 0.0
  %3879 = vmatpush1.msra.mxu0 0.0
  %3880 = vmatprep.subr.mxu0 0.0
  %3881 = vmatpush1.msra.mxu0 0.0
  %3882 = vmatprep.subr.mxu0 0.0
  %3883 = vmatpush1.msra.mxu0 0.0
  %3884 = vmatprep.subr.mxu0 0.0
  %3885 = vmatpush1.msra.mxu0 0.0
  %3886 = vmatprep.subr.mxu0 0.0
  %3887 = vmatpush1.msra.mxu0 0.0
  %3888 = vmatprep.subr.mxu0 0.0
  %3889 = vmatpush1.msra.mxu0 0.0
  %3890 = vmatprep.subr.mxu0 0.0
  %3891 = vmatpush1.msra.mxu0 0.0
  %3892 = vmatprep.subr.mxu0 0.0
  %3893 = vmatpush1.msra.mxu0 0.0
  %3894 = vmatprep.subr.mxu0 0.0
  %3895 = vmatpush1.msra.mxu0 0.0
  %3896 = vmatprep.subr.mxu0 0.0
  %3897 = vmatpush1.msra.mxu0 0.0
  %3898 = vmatprep.subr.mxu0 0.0
  %3899 = vmatpush1.msra.mxu0 0.0
  %3900 = vmatprep.subr.mxu0 0.0
  %3901 = vmatpush1.msra.mxu0 0.0
  %3902 = vmatprep.subr.mxu0 0.0
  %3903 = vmatpush1.msra.mxu0 0.0
  %3904 = vmatprep.subr.mxu0 0.0
  %3905 = vmatpush1.msra.mxu0 0.0
  %3906 = vmatprep.subr.mxu0 0.0
  %3907 = vmatpush1.msra.mxu0 0.0
  %3908 = vmatprep.subr.mxu0 0.0
  %3909 = vmatpush1.msra.mxu0 0.0
  %3910 = vmatprep.subr.mxu0 0.0
  %3911 = vmatpush1.msra.mxu0 0.0
  %3912 = vmatprep.subr.mxu0 0.0
  %3913 = vmatpush1.msra.mxu0 0.0
  %3914 = vmatprep.subr.mxu0 0.0
  %3915 = vmatpush1.msra.mxu0 0.0
  %3916 = vmatprep.subr.mxu0 0.0
  %3917 = vmatpush1.msra.mxu0 0.0
  %3918 = vmatprep.subr.mxu0 0.0
  %3919 = vmatpush1.msra.mxu0 0.0
  %3920 = vmatprep.subr.mxu0 0.0
  %3921 = vmatpush1.msra.mxu0 0.0
  %3922 = vmatprep.mubr.f32.mxu0 0.0
  %v3923 = vand.u32 %v3602, 4294901760
  %v3924 = vsub.f32 %v3602, %v3923
  %v3925 = vand.u32 %v3924, 4294901760
  %3926 = vmatmul.mubr.f32.gmra.mrb[0].mxu0 %v3925
  %v3927 = vpop.f32.mrb[0].mxu0
  %v3928 = vadd.f32 %v3851, %v3927
  %v3929 = vpop.f32.mrb[0].mxu0
  %3930 = vdwg.mxu0
  %3931 = vmatprep.subr.mxu0 0.0
  %v3932 = vand.u32 %v11, 4294901760
  %v3933 = vsub.f32 %v11, %v3932
  %v3934 = vand.u32 %v3933, 4294901760
  %3935 = vmatpush1.msra.mxu0 %v3934
  %3936 = vmatprep.subr.mxu0 0.0
  %v3937 = vand.u32 %v12, 4294901760
  %v3938 = vsub.f32 %v12, %v3937
  %v3939 = vand.u32 %v3938, 4294901760
  %3940 = vmatpush1.msra.mxu0 %v3939
  %3941 = vmatprep.subr.mxu0 0.0
  %v3942 = vand.u32 %v13, 4294901760
  %v3943 = vsub.f32 %v13, %v3942
  %v3944 = vand.u32 %v3943, 4294901760
  %3945 = vmatpush1.msra.mxu0 %v3944
  %3946 = vmatprep.subr.mxu0 0.0
  %v3947 = vand.u32 %v14, 4294901760
  %v3948 = vsub.f32 %v14, %v3947
  %v3949 = vand.u32 %v3948, 4294901760
  %3950 = vmatpush1.msra.mxu0 %v3949
  %3951 = vmatprep.subr.mxu0 0.0
  %3952 = vmatpush1.msra.mxu0 0.0
  %3953 = vmatprep.subr.mxu0 0.0
  %3954 = vmatpush1.msra.mxu0 0.0
  %3955 = vmatprep.subr.mxu0 0.0
  %3956 = vmatpush1.msra.mxu0 0.0
  %3957 = vmatprep.subr.mxu0 0.0
  %3958 = vmatpush1.msra.mxu0 0.0
  %3959 = vmatprep.subr.mxu0 0.0
  %3960 = vmatpush1.msra.mxu0 0.0
  %3961 = vmatprep.subr.mxu0 0.0
  %3962 = vmatpush1.msra.mxu0 0.0
  %3963 = vmatprep.subr.mxu0 0.0
  %3964 = vmatpush1.msra.mxu0 0.0
  %3965 = vmatprep.subr.mxu0 0.0
  %3966 = vmatpush1.msra.mxu0 0.0
  %3967 = vmatprep.subr.mxu0 0.0
  %3968 = vmatpush1.msra.mxu0 0.0
  %3969 = vmatprep.subr.mxu0 0.0
  %3970 = vmatpush1.msra.mxu0 0.0
  %3971 = vmatprep.subr.mxu0 0.0
  %3972 = vmatpush1.msra.mxu0 0.0
  %3973 = vmatprep.subr.mxu0 0.0
  %3974 = vmatpush1.msra.mxu0 0.0
  %3975 = vmatprep.subr.mxu0 0.0
  %3976 = vmatpush1.msra.mxu0 0.0
  %3977 = vmatprep.subr.mxu0 0.0
  %3978 = vmatpush1.msra.mxu0 0.0
  %3979 = vmatprep.subr.mxu0 0.0
  %3980 = vmatpush1.msra.mxu0 0.0
  %3981 = vmatprep.subr.mxu0 0.0
  %3982 = vmatpush1.msra.mxu0 0.0
  %3983 = vmatprep.subr.mxu0 0.0
  %3984 = vmatpush1.msra.mxu0 0.0
  %3985 = vmatprep.subr.mxu0 0.0
  %3986 = vmatpush1.msra.mxu0 0.0
  %3987 = vmatprep.subr.mxu0 0.0
  %3988 = vmatpush1.msra.mxu0 0.0
  %3989 = vmatprep.subr.mxu0 0.0
  %3990 = vmatpush1.msra.mxu0 0.0
  %3991 = vmatprep.subr.mxu0 0.0
  %3992 = vmatpush1.msra.mxu0 0.0
  %3993 = vmatprep.subr.mxu0 0.0
  %3994 = vmatpush1.msra.mxu0 0.0
  %3995 = vmatprep.subr.mxu0 0.0
  %3996 = vmatpush1.msra.mxu0 0.0
  %3997 = vmatprep.subr.mxu0 0.0
  %3998 = vmatpush1.msra.mxu0 0.0
  %3999 = vmatprep.subr.mxu0 0.0
  %4000 = vmatpush1.msra.mxu0 0.0
  %4001 = vmatprep.subr.mxu0 0.0
  %4002 = vmatpush1.msra.mxu0 0.0
  %4003 = vmatprep.subr.mxu0 0.0
  %4004 = vmatpush1.msra.mxu0 0.0
  %4005 = vmatprep.subr.mxu0 0.0
  %4006 = vmatpush1.msra.mxu0 0.0
  %4007 = vmatprep.mubr.f32.mxu0 0.0
  %v4008 = vand.u32 %v3602, 4294901760
  %4009 = vmatmul.mubr.f32.gmra.mrb[0].mxu0 %v4008
  %v4010 = vpop.f32.mrb[0].mxu0
  %v4011 = vadd.f32 %v3928, %v4010
  %v4012 = vpop.f32.mrb[0].mxu0
  %4013 = vdwg.mxu0
  %4014 = vmatprep.subr.mxu0 0.0
  %v4015 = vand.u32 %v11, 4294901760
  %4016 = vmatpush1.msra.mxu0 %v4015
  %4017 = vmatprep.subr.mxu0 0.0
  %v4018 = vand.u32 %v12, 4294901760
  %4019 = vmatpush1.msra.mxu0 %v4018
  %4020 = vmatprep.subr.mxu0 0.0
  %v4021 = vand.u32 %v13, 4294901760
  %4022 = vmatpush1.msra.mxu0 %v4021
  %4023 = vmatprep.subr.mxu0 0.0
  %v4024 = vand.u32 %v14, 4294901760
  %4025 = vmatpush1.msra.mxu0 %v4024
  %4026 = vmatprep.subr.mxu0 0.0
  %4027 = vmatpush1.msra.mxu0 0.0
  %4028 = vmatprep.subr.mxu0 0.0
  %4029 = vmatpush1.msra.mxu0 0.0
  %4030 = vmatprep.subr.mxu0 0.0
  %4031 = vmatpush1.msra.mxu0 0.0
  %4032 = vmatprep.subr.mxu0 0.0
  %4033 = vmatpush1.msra.mxu0 0.0
  %4034 = vmatprep.subr.mxu0 0.0
  %4035 = vmatpush1.msra.mxu0 0.0
  %4036 = vmatprep.subr.mxu0 0.0
  %4037 = vmatpush1.msra.mxu0 0.0
  %4038 = vmatprep.subr.mxu0 0.0
  %4039 = vmatpush1.msra.mxu0 0.0
  %4040 = vmatprep.subr.mxu0 0.0
  %4041 = vmatpush1.msra.mxu0 0.0
  %4042 = vmatprep.subr.mxu0 0.0
  %4043 = vmatpush1.msra.mxu0 0.0
  %4044 = vmatprep.subr.mxu0 0.0
  %4045 = vmatpush1.msra.mxu0 0.0
  %4046 = vmatprep.subr.mxu0 0.0
  %4047 = vmatpush1.msra.mxu0 0.0
  %4048 = vmatprep.subr.mxu0 0.0
  %4049 = vmatpush1.msra.mxu0 0.0
  %4050 = vmatprep.subr.mxu0 0.0
  %4051 = vmatpush1.msra.mxu0 0.0
  %4052 = vmatprep.subr.mxu0 0.0
  %4053 = vmatpush1.msra.mxu0 0.0
  %4054 = vmatprep.subr.mxu0 0.0
  %4055 = vmatpush1.msra.mxu0 0.0
  %4056 = vmatprep.subr.mxu0 0.0
  %4057 = vmatpush1.msra.mxu0 0.0
  %4058 = vmatprep.subr.mxu0 0.0
  %4059 = vmatpush1.msra.mxu0 0.0
  %4060 = vmatprep.subr.mxu0 0.0
  %4061 = vmatpush1.msra.mxu0 0.0
  %4062 = vmatprep.subr.mxu0 0.0
  %4063 = vmatpush1.msra.mxu0 0.0
  %4064 = vmatprep.subr.mxu0 0.0
  %4065 = vmatpush1.msra.mxu0 0.0
  %4066 = vmatprep.subr.mxu0 0.0
  %4067 = vmatpush1.msra.mxu0 0.0
  %4068 = vmatprep.subr.mxu0 0.0
  %4069 = vmatpush1.msra.mxu0 0.0
  %4070 = vmatprep.subr.mxu0 0.0
  %4071 = vmatpush1.msra.mxu0 0.0
  %4072 = vmatprep.subr.mxu0 0.0
  %4073 = vmatpush1.msra.mxu0 0.0
  %4074 = vmatprep.subr.mxu0 0.0
  %4075 = vmatpush1.msra.mxu0 0.0
  %4076 = vmatprep.subr.mxu0 0.0
  %4077 = vmatpush1.msra.mxu0 0.0
  %4078 = vmatprep.subr.mxu0 0.0
  %4079 = vmatpush1.msra.mxu0 0.0
  %4080 = vmatprep.subr.mxu0 0.0
  %4081 = vmatpush1.msra.mxu0 0.0
  %4082 = vmatprep.mubr.f32.mxu0 0.0
  %v4083 = vand.u32 %v3602, 4294901760
  %4084 = vmatmul.mubr.f32.gmra.mrb[0].mxu0 %v4083
  %v4085 = vpop.f32.mrb[0].mxu0
  %v4086 = vadd.f32 %v4011, %v4085
  %v4087 = vpop.f32.mrb[0].mxu0
  %4088 = vdwg.mxu0
  %v4089 = vadd.f32 %v3598, %v4086
  %v4090 = vtanh.pop %v4089
  %v4091 = vmul.f32 %v4090, 0.5
  %v4092 = vadd.f32 %v4091, 0.5
  %v4093 = vmul.f32 %v4092, %v3591
  %4095 = vrot.lane.b32.xlu0 %v4090, 64
  %v4096 = vpop.permute.xlu0 %4095
  %v4098 = vmul.f32 %v4092, %v4096
  %4100 = vrot.lane.b32.xlu0 %v4098, 32
  %v4101 = vpop.permute.xlu0 %4100
  %v4103 = vadd.f32 %v4093, %v4101
  %v4104 = vtanh.pop %v4103
  %4106 = vrot.lane.b32.xlu0 %v4104, 64
  %v4107 = vpop.permute.xlu0 %4106
  %v4109 = vmul.f32 %v4092, %v4107
  %4111 = vrot.lane.b32.xlu0 %v4109, 32
  %v4112 = vpop.permute.xlu0 %4111
  %4114 = vst.msk [vmem:[%s2] sm:$0xff] %vm16, %v4112
  %vm4115 = vcmask 523520
  %4116 = vst.msk [vmem:[%s2] sm:$0xff] %vm4115, %v4103
  // Predicated region
  $region10: #{encoder_forward.1} parent=0 // pred_check
    _
  $region11: #{encoder_forward.1} parent=0 // pred_check_branch
    %4118 = sbr.rel (0) target = $region13
  $region12: #{encoder_forward.1} parent=0 // pred_region
    _
  $region13: #{encoder_forward.1} parent=0 // pred_fallthru
    _
  // Predicated region
  $region14: #{encoder_forward.1} parent=0 // pred_check
    _
  $region15: #{encoder_forward.1} parent=0 // pred_check_branch
    %4120 = sbr.rel (0) target = $region17
  $region16: #{encoder_forward.1} parent=0 // pred_region
    _
  $region17: #{encoder_forward.1} parent=0 // pred_fallthru
    _

</llo_original>
